<compile_context>
chip_gen: v6e
topology: v6e:2x2x1
jax: 0.10.0
libtpu: 0.0.40
codegen_flags: <defaults>
</compile_context>

<pallas_src>
import functools
import math

import jax
import jax.numpy as jnp
from jax import lax
from jax.experimental import pallas as pl
from jax.experimental.pallas import tpu as pltpu


# ---------------------------------------------------------------------------
# Fused per-batch-element kernel: MHA(d_model) + MHA(seq) + LN + CNN + LN.
# ---------------------------------------------------------------------------
def _encoder_layer_kernel(
    src_ref,
    w_in1_ref, b_in1_ref, wo1_ref, bo1_ref,           # attention over d_model
    w_in2_ref, b_in2_ref, wo2_ref, bo2_ref,           # attention over seq_len
    ln1_g_ref, ln1_b_ref, ln2_g_ref, ln2_b_ref,       # the two LayerNorms
    shift_rows_ref, m3_ref, m5_ref, conv_scal_ref,    # CNN branch (BN pre-folded)
    o_ref,
    *, heads, _heads, ln_eps):
  x = src_ref[0].astype(jnp.float32)                  # (S, D)
  S, D = x.shape
  hd1 = D // heads
  hd2 = S // _heads

  def softmax_rows(s):
    s = s - jnp.max(s, axis=-1, keepdims=True)
    p = jnp.exp(s)
    return p * pl.reciprocal(jnp.sum(p, axis=-1, keepdims=True), approx=True)

  # ---------------- MHA #1: attention over d_model --------------------------
  # Fused QKV projection; the 1/sqrt(head_dim) scale is pre-folded into W_q/b_q.
  qkv = jnp.dot(x, w_in1_ref[...], preferred_element_type=jnp.float32) + b_in1_ref[...]
  head_outs = []
  for h in range(heads):
    q = qkv[:, h * hd1:(h + 1) * hd1]                          # (S, hd1)
    k = qkv[:, D + h * hd1:D + (h + 1) * hd1]                  # (S, hd1)
    v = qkv[:, 2 * D + h * hd1:2 * D + (h + 1) * hd1]          # (S, hd1)
    s = lax.dot_general(q, k, (((1,), (1,)), ((), ())),
                        preferred_element_type=jnp.float32)    # (S, S)
    p = softmax_rows(s)
    head_outs.append(jnp.dot(p, v, preferred_element_type=jnp.float32))
  a1 = jnp.dot(jnp.concatenate(head_outs, axis=-1), wo1_ref[...],
               preferred_element_type=jnp.float32) + bo1_ref[...]          # (S, D)

  # ---------------- MHA #2: attention over the seq axis ---------------------
  # Transposed form: qkv2_t = W_in2 @ x + b2 holds [q^T; k^T; v^T] stacked along
  # rows, so neither src nor the attention output ever needs a transpose.
  qkv2_t = (jnp.dot(w_in2_ref[...], x, preferred_element_type=jnp.float32)
            + b_in2_ref[...])                                   # (3S, D)
  # Re-orient q,k to (D, S) with one identity matmul (rhs-contracted pattern).
  eye_d = (lax.broadcasted_iota(jnp.int32, (D, D), 0)
           == lax.broadcasted_iota(jnp.int32, (D, D), 1)).astype(jnp.float32)
  qk2 = lax.dot_general(eye_d, qkv2_t[:2 * S, :], (((1,), (1,)), ((), ())),
                        preferred_element_type=jnp.float32)     # (D, 2S)
  head2_outs = []
  for h in range(_heads):
    q = qk2[:, h * hd2:(h + 1) * hd2]                           # (D, hd2)
    k = qk2[:, S + h * hd2:S + (h + 1) * hd2]                   # (D, hd2)
    vt = qkv2_t[2 * S + h * hd2:2 * S + (h + 1) * hd2, :]       # (hd2, D)
    s = lax.dot_general(q, k, (((1,), (1,)), ((), ())),
                        preferred_element_type=jnp.float32)     # (D, D)
    p = softmax_rows(s)
    # head output already transposed back: (hd2, D)
    head2_outs.append(lax.dot_general(vt, p, (((1,), (1,)), ((), ())),
                                      preferred_element_type=jnp.float32))
  o2_t = jnp.concatenate(head2_outs, axis=0)                    # (S, D)
  a2 = (jnp.dot(wo2_ref[...], o2_t, preferred_element_type=jnp.float32)
        + bo2_ref[...])                                         # (S, D)

  # ---------------- residual + LayerNorm #1 ---------------------------------
  def layer_norm(y, g, b):
    mean = jnp.mean(y, axis=-1, keepdims=True)
    yc = y - mean
    var = jnp.mean(yc * yc, axis=-1, keepdims=True)
    return yc * lax.rsqrt(var + ln_eps) * g + b

  src1 = layer_norm(x + a1 + a2, ln1_g_ref[...], ln1_b_ref[...])

  # ---------------- CNN branch: 3 x (Conv2d + BN(eval) + ReLU) --------------
  # 1x1 stage: just a folded scalar scale + shift.
  h1 = jnp.maximum(conv_scal_ref[0] * src1 + conv_scal_ref[1], 0.0)

  def conv_bn_relu(y, m_ref, taps, r_base, shift):
    acc = None
    for t in range(taps):
      ym = jnp.dot(y, m_ref[t], preferred_element_type=jnp.float32)        # (S, D)
      term = jnp.dot(shift_rows_ref[r_base + t], ym,
                     preferred_element_type=jnp.float32)                   # (S, D)
      acc = term if acc is None else acc + term
    return jnp.maximum(acc + shift, 0.0)

  h2 = conv_bn_relu(h1, m3_ref, 3, 1, conv_scal_ref[2])       # 3x3, pad 1
  h3 = conv_bn_relu(h2, m5_ref, 5, 0, conv_scal_ref[3])       # 5x5, pad 2

  # ---------------- residual + LayerNorm #2 ---------------------------------
  out = layer_norm(src1 + h3, ln2_g_ref[...], ln2_b_ref[...])
  o_ref[0] = out.astype(o_ref.dtype)


# ---------------------------------------------------------------------------
# Wrapper: one pallas_call for the whole layer.
# ---------------------------------------------------------------------------
def transformer_encoder_layer(src, params, *, heads, _heads, ln_eps=1e-5):
  B, S, D = src.shape
  kernel = functools.partial(_encoder_layer_kernel, heads=heads, _heads=_heads,
                             ln_eps=ln_eps)

  def rep(shape):
    # Full-array weight block, identical for every grid step (DMA'd once).
    return pl.BlockSpec(shape, lambda b: (0,) * len(shape))

  in_specs = [
      pl.BlockSpec((1, S, D), lambda b: (b, 0, 0)),                # src
      rep((D, 3 * D)), rep((1, 3 * D)), rep((D, D)), rep((1, D)),  # MHA #1
      rep((3 * S, S)), rep((3 * S, 1)), rep((S, S)), rep((S, 1)),  # MHA #2
      rep((1, D)), rep((1, D)), rep((1, D)), rep((1, D)),          # LayerNorms
      rep((5, S, S)), rep((3, D, D)), rep((5, D, D)),              # conv matrices
      pl.BlockSpec(memory_space=pltpu.MemorySpace.SMEM),           # conv scalars
  ]

  return pl.pallas_call(
      kernel,
      out_shape=jax.ShapeDtypeStruct((B, S, D), src.dtype),
      grid=(B,),
      in_specs=in_specs,
      out_specs=pl.BlockSpec((1, S, D), lambda b: (b, 0, 0)),
      compiler_params=pltpu.CompilerParams(dimension_semantics=("parallel",)),
  )(src,
    params["w_in1_t"], params["b_in1"], params["wo1_t"], params["bo1"],
    params["w_in2"], params["b_in2"], params["wo2"], params["bo2"],
    params["ln1_g"], params["ln1_b"], params["ln2_g"], params["ln2_b"],
    params["shift_rows"], params["m3"], params["m5"], params["conv_scal"])


# ---------------------------------------------------------------------------
# Parameter prep (shapes match the PyTorch module; all folding done here, once).
# ---------------------------------------------------------------------------
def _shift_matrix(n, a):
  """M with M[i, j] = 1 iff j == i + a, so (M @ x)[i] = x[i + a], zero padded."""
  m = jnp.zeros((n, n), jnp.float32)
  if a >= 0:
    idx = jnp.arange(n - a)
    return m.at[idx, idx + a].set(1.0)
  idx = jnp.arange(n + a)
  return m.at[idx - a, idx].set(1.0)


def _col_mix_matrices(w_eff, d):
  """For row offset a: M_a = sum_b w_eff[a+p, b+p] * C_b with
  (x @ C_b)[i, c] = x[i, c + b] (zero padded)."""
  k = w_eff.shape[0]
  p = (k - 1) // 2
  mats = []
  for a in range(-p, p + 1):
    m = jnp.zeros((d, d), jnp.float32)
    for b in range(-p, p + 1):
      m = m + w_eff[a + p, b + p] * _shift_matrix(d, b).T
    mats.append(m)
  return jnp.stack(mats)                     # (k, d, d)


def init_params(key, d_model, heads, _heads, seq_len, bn_eps=1e-5):
  ks = iter(jax.random.split(key, 16))

  def rnd(shape, scale=0.1):
    return (scale * jax.random.normal(next(ks), shape)).astype(jnp.float32)

  # ---- nn.MultiheadAttention(d_model, heads) ----
  in_w1 = rnd((3 * d_model, d_model))        # in_proj_weight
  in_b1 = rnd((3 * d_model,), 0.02)          # in_proj_bias
  out_w1 = rnd((d_model, d_model))           # out_proj.weight
  out_b1 = rnd((d_model,), 0.02)             # out_proj.bias
  s1 = 1.0 / math.sqrt(d_model // heads)     # fold softmax scale into W_q / b_q
  in_w1 = in_w1.at[:d_model].multiply(s1)
  in_b1 = in_b1.at[:d_model].multiply(s1)

  # ---- nn.MultiheadAttention(seq_len, _heads) ----
  in_w2 = rnd((3 * seq_len, seq_len))
  in_b2 = rnd((3 * seq_len,), 0.02)
  out_w2 = rnd((seq_len, seq_len))
  out_b2 = rnd((seq_len,), 0.02)
  s2 = 1.0 / math.sqrt(seq_len // _heads)
  in_w2 = in_w2.at[:seq_len].multiply(s2)
  in_b2 = in_b2.at[:seq_len].multiply(s2)

  # ---- Conv2d(1,1,(k,k)) + BatchNorm2d (eval mode) folded ----
  def conv_stage(k):
    w = rnd((k, k), 0.3)                     # Conv2d weight (1,1,k,k) squeezed
    b = rnd((), 0.02)                        # Conv2d bias
    gamma, beta = jnp.float32(1.0), jnp.float32(0.0)     # BN defaults
    mean, var = jnp.float32(0.0), jnp.float32(1.0)
    scale = gamma / jnp.sqrt(var + bn_eps)
    return w * scale, b * scale + (beta - mean * scale)

  w1_eff, shift1 = conv_stage(1)
  w3_eff, shift3 = conv_stage(3)
  w5_eff, shift5 = conv_stage(5)

  return dict(
      w_in1_t=in_w1.T,                                   # (D, 3D)
      b_in1=in_b1.reshape(1, 3 * d_model),
      wo1_t=out_w1.T,                                    # (D, D)
      bo1=out_b1.reshape(1, d_model),
      w_in2=in_w2,                                       # (3S, S)
      b_in2=in_b2.reshape(3 * seq_len, 1),
      wo2=out_w2,                                        # (S, S)
      bo2=out_b2.reshape(seq_len, 1),
      ln1_g=jnp.ones((1, d_model), jnp.float32),
      ln1_b=jnp.zeros((1, d_model), jnp.float32),
      ln2_g=jnp.ones((1, d_model), jnp.float32),
      ln2_b=jnp.zeros((1, d_model), jnp.float32),
      shift_rows=jnp.stack([_shift_matrix(seq_len, a) for a in range(-2, 3)]),
      m3=_col_mix_matrices(w3_eff, d_model),             # (3, D, D)
      m5=_col_mix_matrices(w5_eff, d_model),             # (5, D, D)
      conv_scal=jnp.stack([w1_eff[0, 0], shift1, shift3, shift5]
                          ).astype(jnp.float32),         # SMEM: [w1, sh1, sh3, sh5]
  )


if __name__ == "__main__":
  B, seq_len, d_model = 2, 8, 32
  heads, _heads, dropout = 4, 2, 0.1       # dropout unused (inference semantics)

  key = jax.random.PRNGKey(0)
  k_x, k_p = jax.random.split(key)
  src = jax.random.normal(k_x, (B, seq_len, d_model), dtype=jnp.float32)
  params = init_params(k_p, d_model, heads, _heads, seq_len)

  out = transformer_encoder_layer(src, params, heads=heads, _heads=_heads)
  out = jax.block_until_ready(out)

  assert out.shape == (B, seq_len, d_model), out.shape
  assert bool(jnp.all(jnp.isfinite(out)))
  print("KERNEL_OK")
</pallas_src>

<mosaic_0001>
module attributes {stable_mosaic.version = 11 : i64} {
  func.func @_encoder_layer_kernel(%arg0: i32, %arg1: memref<1x8x32xf32, #tpu.memory_space<vmem>>, %arg2: memref<32x96xf32, #tpu.memory_space<vmem>>, %arg3: memref<1x96xf32, #tpu.memory_space<vmem>>, %arg4: memref<32x32xf32, #tpu.memory_space<vmem>>, %arg5: memref<1x32xf32, #tpu.memory_space<vmem>>, %arg6: memref<24x8xf32, #tpu.memory_space<vmem>>, %arg7: memref<24x1xf32, #tpu.memory_space<vmem>>, %arg8: memref<8x8xf32, #tpu.memory_space<vmem>>, %arg9: memref<8x1xf32, #tpu.memory_space<vmem>>, %arg10: memref<1x32xf32, #tpu.memory_space<vmem>>, %arg11: memref<1x32xf32, #tpu.memory_space<vmem>>, %arg12: memref<1x32xf32, #tpu.memory_space<vmem>>, %arg13: memref<1x32xf32, #tpu.memory_space<vmem>>, %arg14: memref<5x8x8xf32, #tpu.memory_space<vmem>>, %arg15: memref<3x32x32xf32, #tpu.memory_space<vmem>>, %arg16: memref<5x32x32xf32, #tpu.memory_space<vmem>>, %arg17: memref<4xf32, #tpu.memory_space<smem>>, %arg18: memref<1x8x32xf32, #tpu.memory_space<vmem>>) attributes {dimension_semantics = [#tpu.dimension_semantics<parallel>], iteration_bounds = array<i64: 2>, scalar_prefetch = 0 : i64, scratch_operands = 0 : i64, tpu.core_type = #tpu.core_type<tc>, window_params = [{transform_indices = @transform_0, window_bounds = array<i64: 1, 8, 32>}, {pipeline_mode = #tpu.pipeline_mode<synchronous>, transform_indices = @transform_1, window_bounds = array<i64: 32, 96>}, {pipeline_mode = #tpu.pipeline_mode<synchronous>, transform_indices = @transform_2, window_bounds = array<i64: 1, 96>}, {pipeline_mode = #tpu.pipeline_mode<synchronous>, transform_indices = @transform_3, window_bounds = array<i64: 32, 32>}, {pipeline_mode = #tpu.pipeline_mode<synchronous>, transform_indices = @transform_4, window_bounds = array<i64: 1, 32>}, {pipeline_mode = #tpu.pipeline_mode<synchronous>, transform_indices = @transform_5, window_bounds = array<i64: 24, 8>}, {pipeline_mode = #tpu.pipeline_mode<synchronous>, transform_indices = @transform_6, window_bounds = array<i64: 24, 1>}, {pipeline_mode = #tpu.pipeline_mode<synchronous>, transform_indices = @transform_7, window_bounds = array<i64: 8, 8>}, {pipeline_mode = #tpu.pipeline_mode<synchronous>, transform_indices = @transform_8, window_bounds = array<i64: 8, 1>}, {pipeline_mode = #tpu.pipeline_mode<synchronous>, transform_indices = @transform_9, window_bounds = array<i64: 1, 32>}, {pipeline_mode = #tpu.pipeline_mode<synchronous>, transform_indices = @transform_10, window_bounds = array<i64: 1, 32>}, {pipeline_mode = #tpu.pipeline_mode<synchronous>, transform_indices = @transform_11, window_bounds = array<i64: 1, 32>}, {pipeline_mode = #tpu.pipeline_mode<synchronous>, transform_indices = @transform_12, window_bounds = array<i64: 1, 32>}, {pipeline_mode = #tpu.pipeline_mode<synchronous>, transform_indices = @transform_13, window_bounds = array<i64: 5, 8, 8>}, {pipeline_mode = #tpu.pipeline_mode<synchronous>, transform_indices = @transform_14, window_bounds = array<i64: 3, 32, 32>}, {pipeline_mode = #tpu.pipeline_mode<synchronous>, transform_indices = @transform_15, window_bounds = array<i64: 5, 32, 32>}, {transform_indices = @transform_16, window_bounds = array<i64: 4>}, {transform_indices = @transform_17, window_bounds = array<i64: 1, 8, 32>}]} {
    %c0 = arith.constant 0 : index
    %c0_0 = arith.constant 0 : index
    %c0_1 = arith.constant 0 : index
    %0 = vector.load %arg1[%c0, %c0_0, %c0_1] : memref<1x8x32xf32, #tpu.memory_space<vmem>>, vector<1x8x32xf32>
    %1 = vector.shape_cast %0 : vector<1x8x32xf32> to vector<8x32xf32>
    %c0_2 = arith.constant 0 : index
    %c0_3 = arith.constant 0 : index
    %2 = vector.load %arg2[%c0_2, %c0_3] : memref<32x96xf32, #tpu.memory_space<vmem>>, vector<32x96xf32>
    %cst = arith.constant dense<0.000000e+00> : vector<8x96xf32>
    %3 = tpu.matmul %1, %2, %cst {dimension_numbers = #tpu.dot_dimension_numbers<[1], [0], [0], [1], [0, 0, 1, 1], [], []>} : vector<8x32xf32>, vector<32x96xf32>, vector<8x96xf32> -> vector<8x96xf32>
    %c0_4 = arith.constant 0 : index
    %c0_5 = arith.constant 0 : index
    %4 = vector.load %arg3[%c0_4, %c0_5] : memref<1x96xf32, #tpu.memory_space<vmem>>, vector<1x96xf32>
    %5 = vector.broadcast %4 : vector<1x96xf32> to vector<8x96xf32>
    %6 = arith.addf %3, %5 : vector<8x96xf32>
    %7 = vector.extract_strided_slice %6 {offsets = [0, 0], sizes = [8, 8], strides = [1, 1]} : vector<8x96xf32> to vector<8x8xf32>
    %8 = vector.extract_strided_slice %6 {offsets = [0, 32], sizes = [8, 8], strides = [1, 1]} : vector<8x96xf32> to vector<8x8xf32>
    %9 = vector.extract_strided_slice %6 {offsets = [0, 64], sizes = [8, 8], strides = [1, 1]} : vector<8x96xf32> to vector<8x8xf32>
    %cst_6 = arith.constant dense<0.000000e+00> : vector<8x8xf32>
    %10 = tpu.matmul %7, %8, %cst_6 {dimension_numbers = #tpu.dot_dimension_numbers<[1], [1], [0], [0], [0, 0, 1, 0], [], []>} : vector<8x8xf32>, vector<8x8xf32>, vector<8x8xf32> -> vector<8x8xf32>
    %cst_7 = arith.constant dense<0xFF800000> : vector<8xf32>
    %11 = vector.multi_reduction <maximumf>, %10, %cst_7 [1] : vector<8x8xf32> to vector<8xf32>
    %12 = vector.shape_cast %11 : vector<8xf32> to vector<8x1xf32>
    %13 = vector.broadcast %12 : vector<8x1xf32> to vector<8x8xf32>
    %14 = arith.subf %10, %13 : vector<8x8xf32>
    %15 = math.exp %14 : vector<8x8xf32>
    %cst_8 = arith.constant dense<0.000000e+00> : vector<8xf32>
    %16 = vector.multi_reduction <add>, %15, %cst_8 [1] : vector<8x8xf32> to vector<8xf32>
    %17 = vector.shape_cast %16 : vector<8xf32> to vector<8x1xf32>
    %18 = tpu.reciprocal %17 {approx = true} : vector<8x1xf32> -> vector<8x1xf32>
    %19 = vector.broadcast %18 : vector<8x1xf32> to vector<8x8xf32>
    %20 = arith.mulf %15, %19 : vector<8x8xf32>
    %cst_9 = arith.constant dense<0.000000e+00> : vector<8x8xf32>
    %21 = tpu.matmul %20, %9, %cst_9 {dimension_numbers = #tpu.dot_dimension_numbers<[1], [0], [0], [1], [0, 0, 1, 1], [], []>} : vector<8x8xf32>, vector<8x8xf32>, vector<8x8xf32> -> vector<8x8xf32>
    %22 = vector.extract_strided_slice %6 {offsets = [0, 8], sizes = [8, 8], strides = [1, 1]} : vector<8x96xf32> to vector<8x8xf32>
    %23 = vector.extract_strided_slice %6 {offsets = [0, 40], sizes = [8, 8], strides = [1, 1]} : vector<8x96xf32> to vector<8x8xf32>
    %24 = vector.extract_strided_slice %6 {offsets = [0, 72], sizes = [8, 8], strides = [1, 1]} : vector<8x96xf32> to vector<8x8xf32>
    %cst_10 = arith.constant dense<0.000000e+00> : vector<8x8xf32>
    %25 = tpu.matmul %22, %23, %cst_10 {dimension_numbers = #tpu.dot_dimension_numbers<[1], [1], [0], [0], [0, 0, 1, 0], [], []>} : vector<8x8xf32>, vector<8x8xf32>, vector<8x8xf32> -> vector<8x8xf32>
    %cst_11 = arith.constant dense<0xFF800000> : vector<8xf32>
    %26 = vector.multi_reduction <maximumf>, %25, %cst_11 [1] : vector<8x8xf32> to vector<8xf32>
    %27 = vector.shape_cast %26 : vector<8xf32> to vector<8x1xf32>
    %28 = vector.broadcast %27 : vector<8x1xf32> to vector<8x8xf32>
    %29 = arith.subf %25, %28 : vector<8x8xf32>
    %30 = math.exp %29 : vector<8x8xf32>
    %cst_12 = arith.constant dense<0.000000e+00> : vector<8xf32>
    %31 = vector.multi_reduction <add>, %30, %cst_12 [1] : vector<8x8xf32> to vector<8xf32>
    %32 = vector.shape_cast %31 : vector<8xf32> to vector<8x1xf32>
    %33 = tpu.reciprocal %32 {approx = true} : vector<8x1xf32> -> vector<8x1xf32>
    %34 = vector.broadcast %33 : vector<8x1xf32> to vector<8x8xf32>
    %35 = arith.mulf %30, %34 : vector<8x8xf32>
    %cst_13 = arith.constant dense<0.000000e+00> : vector<8x8xf32>
    %36 = tpu.matmul %35, %24, %cst_13 {dimension_numbers = #tpu.dot_dimension_numbers<[1], [0], [0], [1], [0, 0, 1, 1], [], []>} : vector<8x8xf32>, vector<8x8xf32>, vector<8x8xf32> -> vector<8x8xf32>
    %37 = vector.extract_strided_slice %6 {offsets = [0, 16], sizes = [8, 8], strides = [1, 1]} : vector<8x96xf32> to vector<8x8xf32>
    %38 = vector.extract_strided_slice %6 {offsets = [0, 48], sizes = [8, 8], strides = [1, 1]} : vector<8x96xf32> to vector<8x8xf32>
    %39 = vector.extract_strided_slice %6 {offsets = [0, 80], sizes = [8, 8], strides = [1, 1]} : vector<8x96xf32> to vector<8x8xf32>
    %cst_14 = arith.constant dense<0.000000e+00> : vector<8x8xf32>
    %40 = tpu.matmul %37, %38, %cst_14 {dimension_numbers = #tpu.dot_dimension_numbers<[1], [1], [0], [0], [0, 0, 1, 0], [], []>} : vector<8x8xf32>, vector<8x8xf32>, vector<8x8xf32> -> vector<8x8xf32>
    %cst_15 = arith.constant dense<0xFF800000> : vector<8xf32>
    %41 = vector.multi_reduction <maximumf>, %40, %cst_15 [1] : vector<8x8xf32> to vector<8xf32>
    %42 = vector.shape_cast %41 : vector<8xf32> to vector<8x1xf32>
    %43 = vector.broadcast %42 : vector<8x1xf32> to vector<8x8xf32>
    %44 = arith.subf %40, %43 : vector<8x8xf32>
    %45 = math.exp %44 : vector<8x8xf32>
    %cst_16 = arith.constant dense<0.000000e+00> : vector<8xf32>
    %46 = vector.multi_reduction <add>, %45, %cst_16 [1] : vector<8x8xf32> to vector<8xf32>
    %47 = vector.shape_cast %46 : vector<8xf32> to vector<8x1xf32>
    %48 = tpu.reciprocal %47 {approx = true} : vector<8x1xf32> -> vector<8x1xf32>
    %49 = vector.broadcast %48 : vector<8x1xf32> to vector<8x8xf32>
    %50 = arith.mulf %45, %49 : vector<8x8xf32>
    %cst_17 = arith.constant dense<0.000000e+00> : vector<8x8xf32>
    %51 = tpu.matmul %50, %39, %cst_17 {dimension_numbers = #tpu.dot_dimension_numbers<[1], [0], [0], [1], [0, 0, 1, 1], [], []>} : vector<8x8xf32>, vector<8x8xf32>, vector<8x8xf32> -> vector<8x8xf32>
    %52 = vector.extract_strided_slice %6 {offsets = [0, 24], sizes = [8, 8], strides = [1, 1]} : vector<8x96xf32> to vector<8x8xf32>
    %53 = vector.extract_strided_slice %6 {offsets = [0, 56], sizes = [8, 8], strides = [1, 1]} : vector<8x96xf32> to vector<8x8xf32>
    %54 = vector.extract_strided_slice %6 {offsets = [0, 88], sizes = [8, 8], strides = [1, 1]} : vector<8x96xf32> to vector<8x8xf32>
    %cst_18 = arith.constant dense<0.000000e+00> : vector<8x8xf32>
    %55 = tpu.matmul %52, %53, %cst_18 {dimension_numbers = #tpu.dot_dimension_numbers<[1], [1], [0], [0], [0, 0, 1, 0], [], []>} : vector<8x8xf32>, vector<8x8xf32>, vector<8x8xf32> -> vector<8x8xf32>
    %cst_19 = arith.constant dense<0xFF800000> : vector<8xf32>
    %56 = vector.multi_reduction <maximumf>, %55, %cst_19 [1] : vector<8x8xf32> to vector<8xf32>
    %57 = vector.shape_cast %56 : vector<8xf32> to vector<8x1xf32>
    %58 = vector.broadcast %57 : vector<8x1xf32> to vector<8x8xf32>
    %59 = arith.subf %55, %58 : vector<8x8xf32>
    %60 = math.exp %59 : vector<8x8xf32>
    %cst_20 = arith.constant dense<0.000000e+00> : vector<8xf32>
    %61 = vector.multi_reduction <add>, %60, %cst_20 [1] : vector<8x8xf32> to vector<8xf32>
    %62 = vector.shape_cast %61 : vector<8xf32> to vector<8x1xf32>
    %63 = tpu.reciprocal %62 {approx = true} : vector<8x1xf32> -> vector<8x1xf32>
    %64 = vector.broadcast %63 : vector<8x1xf32> to vector<8x8xf32>
    %65 = arith.mulf %60, %64 : vector<8x8xf32>
    %cst_21 = arith.constant dense<0.000000e+00> : vector<8x8xf32>
    %66 = tpu.matmul %65, %54, %cst_21 {dimension_numbers = #tpu.dot_dimension_numbers<[1], [0], [0], [1], [0, 0, 1, 1], [], []>} : vector<8x8xf32>, vector<8x8xf32>, vector<8x8xf32> -> vector<8x8xf32>
    %67 = tpu.concatenate %21, %36, %51, %66 in 1 : vector<8x8xf32>, vector<8x8xf32>, vector<8x8xf32>, vector<8x8xf32> -> vector<8x32xf32>
    %c0_22 = arith.constant 0 : index
    %c0_23 = arith.constant 0 : index
    %68 = vector.load %arg4[%c0_22, %c0_23] : memref<32x32xf32, #tpu.memory_space<vmem>>, vector<32x32xf32>
    %cst_24 = arith.constant dense<0.000000e+00> : vector<8x32xf32>
    %69 = tpu.matmul %67, %68, %cst_24 {dimension_numbers = #tpu.dot_dimension_numbers<[1], [0], [0], [1], [0, 0, 1, 1], [], []>} : vector<8x32xf32>, vector<32x32xf32>, vector<8x32xf32> -> vector<8x32xf32>
    %c0_25 = arith.constant 0 : index
    %c0_26 = arith.constant 0 : index
    %70 = vector.load %arg5[%c0_25, %c0_26] : memref<1x32xf32, #tpu.memory_space<vmem>>, vector<1x32xf32>
    %71 = vector.broadcast %70 : vector<1x32xf32> to vector<8x32xf32>
    %72 = arith.addf %69, %71 : vector<8x32xf32>
    %c0_27 = arith.constant 0 : index
    %c0_28 = arith.constant 0 : index
    %73 = vector.load %arg6[%c0_27, %c0_28] : memref<24x8xf32, #tpu.memory_space<vmem>>, vector<24x8xf32>
    %cst_29 = arith.constant dense<0.000000e+00> : vector<24x32xf32>
    %74 = tpu.matmul %73, %1, %cst_29 {dimension_numbers = #tpu.dot_dimension_numbers<[1], [0], [0], [1], [0, 0, 1, 1], [], []>} : vector<24x8xf32>, vector<8x32xf32>, vector<24x32xf32> -> vector<24x32xf32>
    %c0_30 = arith.constant 0 : index
    %c0_31 = arith.constant 0 : index
    %75 = vector.load %arg7[%c0_30, %c0_31] : memref<24x1xf32, #tpu.memory_space<vmem>>, vector<24x1xf32>
    %76 = vector.broadcast %75 : vector<24x1xf32> to vector<24x32xf32>
    %77 = arith.addf %74, %76 : vector<24x32xf32>
    %78 = tpu.iota {dimensions = array<i32: 0>} : vector<32x32xi32>
    %79 = tpu.iota {dimensions = array<i32: 1>} : vector<32x32xi32>
    %80 = arith.cmpi eq, %78, %79 : vector<32x32xi32>
    %81 = arith.extui %80 : vector<32x32xi1> to vector<32x32xi32>
    %82 = arith.sitofp %81 : vector<32x32xi32> to vector<32x32xf32>
    %83 = vector.extract_strided_slice %77 {offsets = [0, 0], sizes = [16, 32], strides = [1, 1]} : vector<24x32xf32> to vector<16x32xf32>
    %cst_32 = arith.constant dense<0.000000e+00> : vector<32x16xf32>
    %84 = tpu.matmul %82, %83, %cst_32 {dimension_numbers = #tpu.dot_dimension_numbers<[1], [1], [0], [0], [0, 0, 1, 0], [], []>} : vector<32x32xf32>, vector<16x32xf32>, vector<32x16xf32> -> vector<32x16xf32>
    %85 = vector.extract_strided_slice %84 {offsets = [0, 0], sizes = [32, 4], strides = [1, 1]} : vector<32x16xf32> to vector<32x4xf32>
    %86 = vector.extract_strided_slice %84 {offsets = [0, 8], sizes = [32, 4], strides = [1, 1]} : vector<32x16xf32> to vector<32x4xf32>
    %87 = vector.extract_strided_slice %77 {offsets = [16, 0], sizes = [4, 32], strides = [1, 1]} : vector<24x32xf32> to vector<4x32xf32>
    %cst_33 = arith.constant dense<0.000000e+00> : vector<32x32xf32>
    %88 = tpu.matmul %85, %86, %cst_33 {dimension_numbers = #tpu.dot_dimension_numbers<[1], [1], [0], [0], [0, 0, 1, 0], [], []>} : vector<32x4xf32>, vector<32x4xf32>, vector<32x32xf32> -> vector<32x32xf32>
    %cst_34 = arith.constant dense<0xFF800000> : vector<32xf32>
    %89 = vector.multi_reduction <maximumf>, %88, %cst_34 [1] : vector<32x32xf32> to vector<32xf32>
    %90 = vector.shape_cast %89 : vector<32xf32> to vector<32x1xf32>
    %91 = vector.broadcast %90 : vector<32x1xf32> to vector<32x32xf32>
    %92 = arith.subf %88, %91 : vector<32x32xf32>
    %93 = math.exp %92 : vector<32x32xf32>
    %cst_35 = arith.constant dense<0.000000e+00> : vector<32xf32>
    %94 = vector.multi_reduction <add>, %93, %cst_35 [1] : vector<32x32xf32> to vector<32xf32>
    %95 = vector.shape_cast %94 : vector<32xf32> to vector<32x1xf32>
    %96 = tpu.reciprocal %95 {approx = true} : vector<32x1xf32> -> vector<32x1xf32>
    %97 = vector.broadcast %96 : vector<32x1xf32> to vector<32x32xf32>
    %98 = arith.mulf %93, %97 : vector<32x32xf32>
    %cst_36 = arith.constant dense<0.000000e+00> : vector<4x32xf32>
    %99 = tpu.matmul %87, %98, %cst_36 {dimension_numbers = #tpu.dot_dimension_numbers<[1], [1], [0], [0], [0, 0, 1, 0], [], []>} : vector<4x32xf32>, vector<32x32xf32>, vector<4x32xf32> -> vector<4x32xf32>
    %100 = vector.extract_strided_slice %84 {offsets = [0, 4], sizes = [32, 4], strides = [1, 1]} : vector<32x16xf32> to vector<32x4xf32>
    %101 = vector.extract_strided_slice %84 {offsets = [0, 12], sizes = [32, 4], strides = [1, 1]} : vector<32x16xf32> to vector<32x4xf32>
    %102 = vector.extract_strided_slice %77 {offsets = [20, 0], sizes = [4, 32], strides = [1, 1]} : vector<24x32xf32> to vector<4x32xf32>
    %cst_37 = arith.constant dense<0.000000e+00> : vector<32x32xf32>
    %103 = tpu.matmul %100, %101, %cst_37 {dimension_numbers = #tpu.dot_dimension_numbers<[1], [1], [0], [0], [0, 0, 1, 0], [], []>} : vector<32x4xf32>, vector<32x4xf32>, vector<32x32xf32> -> vector<32x32xf32>
    %cst_38 = arith.constant dense<0xFF800000> : vector<32xf32>
    %104 = vector.multi_reduction <maximumf>, %103, %cst_38 [1] : vector<32x32xf32> to vector<32xf32>
    %105 = vector.shape_cast %104 : vector<32xf32> to vector<32x1xf32>
    %106 = vector.broadcast %105 : vector<32x1xf32> to vector<32x32xf32>
    %107 = arith.subf %103, %106 : vector<32x32xf32>
    %108 = math.exp %107 : vector<32x32xf32>
    %cst_39 = arith.constant dense<0.000000e+00> : vector<32xf32>
    %109 = vector.multi_reduction <add>, %108, %cst_39 [1] : vector<32x32xf32> to vector<32xf32>
    %110 = vector.shape_cast %109 : vector<32xf32> to vector<32x1xf32>
    %111 = tpu.reciprocal %110 {approx = true} : vector<32x1xf32> -> vector<32x1xf32>
    %112 = vector.broadcast %111 : vector<32x1xf32> to vector<32x32xf32>
    %113 = arith.mulf %108, %112 : vector<32x32xf32>
    %cst_40 = arith.constant dense<0.000000e+00> : vector<4x32xf32>
    %114 = tpu.matmul %102, %113, %cst_40 {dimension_numbers = #tpu.dot_dimension_numbers<[1], [1], [0], [0], [0, 0, 1, 0], [], []>} : vector<4x32xf32>, vector<32x32xf32>, vector<4x32xf32> -> vector<4x32xf32>
    %115 = tpu.concatenate %99, %114 in 0 : vector<4x32xf32>, vector<4x32xf32> -> vector<8x32xf32>
    %c0_41 = arith.constant 0 : index
    %c0_42 = arith.constant 0 : index
    %116 = vector.load %arg8[%c0_41, %c0_42] : memref<8x8xf32, #tpu.memory_space<vmem>>, vector<8x8xf32>
    %cst_43 = arith.constant dense<0.000000e+00> : vector<8x32xf32>
    %117 = tpu.matmul %116, %115, %cst_43 {dimension_numbers = #tpu.dot_dimension_numbers<[1], [0], [0], [1], [0, 0, 1, 1], [], []>} : vector<8x8xf32>, vector<8x32xf32>, vector<8x32xf32> -> vector<8x32xf32>
    %c0_44 = arith.constant 0 : index
    %c0_45 = arith.constant 0 : index
    %118 = vector.load %arg9[%c0_44, %c0_45] : memref<8x1xf32, #tpu.memory_space<vmem>>, vector<8x1xf32>
    %119 = vector.broadcast %118 : vector<8x1xf32> to vector<8x32xf32>
    %120 = arith.addf %117, %119 : vector<8x32xf32>
    %121 = arith.addf %1, %72 : vector<8x32xf32>
    %122 = arith.addf %121, %120 : vector<8x32xf32>
    %c0_46 = arith.constant 0 : index
    %c0_47 = arith.constant 0 : index
    %123 = vector.load %arg10[%c0_46, %c0_47] : memref<1x32xf32, #tpu.memory_space<vmem>>, vector<1x32xf32>
    %c0_48 = arith.constant 0 : index
    %c0_49 = arith.constant 0 : index
    %124 = vector.load %arg11[%c0_48, %c0_49] : memref<1x32xf32, #tpu.memory_space<vmem>>, vector<1x32xf32>
    %cst_50 = arith.constant dense<0.000000e+00> : vector<8xf32>
    %125 = vector.multi_reduction <add>, %122, %cst_50 [1] : vector<8x32xf32> to vector<8xf32>
    %126 = vector.shape_cast %125 : vector<8xf32> to vector<8x1xf32>
    %cst_51 = arith.constant 3.200000e+01 : f32
    %127 = vector.broadcast %cst_51 : f32 to vector<8x1xf32>
    %128 = arith.divf %126, %127 : vector<8x1xf32>
    %129 = vector.broadcast %128 : vector<8x1xf32> to vector<8x32xf32>
    %130 = arith.subf %122, %129 : vector<8x32xf32>
    %131 = arith.mulf %130, %130 : vector<8x32xf32>
    %cst_52 = arith.constant dense<0.000000e+00> : vector<8xf32>
    %132 = vector.multi_reduction <add>, %131, %cst_52 [1] : vector<8x32xf32> to vector<8xf32>
    %133 = vector.shape_cast %132 : vector<8xf32> to vector<8x1xf32>
    %cst_53 = arith.constant 3.200000e+01 : f32
    %134 = vector.broadcast %cst_53 : f32 to vector<8x1xf32>
    %135 = arith.divf %133, %134 : vector<8x1xf32>
    %cst_54 = arith.constant 9.99999974E-6 : f32
    %136 = vector.broadcast %cst_54 : f32 to vector<8x1xf32>
    %137 = arith.addf %135, %136 : vector<8x1xf32>
    %138 = math.rsqrt %137 : vector<8x1xf32>
    %139 = vector.broadcast %138 : vector<8x1xf32> to vector<8x32xf32>
    %140 = arith.mulf %130, %139 : vector<8x32xf32>
    %141 = vector.broadcast %123 : vector<1x32xf32> to vector<8x32xf32>
    %142 = arith.mulf %140, %141 : vector<8x32xf32>
    %143 = vector.broadcast %124 : vector<1x32xf32> to vector<8x32xf32>
    %144 = arith.addf %142, %143 : vector<8x32xf32>
    %c0_55 = arith.constant 0 : index
    %145 = memref.load %arg17[%c0_55] : memref<4xf32, #tpu.memory_space<smem>>
    %146 = vector.broadcast %145 : f32 to vector<8x32xf32>
    %147 = arith.mulf %146, %144 : vector<8x32xf32>
    %c1 = arith.constant 1 : index
    %148 = memref.load %arg17[%c1] : memref<4xf32, #tpu.memory_space<smem>>
    %149 = vector.broadcast %148 : f32 to vector<8x32xf32>
    %150 = arith.addf %147, %149 : vector<8x32xf32>
    %cst_56 = arith.constant 0.000000e+00 : f32
    %151 = vector.broadcast %cst_56 : f32 to vector<8x32xf32>
    %152 = arith.maximumf %150, %151 : vector<8x32xf32>
    %c2 = arith.constant 2 : index
    %153 = memref.load %arg17[%c2] : memref<4xf32, #tpu.memory_space<smem>>
    %c0_57 = arith.constant 0 : index
    %c0_58 = arith.constant 0 : index
    %c0_59 = arith.constant 0 : index
    %154 = vector.load %arg15[%c0_57, %c0_58, %c0_59] : memref<3x32x32xf32, #tpu.memory_space<vmem>>, vector<1x32x32xf32>
    %155 = vector.shape_cast %154 : vector<1x32x32xf32> to vector<32x32xf32>
    %cst_60 = arith.constant dense<0.000000e+00> : vector<8x32xf32>
    %156 = tpu.matmul %152, %155, %cst_60 {dimension_numbers = #tpu.dot_dimension_numbers<[1], [0], [0], [1], [0, 0, 1, 1], [], []>} : vector<8x32xf32>, vector<32x32xf32>, vector<8x32xf32> -> vector<8x32xf32>
    %c1_61 = arith.constant 1 : index
    %c0_62 = arith.constant 0 : index
    %c0_63 = arith.constant 0 : index
    %157 = vector.load %arg14[%c1_61, %c0_62, %c0_63] : memref<5x8x8xf32, #tpu.memory_space<vmem>>, vector<1x8x8xf32>
    %158 = vector.shape_cast %157 : vector<1x8x8xf32> to vector<8x8xf32>
    %cst_64 = arith.constant dense<0.000000e+00> : vector<8x32xf32>
    %159 = tpu.matmul %158, %156, %cst_64 {dimension_numbers = #tpu.dot_dimension_numbers<[1], [0], [0], [1], [0, 0, 1, 1], [], []>} : vector<8x8xf32>, vector<8x32xf32>, vector<8x32xf32> -> vector<8x32xf32>
    %c1_65 = arith.constant 1 : index
    %c0_66 = arith.constant 0 : index
    %c0_67 = arith.constant 0 : index
    %160 = vector.load %arg15[%c1_65, %c0_66, %c0_67] : memref<3x32x32xf32, #tpu.memory_space<vmem>>, vector<1x32x32xf32>
    %161 = vector.shape_cast %160 : vector<1x32x32xf32> to vector<32x32xf32>
    %cst_68 = arith.constant dense<0.000000e+00> : vector<8x32xf32>
    %162 = tpu.matmul %152, %161, %cst_68 {dimension_numbers = #tpu.dot_dimension_numbers<[1], [0], [0], [1], [0, 0, 1, 1], [], []>} : vector<8x32xf32>, vector<32x32xf32>, vector<8x32xf32> -> vector<8x32xf32>
    %c2_69 = arith.constant 2 : index
    %c0_70 = arith.constant 0 : index
    %c0_71 = arith.constant 0 : index
    %163 = vector.load %arg14[%c2_69, %c0_70, %c0_71] : memref<5x8x8xf32, #tpu.memory_space<vmem>>, vector<1x8x8xf32>
    %164 = vector.shape_cast %163 : vector<1x8x8xf32> to vector<8x8xf32>
    %cst_72 = arith.constant dense<0.000000e+00> : vector<8x32xf32>
    %165 = tpu.matmul %164, %162, %cst_72 {dimension_numbers = #tpu.dot_dimension_numbers<[1], [0], [0], [1], [0, 0, 1, 1], [], []>} : vector<8x8xf32>, vector<8x32xf32>, vector<8x32xf32> -> vector<8x32xf32>
    %166 = arith.addf %159, %165 : vector<8x32xf32>
    %c2_73 = arith.constant 2 : index
    %c0_74 = arith.constant 0 : index
    %c0_75 = arith.constant 0 : index
    %167 = vector.load %arg15[%c2_73, %c0_74, %c0_75] : memref<3x32x32xf32, #tpu.memory_space<vmem>>, vector<1x32x32xf32>
    %168 = vector.shape_cast %167 : vector<1x32x32xf32> to vector<32x32xf32>
    %cst_76 = arith.constant dense<0.000000e+00> : vector<8x32xf32>
    %169 = tpu.matmul %152, %168, %cst_76 {dimension_numbers = #tpu.dot_dimension_numbers<[1], [0], [0], [1], [0, 0, 1, 1], [], []>} : vector<8x32xf32>, vector<32x32xf32>, vector<8x32xf32> -> vector<8x32xf32>
    %c3 = arith.constant 3 : index
    %c0_77 = arith.constant 0 : index
    %c0_78 = arith.constant 0 : index
    %170 = vector.load %arg14[%c3, %c0_77, %c0_78] : memref<5x8x8xf32, #tpu.memory_space<vmem>>, vector<1x8x8xf32>
    %171 = vector.shape_cast %170 : vector<1x8x8xf32> to vector<8x8xf32>
    %cst_79 = arith.constant dense<0.000000e+00> : vector<8x32xf32>
    %172 = tpu.matmul %171, %169, %cst_79 {dimension_numbers = #tpu.dot_dimension_numbers<[1], [0], [0], [1], [0, 0, 1, 1], [], []>} : vector<8x8xf32>, vector<8x32xf32>, vector<8x32xf32> -> vector<8x32xf32>
    %173 = arith.addf %166, %172 : vector<8x32xf32>
    %174 = vector.broadcast %153 : f32 to vector<8x32xf32>
    %175 = arith.addf %173, %174 : vector<8x32xf32>
    %cst_80 = arith.constant 0.000000e+00 : f32
    %176 = vector.broadcast %cst_80 : f32 to vector<8x32xf32>
    %177 = arith.maximumf %175, %176 : vector<8x32xf32>
    %c3_81 = arith.constant 3 : index
    %178 = memref.load %arg17[%c3_81] : memref<4xf32, #tpu.memory_space<smem>>
    %c0_82 = arith.constant 0 : index
    %c0_83 = arith.constant 0 : index
    %c0_84 = arith.constant 0 : index
    %179 = vector.load %arg16[%c0_82, %c0_83, %c0_84] : memref<5x32x32xf32, #tpu.memory_space<vmem>>, vector<1x32x32xf32>
    %180 = vector.shape_cast %179 : vector<1x32x32xf32> to vector<32x32xf32>
    %cst_85 = arith.constant dense<0.000000e+00> : vector<8x32xf32>
    %181 = tpu.matmul %177, %180, %cst_85 {dimension_numbers = #tpu.dot_dimension_numbers<[1], [0], [0], [1], [0, 0, 1, 1], [], []>} : vector<8x32xf32>, vector<32x32xf32>, vector<8x32xf32> -> vector<8x32xf32>
    %c0_86 = arith.constant 0 : index
    %c0_87 = arith.constant 0 : index
    %c0_88 = arith.constant 0 : index
    %182 = vector.load %arg14[%c0_86, %c0_87, %c0_88] : memref<5x8x8xf32, #tpu.memory_space<vmem>>, vector<1x8x8xf32>
    %183 = vector.shape_cast %182 : vector<1x8x8xf32> to vector<8x8xf32>
    %cst_89 = arith.constant dense<0.000000e+00> : vector<8x32xf32>
    %184 = tpu.matmul %183, %181, %cst_89 {dimension_numbers = #tpu.dot_dimension_numbers<[1], [0], [0], [1], [0, 0, 1, 1], [], []>} : vector<8x8xf32>, vector<8x32xf32>, vector<8x32xf32> -> vector<8x32xf32>
    %c1_90 = arith.constant 1 : index
    %c0_91 = arith.constant 0 : index
    %c0_92 = arith.constant 0 : index
    %185 = vector.load %arg16[%c1_90, %c0_91, %c0_92] : memref<5x32x32xf32, #tpu.memory_space<vmem>>, vector<1x32x32xf32>
    %186 = vector.shape_cast %185 : vector<1x32x32xf32> to vector<32x32xf32>
    %cst_93 = arith.constant dense<0.000000e+00> : vector<8x32xf32>
    %187 = tpu.matmul %177, %186, %cst_93 {dimension_numbers = #tpu.dot_dimension_numbers<[1], [0], [0], [1], [0, 0, 1, 1], [], []>} : vector<8x32xf32>, vector<32x32xf32>, vector<8x32xf32> -> vector<8x32xf32>
    %c1_94 = arith.constant 1 : index
    %c0_95 = arith.constant 0 : index
    %c0_96 = arith.constant 0 : index
    %188 = vector.load %arg14[%c1_94, %c0_95, %c0_96] : memref<5x8x8xf32, #tpu.memory_space<vmem>>, vector<1x8x8xf32>
    %189 = vector.shape_cast %188 : vector<1x8x8xf32> to vector<8x8xf32>
    %cst_97 = arith.constant dense<0.000000e+00> : vector<8x32xf32>
    %190 = tpu.matmul %189, %187, %cst_97 {dimension_numbers = #tpu.dot_dimension_numbers<[1], [0], [0], [1], [0, 0, 1, 1], [], []>} : vector<8x8xf32>, vector<8x32xf32>, vector<8x32xf32> -> vector<8x32xf32>
    %191 = arith.addf %184, %190 : vector<8x32xf32>
    %c2_98 = arith.constant 2 : index
    %c0_99 = arith.constant 0 : index
    %c0_100 = arith.constant 0 : index
    %192 = vector.load %arg16[%c2_98, %c0_99, %c0_100] : memref<5x32x32xf32, #tpu.memory_space<vmem>>, vector<1x32x32xf32>
    %193 = vector.shape_cast %192 : vector<1x32x32xf32> to vector<32x32xf32>
    %cst_101 = arith.constant dense<0.000000e+00> : vector<8x32xf32>
    %194 = tpu.matmul %177, %193, %cst_101 {dimension_numbers = #tpu.dot_dimension_numbers<[1], [0], [0], [1], [0, 0, 1, 1], [], []>} : vector<8x32xf32>, vector<32x32xf32>, vector<8x32xf32> -> vector<8x32xf32>
    %c2_102 = arith.constant 2 : index
    %c0_103 = arith.constant 0 : index
    %c0_104 = arith.constant 0 : index
    %195 = vector.load %arg14[%c2_102, %c0_103, %c0_104] : memref<5x8x8xf32, #tpu.memory_space<vmem>>, vector<1x8x8xf32>
    %196 = vector.shape_cast %195 : vector<1x8x8xf32> to vector<8x8xf32>
    %cst_105 = arith.constant dense<0.000000e+00> : vector<8x32xf32>
    %197 = tpu.matmul %196, %194, %cst_105 {dimension_numbers = #tpu.dot_dimension_numbers<[1], [0], [0], [1], [0, 0, 1, 1], [], []>} : vector<8x8xf32>, vector<8x32xf32>, vector<8x32xf32> -> vector<8x32xf32>
    %198 = arith.addf %191, %197 : vector<8x32xf32>
    %c3_106 = arith.constant 3 : index
    %c0_107 = arith.constant 0 : index
    %c0_108 = arith.constant 0 : index
    %199 = vector.load %arg16[%c3_106, %c0_107, %c0_108] : memref<5x32x32xf32, #tpu.memory_space<vmem>>, vector<1x32x32xf32>
    %200 = vector.shape_cast %199 : vector<1x32x32xf32> to vector<32x32xf32>
    %cst_109 = arith.constant dense<0.000000e+00> : vector<8x32xf32>
    %201 = tpu.matmul %177, %200, %cst_109 {dimension_numbers = #tpu.dot_dimension_numbers<[1], [0], [0], [1], [0, 0, 1, 1], [], []>} : vector<8x32xf32>, vector<32x32xf32>, vector<8x32xf32> -> vector<8x32xf32>
    %c3_110 = arith.constant 3 : index
    %c0_111 = arith.constant 0 : index
    %c0_112 = arith.constant 0 : index
    %202 = vector.load %arg14[%c3_110, %c0_111, %c0_112] : memref<5x8x8xf32, #tpu.memory_space<vmem>>, vector<1x8x8xf32>
    %203 = vector.shape_cast %202 : vector<1x8x8xf32> to vector<8x8xf32>
    %cst_113 = arith.constant dense<0.000000e+00> : vector<8x32xf32>
    %204 = tpu.matmul %203, %201, %cst_113 {dimension_numbers = #tpu.dot_dimension_numbers<[1], [0], [0], [1], [0, 0, 1, 1], [], []>} : vector<8x8xf32>, vector<8x32xf32>, vector<8x32xf32> -> vector<8x32xf32>
    %205 = arith.addf %198, %204 : vector<8x32xf32>
    %c4 = arith.constant 4 : index
    %c0_114 = arith.constant 0 : index
    %c0_115 = arith.constant 0 : index
    %206 = vector.load %arg16[%c4, %c0_114, %c0_115] : memref<5x32x32xf32, #tpu.memory_space<vmem>>, vector<1x32x32xf32>
    %207 = vector.shape_cast %206 : vector<1x32x32xf32> to vector<32x32xf32>
    %cst_116 = arith.constant dense<0.000000e+00> : vector<8x32xf32>
    %208 = tpu.matmul %177, %207, %cst_116 {dimension_numbers = #tpu.dot_dimension_numbers<[1], [0], [0], [1], [0, 0, 1, 1], [], []>} : vector<8x32xf32>, vector<32x32xf32>, vector<8x32xf32> -> vector<8x32xf32>
    %c4_117 = arith.constant 4 : index
    %c0_118 = arith.constant 0 : index
    %c0_119 = arith.constant 0 : index
    %209 = vector.load %arg14[%c4_117, %c0_118, %c0_119] : memref<5x8x8xf32, #tpu.memory_space<vmem>>, vector<1x8x8xf32>
    %210 = vector.shape_cast %209 : vector<1x8x8xf32> to vector<8x8xf32>
    %cst_120 = arith.constant dense<0.000000e+00> : vector<8x32xf32>
    %211 = tpu.matmul %210, %208, %cst_120 {dimension_numbers = #tpu.dot_dimension_numbers<[1], [0], [0], [1], [0, 0, 1, 1], [], []>} : vector<8x8xf32>, vector<8x32xf32>, vector<8x32xf32> -> vector<8x32xf32>
    %212 = arith.addf %205, %211 : vector<8x32xf32>
    %213 = vector.broadcast %178 : f32 to vector<8x32xf32>
    %214 = arith.addf %212, %213 : vector<8x32xf32>
    %cst_121 = arith.constant 0.000000e+00 : f32
    %215 = vector.broadcast %cst_121 : f32 to vector<8x32xf32>
    %216 = arith.maximumf %214, %215 : vector<8x32xf32>
    %217 = arith.addf %144, %216 : vector<8x32xf32>
    %c0_122 = arith.constant 0 : index
    %c0_123 = arith.constant 0 : index
    %218 = vector.load %arg12[%c0_122, %c0_123] : memref<1x32xf32, #tpu.memory_space<vmem>>, vector<1x32xf32>
    %c0_124 = arith.constant 0 : index
    %c0_125 = arith.constant 0 : index
    %219 = vector.load %arg13[%c0_124, %c0_125] : memref<1x32xf32, #tpu.memory_space<vmem>>, vector<1x32xf32>
    %cst_126 = arith.constant dense<0.000000e+00> : vector<8xf32>
    %220 = vector.multi_reduction <add>, %217, %cst_126 [1] : vector<8x32xf32> to vector<8xf32>
    %221 = vector.shape_cast %220 : vector<8xf32> to vector<8x1xf32>
    %cst_127 = arith.constant 3.200000e+01 : f32
    %222 = vector.broadcast %cst_127 : f32 to vector<8x1xf32>
    %223 = arith.divf %221, %222 : vector<8x1xf32>
    %224 = vector.broadcast %223 : vector<8x1xf32> to vector<8x32xf32>
    %225 = arith.subf %217, %224 : vector<8x32xf32>
    %226 = arith.mulf %225, %225 : vector<8x32xf32>
    %cst_128 = arith.constant dense<0.000000e+00> : vector<8xf32>
    %227 = vector.multi_reduction <add>, %226, %cst_128 [1] : vector<8x32xf32> to vector<8xf32>
    %228 = vector.shape_cast %227 : vector<8xf32> to vector<8x1xf32>
    %cst_129 = arith.constant 3.200000e+01 : f32
    %229 = vector.broadcast %cst_129 : f32 to vector<8x1xf32>
    %230 = arith.divf %228, %229 : vector<8x1xf32>
    %cst_130 = arith.constant 9.99999974E-6 : f32
    %231 = vector.broadcast %cst_130 : f32 to vector<8x1xf32>
    %232 = arith.addf %230, %231 : vector<8x1xf32>
    %233 = math.rsqrt %232 : vector<8x1xf32>
    %234 = vector.broadcast %233 : vector<8x1xf32> to vector<8x32xf32>
    %235 = arith.mulf %225, %234 : vector<8x32xf32>
    %236 = vector.broadcast %218 : vector<1x32xf32> to vector<8x32xf32>
    %237 = arith.mulf %235, %236 : vector<8x32xf32>
    %238 = vector.broadcast %219 : vector<1x32xf32> to vector<8x32xf32>
    %239 = arith.addf %237, %238 : vector<8x32xf32>
    %c0_131 = arith.constant 0 : index
    %c0_132 = arith.constant 0 : index
    %c0_133 = arith.constant 0 : index
    %240 = vector.load %arg18[%c0_131, %c0_132, %c0_133] : memref<1x8x32xf32, #tpu.memory_space<vmem>>, vector<1x8x32xf32>
    %241 = vector.shape_cast %240 : vector<1x8x32xf32> to vector<8x32xf32>
    %242 = vector.shape_cast %239 : vector<8x32xf32> to vector<1x8x32xf32>
    tpu.vector_store %arg18[%c0_131, %c0_132, %c0_133], %242 {strides = array<i32>} : memref<1x8x32xf32, #tpu.memory_space<vmem>>, vector<1x8x32xf32>,
    return
  }
  func.func @transform_0(%arg0: i32) -> (i32, i32, i32) {
    %c0_i32 = arith.constant 0 : i32
    %c0_i32_0 = arith.constant 0 : i32
    %c0_i32_1 = arith.constant 0 : i32
    return %arg0, %c0_i32, %c0_i32_0 : i32, i32, i32
  }
  func.func @transform_1(%arg0: i32) -> (i32, i32) {
    %c0_i32 = arith.constant 0 : i32
    %c0_i32_0 = arith.constant 0 : i32
    %c0_i32_1 = arith.constant 0 : i32
    return %c0_i32, %c0_i32_0 : i32, i32
  }
  func.func @transform_2(%arg0: i32) -> (i32, i32) {
    %c0_i32 = arith.constant 0 : i32
    %c0_i32_0 = arith.constant 0 : i32
    %c0_i32_1 = arith.constant 0 : i32
    return %c0_i32, %c0_i32_0 : i32, i32
  }
  func.func @transform_3(%arg0: i32) -> (i32, i32) {
    %c0_i32 = arith.constant 0 : i32
    %c0_i32_0 = arith.constant 0 : i32
    %c0_i32_1 = arith.constant 0 : i32
    return %c0_i32, %c0_i32_0 : i32, i32
  }
  func.func @transform_4(%arg0: i32) -> (i32, i32) {
    %c0_i32 = arith.constant 0 : i32
    %c0_i32_0 = arith.constant 0 : i32
    %c0_i32_1 = arith.constant 0 : i32
    return %c0_i32, %c0_i32_0 : i32, i32
  }
  func.func @transform_5(%arg0: i32) -> (i32, i32) {
    %c0_i32 = arith.constant 0 : i32
    %c0_i32_0 = arith.constant 0 : i32
    %c0_i32_1 = arith.constant 0 : i32
    return %c0_i32, %c0_i32_0 : i32, i32
  }
  func.func @transform_6(%arg0: i32) -> (i32, i32) {
    %c0_i32 = arith.constant 0 : i32
    %c0_i32_0 = arith.constant 0 : i32
    %c0_i32_1 = arith.constant 0 : i32
    return %c0_i32, %c0_i32_0 : i32, i32
  }
  func.func @transform_7(%arg0: i32) -> (i32, i32) {
    %c0_i32 = arith.constant 0 : i32
    %c0_i32_0 = arith.constant 0 : i32
    %c0_i32_1 = arith.constant 0 : i32
    return %c0_i32, %c0_i32_0 : i32, i32
  }
  func.func @transform_8(%arg0: i32) -> (i32, i32) {
    %c0_i32 = arith.constant 0 : i32
    %c0_i32_0 = arith.constant 0 : i32
    %c0_i32_1 = arith.constant 0 : i32
    return %c0_i32, %c0_i32_0 : i32, i32
  }
  func.func @transform_9(%arg0: i32) -> (i32, i32) {
    %c0_i32 = arith.constant 0 : i32
    %c0_i32_0 = arith.constant 0 : i32
    %c0_i32_1 = arith.constant 0 : i32
    return %c0_i32, %c0_i32_0 : i32, i32
  }
  func.func @transform_10(%arg0: i32) -> (i32, i32) {
    %c0_i32 = arith.constant 0 : i32
    %c0_i32_0 = arith.constant 0 : i32
    %c0_i32_1 = arith.constant 0 : i32
    return %c0_i32, %c0_i32_0 : i32, i32
  }
  func.func @transform_11(%arg0: i32) -> (i32, i32) {
    %c0_i32 = arith.constant 0 : i32
    %c0_i32_0 = arith.constant 0 : i32
    %c0_i32_1 = arith.constant 0 : i32
    return %c0_i32, %c0_i32_0 : i32, i32
  }
  func.func @transform_12(%arg0: i32) -> (i32, i32) {
    %c0_i32 = arith.constant 0 : i32
    %c0_i32_0 = arith.constant 0 : i32
    %c0_i32_1 = arith.constant 0 : i32
    return %c0_i32, %c0_i32_0 : i32, i32
  }
  func.func @transform_13(%arg0: i32) -> (i32, i32, i32) {
    %c0_i32 = arith.constant 0 : i32
    %c0_i32_0 = arith.constant 0 : i32
    %c0_i32_1 = arith.constant 0 : i32
    %c0_i32_2 = arith.constant 0 : i32
    return %c0_i32, %c0_i32_0, %c0_i32_1 : i32, i32, i32
  }
  func.func @transform_14(%arg0: i32) -> (i32, i32, i32) {
    %c0_i32 = arith.constant 0 : i32
    %c0_i32_0 = arith.constant 0 : i32
    %c0_i32_1 = arith.constant 0 : i32
    %c0_i32_2 = arith.constant 0 : i32
    return %c0_i32, %c0_i32_0, %c0_i32_1 : i32, i32, i32
  }
  func.func @transform_15(%arg0: i32) -> (i32, i32, i32) {
    %c0_i32 = arith.constant 0 : i32
    %c0_i32_0 = arith.constant 0 : i32
    %c0_i32_1 = arith.constant 0 : i32
    %c0_i32_2 = arith.constant 0 : i32
    return %c0_i32, %c0_i32_0, %c0_i32_1 : i32, i32, i32
  }
  func.func @transform_16(%arg0: i32) -> i32 {
    %c0_i32 = arith.constant 0 : i32
    %c0_i32_0 = arith.constant 0 : i32
    return %c0_i32 : i32
  }
  func.func @transform_17(%arg0: i32) -> (i32, i32, i32) {
    %c0_i32 = arith.constant 0 : i32
    %c0_i32_0 = arith.constant 0 : i32
    %c0_i32_1 = arith.constant 0 : i32
    return %arg0, %c0_i32, %c0_i32_0 : i32, i32, i32
  }
}

</mosaic_0001>

<llo_original>
// kernel: tpu_custom_call.1
$region0: #{tpu_custom_call.1}
  #allocation0 [shape = 'u32[]', space=smem, size = 0x4, offset = 0x4, fixed_abs, tag = 'smem constant byte address 0x4 - core index']
  #allocation1 [shape = 'u32[144,128]{1,0:T(1,128)}', space=vmem, size = 0x12000, scoped, tag = 'internal scratch']
  %s0 = inlined_call_operand.hbm [shape: f32[2,8,32], index: 0, kind: input, shape index: {}]
  %s1 = inlined_call_operand.vmem [shape: f32[32,96], index: 1, kind: input, shape index: {}]
  %s2 = inlined_call_operand.hbm [shape: f32[1,96], index: 2, kind: input, shape index: {}]
  %s3 = inlined_call_operand.hbm [shape: f32[32,32], index: 3, kind: input, shape index: {}]
  %s4 = inlined_call_operand.hbm [shape: f32[1,32], index: 4, kind: input, shape index: {}]
  %s5 = inlined_call_operand.vmem [shape: f32[24,8], index: 5, kind: input, shape index: {}]
  %s6 = inlined_call_operand.vmem [shape: f32[24,1], index: 6, kind: input, shape index: {}]
  %s7 = inlined_call_operand.vmem [shape: f32[8,8], index: 7, kind: input, shape index: {}]
  %s8 = inlined_call_operand.vmem [shape: f32[8,1], index: 8, kind: input, shape index: {}]
  %s9 = inlined_call_operand.vmem [shape: f32[1,32], index: 9, kind: input, shape index: {}]
  %s10 = inlined_call_operand.vmem [shape: f32[1,32], index: 10, kind: input, shape index: {}]
  %s11 = inlined_call_operand.vmem [shape: f32[1,32], index: 11, kind: input, shape index: {}]
  %s12 = inlined_call_operand.vmem [shape: f32[1,32], index: 12, kind: input, shape index: {}]
  %s13 = inlined_call_operand.vmem [shape: f32[5,8,8], index: 13, kind: input, shape index: {}]
  %s14 = inlined_call_operand.hbm [shape: f32[3,32,32], index: 14, kind: input, shape index: {}]
  %s15 = inlined_call_operand.hbm [shape: f32[5,32,32], index: 15, kind: input, shape index: {}]
  %s16 = inlined_call_operand.vmem [shape: f32[4], index: 16, kind: input, shape index: {}]
  %s17 = inlined_call_operand.hbm [shape: f32[2,8,32], index: 17, kind: output, shape index: {}]
  %s18 = sld [smem:[#allocation0]]
  $region129: #{tpu_custom_call.1} parent=0
    _
  %s20 = ssub.s32 1, %s18
  %s21 = scalar_select 0, %s20, %s18
  $region1: #{tpu_custom_call.1} parent=0
    #allocation2 [shape = 'u8[8192]{0}', space=vmem, size = 0x2000, scoped, tag = 'input window, operand 0']
    #allocation3 [shape = 's32[2]{0}', space=sflag, size = 0x8, scoped, tag = 'scoped memory for tpu_custom_call.1']
    #allocation4 [shape = 's32[2]{0}', space=sflag, size = 0x8, scoped, tag = 'scoped memory for tpu_custom_call.1']
    #allocation5 [shape = 's32[2]{0}', space=sflag, size = 0x8, scoped, tag = 'scoped memory for tpu_custom_call.1']
    #allocation6 [shape = 'u8[512]{0}', space=vmem, size = 0x400, scoped, tag = 'input window, operand 2, single buffered']
    #allocation7 [shape = 's32[1]{0}', space=sflag, size = 0x4, scoped, tag = 'scoped memory for tpu_custom_call.1']
    #allocation8 [shape = 'u8[16384]{0}', space=vmem, size = 0x4000, scoped, tag = 'input window, operand 3, single buffered']
    #allocation9 [shape = 'u8[512]{0}', space=vmem, size = 0x400, scoped, tag = 'input window, operand 4, single buffered']
    #allocation10 [shape = 's32[1]{0}', space=sflag, size = 0x4, scoped, tag = 'scoped memory for tpu_custom_call.1']
    #allocation11 [shape = 'u8[49152]{0}', space=vmem, size = 0xc000, scoped, tag = 'input window, operand 14, single buffered']
    #allocation12 [shape = 'u8[81920]{0}', space=vmem, size = 0x14000, scoped, tag = 'input window, operand 15, single buffered']
    #allocation13 [shape = 's32[1]{0}', space=sflag, size = 0x4, scoped, tag = 'scoped memory for tpu_custom_call.1']
    #allocation14 [shape = 'u8[512]{0}', space=smem, size = 0x200, scoped, tag = 'input window, operand 16, single buffered']
    #allocation15 [shape = 'u8[8192]{0}', space=vmem, size = 0x2000, scoped, tag = 'output window, operand 0']
    %22 = vsyncpa [#allocation3], 0
    %s23 = scalar_lea.sflag [#allocation3], 1
    %24 = vsyncpa %s23, 0
    %25 = vsyncpa [#allocation7], 0
    %26 = vsyncpa [#allocation10], 0
    %27 = vsyncpa [#allocation13], 0
    %28 = vsyncpa [#allocation5], 0
    %29 = vsyncpa [#allocation4], 0
    %s30 = scalar_lea.sflag [#allocation4], 1
    %31 = vsyncpa %s30, 0
    loop: start=0, step=1, limit=4
    $region2: #{tpu_custom_call.1} parent=1 // loop_pre_header
      _
    $region3: #{tpu_custom_call.1} parent=1 // loop_header
      %s33 = sphi 0, %s37
      %p34 = scmp.ge.s32.totalorder %s33, 4
      %s43 = sphi 0, %s45
      %s46 = sphi 0, %s43
      %s47 = sphi 0, %s46
      %s63 = sphi 0, %s47
      %s67 = sphi 0, %s67
      %s69 = sphi 0, %s67
      %s70 = sphi 0, %s69
      %s84 = sphi 0, %s70
      %s88 = sphi 0, %s88
      %s90 = sphi 0, %s88
      %s91 = sphi 0, %s90
      %s105 = sphi 0, %s91
      %s109 = sphi 0, %s109
      %s111 = sphi 0, %s109
      %s112 = sphi 0, %s111
      %s126 = sphi 0, %s112
      %s130 = sphi 0, %s130
      %s132 = sphi 0, %s130
      %s133 = sphi 0, %s132
      %s147 = sphi 0, %s133
      %s151 = sphi 0, %s151
      %s153 = sphi 0, %s151
      %s154 = sphi 0, %s153
      %s168 = sphi 0, %s154
      %s172 = sphi 0, %s172
      %s174 = sphi 0, %s172
      %s175 = sphi 0, %s174
      %s189 = sphi 0, %s175
      %s193 = sphi 0, %s193
      %s195 = sphi 0, %s193
      %s196 = sphi 0, %s195
      %s210 = sphi 0, %s196
      %s214 = sphi 0, %s214
      %s216 = sphi 0, %s214
      %s217 = sphi 0, %s216
      %s231 = sphi 0, %s217
      %s235 = sphi 0, %s235
      %s237 = sphi 0, %s235
      %s238 = sphi 0, %s237
      %s252 = sphi 0, %s238
      %s256 = sphi 0, %s256
      %s258 = sphi 0, %s256
      %s259 = sphi 0, %s258
      %s273 = sphi 0, %s259
      %s277 = sphi 0, %s277
      %s279 = sphi 0, %s277
      %s280 = sphi 0, %s279
      %s294 = sphi 0, %s280
      %s298 = sphi 0, %s298
      %s300 = sphi 0, %s298
      %s301 = sphi 0, %s300
      %s315 = sphi 0, %s301
      %s319 = sphi 0, %s319
      %s321 = sphi 0, %s319
      %s322 = sphi 0, %s321
      %s336 = sphi 0, %s322
      %s340 = sphi 0, %s340
      %s342 = sphi 0, %s340
      %s343 = sphi 0, %s342
      %s357 = sphi 0, %s343
      %s361 = sphi 0, %s361
      %s363 = sphi 0, %s361
      %s364 = sphi 0, %s363
      %s378 = sphi 0, %s364
      %s382 = sphi 0, %s382
      %s384 = sphi 0, %s382
      %s385 = sphi 0, %s384
      %s399 = sphi 0, %s385
      %s405 = sphi 0, %s407
      %s408 = sphi 0, %s405
      %s409 = sphi 0, %s408
      %s425 = sphi 0, %s409
    $region4: #{tpu_custom_call.1} parent=1 // loop_header_branch
      %36 = sbr.rel (%p34) target = $region8
    $region5: #{tpu_custom_call.1} parent=1 // loop_body
      %s38 = ssub.s32 %s33, 1
      %s39 = ssub.s32 %s33, 2
      %s40 = sadd.s32 %s33, 1
      %s41 = ssub.s32 %s33, %s40
      %p42 = scmp.eq.s32.totalorder %s41, 0
      %s44 = sadd.s32 %s43, 1
      %s45 = scalar_select %p42, %s43, %s44
      %p48 = pneg %p42
      %p49 = scmp.eq.s32.totalorder %s33, 1
      %p50 = por %p48, %p49
      %p51 = scmp.ne.s32.totalorder %s43, %s46
      %p52 = scmp.eq.s32.totalorder %s33, 0
      %p53 = por %p51, %p52
      %p54 = scmp.ne.s32.totalorder %s43, %s46
      %p55 = scmp.eq.s32.totalorder %s38, 1
      %p56 = por %p54, %p55
      %p57 = scmp.ne.s32.totalorder %s46, %s47
      %p58 = scmp.eq.s32.totalorder %s38, 0
      %p59 = por %p57, %p58
      %p60 = scmp.ne.s32.totalorder %s46, %s47
      %p61 = scmp.eq.s32.totalorder %s39, 1
      %p62 = por %p60, %p61
      %p64 = scmp.ne.s32.totalorder %s47, %s63
      %p65 = scmp.eq.s32.totalorder %s39, 0
      %p66 = por %p64, %p65
      %s68 = sadd.s32 %s67, 1
      %p71 = scmp.eq.s32.totalorder %s33, 1
      %p72 = scmp.ne.s32.totalorder %s67, %s69
      %p73 = scmp.eq.s32.totalorder %s33, 0
      %p74 = por %p72, %p73
      %p75 = scmp.ne.s32.totalorder %s67, %s69
      %p76 = scmp.eq.s32.totalorder %s38, 1
      %p77 = por %p75, %p76
      %p78 = scmp.ne.s32.totalorder %s69, %s70
      %p79 = scmp.eq.s32.totalorder %s38, 0
      %p80 = por %p78, %p79
      %p81 = scmp.ne.s32.totalorder %s69, %s70
      %p82 = scmp.eq.s32.totalorder %s39, 1
      %p83 = por %p81, %p82
      %p85 = scmp.ne.s32.totalorder %s70, %s84
      %p86 = scmp.eq.s32.totalorder %s39, 0
      %p87 = por %p85, %p86
      %s89 = sadd.s32 %s88, 1
      %p92 = scmp.eq.s32.totalorder %s33, 1
      %p93 = scmp.ne.s32.totalorder %s88, %s90
      %p94 = scmp.eq.s32.totalorder %s33, 0
      %p95 = por %p93, %p94
      %p96 = scmp.ne.s32.totalorder %s88, %s90
      %p97 = scmp.eq.s32.totalorder %s38, 1
      %p98 = por %p96, %p97
      %p99 = scmp.ne.s32.totalorder %s90, %s91
      %p100 = scmp.eq.s32.totalorder %s38, 0
      %p101 = por %p99, %p100
      %p102 = scmp.ne.s32.totalorder %s90, %s91
      %p103 = scmp.eq.s32.totalorder %s39, 1
      %p104 = por %p102, %p103
      %p106 = scmp.ne.s32.totalorder %s91, %s105
      %p107 = scmp.eq.s32.totalorder %s39, 0
      %p108 = por %p106, %p107
      %s110 = sadd.s32 %s109, 1
      %p113 = scmp.eq.s32.totalorder %s33, 1
      %p114 = scmp.ne.s32.totalorder %s109, %s111
      %p115 = scmp.eq.s32.totalorder %s33, 0
      %p116 = por %p114, %p115
      %p117 = scmp.ne.s32.totalorder %s109, %s111
      %p118 = scmp.eq.s32.totalorder %s38, 1
      %p119 = por %p117, %p118
      %p120 = scmp.ne.s32.totalorder %s111, %s112
      %p121 = scmp.eq.s32.totalorder %s38, 0
      %p122 = por %p120, %p121
      %p123 = scmp.ne.s32.totalorder %s111, %s112
      %p124 = scmp.eq.s32.totalorder %s39, 1
      %p125 = por %p123, %p124
      %p127 = scmp.ne.s32.totalorder %s112, %s126
      %p128 = scmp.eq.s32.totalorder %s39, 0
      %p129 = por %p127, %p128
      %s131 = sadd.s32 %s130, 1
      %p134 = scmp.eq.s32.totalorder %s33, 1
      %p135 = scmp.ne.s32.totalorder %s130, %s132
      %p136 = scmp.eq.s32.totalorder %s33, 0
      %p137 = por %p135, %p136
      %p138 = scmp.ne.s32.totalorder %s130, %s132
      %p139 = scmp.eq.s32.totalorder %s38, 1
      %p140 = por %p138, %p139
      %p141 = scmp.ne.s32.totalorder %s132, %s133
      %p142 = scmp.eq.s32.totalorder %s38, 0
      %p143 = por %p141, %p142
      %p144 = scmp.ne.s32.totalorder %s132, %s133
      %p145 = scmp.eq.s32.totalorder %s39, 1
      %p146 = por %p144, %p145
      %p148 = scmp.ne.s32.totalorder %s133, %s147
      %p149 = scmp.eq.s32.totalorder %s39, 0
      %p150 = por %p148, %p149
      %s152 = sadd.s32 %s151, 1
      %p155 = scmp.eq.s32.totalorder %s33, 1
      %p156 = scmp.ne.s32.totalorder %s151, %s153
      %p157 = scmp.eq.s32.totalorder %s33, 0
      %p158 = por %p156, %p157
      %p159 = scmp.ne.s32.totalorder %s151, %s153
      %p160 = scmp.eq.s32.totalorder %s38, 1
      %p161 = por %p159, %p160
      %p162 = scmp.ne.s32.totalorder %s153, %s154
      %p163 = scmp.eq.s32.totalorder %s38, 0
      %p164 = por %p162, %p163
      %p165 = scmp.ne.s32.totalorder %s153, %s154
      %p166 = scmp.eq.s32.totalorder %s39, 1
      %p167 = por %p165, %p166
      %p169 = scmp.ne.s32.totalorder %s154, %s168
      %p170 = scmp.eq.s32.totalorder %s39, 0
      %p171 = por %p169, %p170
      %s173 = sadd.s32 %s172, 1
      %p176 = scmp.eq.s32.totalorder %s33, 1
      %p177 = scmp.ne.s32.totalorder %s172, %s174
      %p178 = scmp.eq.s32.totalorder %s33, 0
      %p179 = por %p177, %p178
      %p180 = scmp.ne.s32.totalorder %s172, %s174
      %p181 = scmp.eq.s32.totalorder %s38, 1
      %p182 = por %p180, %p181
      %p183 = scmp.ne.s32.totalorder %s174, %s175
      %p184 = scmp.eq.s32.totalorder %s38, 0
      %p185 = por %p183, %p184
      %p186 = scmp.ne.s32.totalorder %s174, %s175
      %p187 = scmp.eq.s32.totalorder %s39, 1
      %p188 = por %p186, %p187
      %p190 = scmp.ne.s32.totalorder %s175, %s189
      %p191 = scmp.eq.s32.totalorder %s39, 0
      %p192 = por %p190, %p191
      %s194 = sadd.s32 %s193, 1
      %p197 = scmp.eq.s32.totalorder %s33, 1
      %p198 = scmp.ne.s32.totalorder %s193, %s195
      %p199 = scmp.eq.s32.totalorder %s33, 0
      %p200 = por %p198, %p199
      %p201 = scmp.ne.s32.totalorder %s193, %s195
      %p202 = scmp.eq.s32.totalorder %s38, 1
      %p203 = por %p201, %p202
      %p204 = scmp.ne.s32.totalorder %s195, %s196
      %p205 = scmp.eq.s32.totalorder %s38, 0
      %p206 = por %p204, %p205
      %p207 = scmp.ne.s32.totalorder %s195, %s196
      %p208 = scmp.eq.s32.totalorder %s39, 1
      %p209 = por %p207, %p208
      %p211 = scmp.ne.s32.totalorder %s196, %s210
      %p212 = scmp.eq.s32.totalorder %s39, 0
      %p213 = por %p211, %p212
      %s215 = sadd.s32 %s214, 1
      %p218 = scmp.eq.s32.totalorder %s33, 1
      %p219 = scmp.ne.s32.totalorder %s214, %s216
      %p220 = scmp.eq.s32.totalorder %s33, 0
      %p221 = por %p219, %p220
      %p222 = scmp.ne.s32.totalorder %s214, %s216
      %p223 = scmp.eq.s32.totalorder %s38, 1
      %p224 = por %p222, %p223
      %p225 = scmp.ne.s32.totalorder %s216, %s217
      %p226 = scmp.eq.s32.totalorder %s38, 0
      %p227 = por %p225, %p226
      %p228 = scmp.ne.s32.totalorder %s216, %s217
      %p229 = scmp.eq.s32.totalorder %s39, 1
      %p230 = por %p228, %p229
      %p232 = scmp.ne.s32.totalorder %s217, %s231
      %p233 = scmp.eq.s32.totalorder %s39, 0
      %p234 = por %p232, %p233
      %s236 = sadd.s32 %s235, 1
      %p239 = scmp.eq.s32.totalorder %s33, 1
      %p240 = scmp.ne.s32.totalorder %s235, %s237
      %p241 = scmp.eq.s32.totalorder %s33, 0
      %p242 = por %p240, %p241
      %p243 = scmp.ne.s32.totalorder %s235, %s237
      %p244 = scmp.eq.s32.totalorder %s38, 1
      %p245 = por %p243, %p244
      %p246 = scmp.ne.s32.totalorder %s237, %s238
      %p247 = scmp.eq.s32.totalorder %s38, 0
      %p248 = por %p246, %p247
      %p249 = scmp.ne.s32.totalorder %s237, %s238
      %p250 = scmp.eq.s32.totalorder %s39, 1
      %p251 = por %p249, %p250
      %p253 = scmp.ne.s32.totalorder %s238, %s252
      %p254 = scmp.eq.s32.totalorder %s39, 0
      %p255 = por %p253, %p254
      %s257 = sadd.s32 %s256, 1
      %p260 = scmp.eq.s32.totalorder %s33, 1
      %p261 = scmp.ne.s32.totalorder %s256, %s258
      %p262 = scmp.eq.s32.totalorder %s33, 0
      %p263 = por %p261, %p262
      %p264 = scmp.ne.s32.totalorder %s256, %s258
      %p265 = scmp.eq.s32.totalorder %s38, 1
      %p266 = por %p264, %p265
      %p267 = scmp.ne.s32.totalorder %s258, %s259
      %p268 = scmp.eq.s32.totalorder %s38, 0
      %p269 = por %p267, %p268
      %p270 = scmp.ne.s32.totalorder %s258, %s259
      %p271 = scmp.eq.s32.totalorder %s39, 1
      %p272 = por %p270, %p271
      %p274 = scmp.ne.s32.totalorder %s259, %s273
      %p275 = scmp.eq.s32.totalorder %s39, 0
      %p276 = por %p274, %p275
      %s278 = sadd.s32 %s277, 1
      %p281 = scmp.eq.s32.totalorder %s33, 1
      %p282 = scmp.ne.s32.totalorder %s277, %s279
      %p283 = scmp.eq.s32.totalorder %s33, 0
      %p284 = por %p282, %p283
      %p285 = scmp.ne.s32.totalorder %s277, %s279
      %p286 = scmp.eq.s32.totalorder %s38, 1
      %p287 = por %p285, %p286
      %p288 = scmp.ne.s32.totalorder %s279, %s280
      %p289 = scmp.eq.s32.totalorder %s38, 0
      %p290 = por %p288, %p289
      %p291 = scmp.ne.s32.totalorder %s279, %s280
      %p292 = scmp.eq.s32.totalorder %s39, 1
      %p293 = por %p291, %p292
      %p295 = scmp.ne.s32.totalorder %s280, %s294
      %p296 = scmp.eq.s32.totalorder %s39, 0
      %p297 = por %p295, %p296
      %s299 = sadd.s32 %s298, 1
      %p302 = scmp.eq.s32.totalorder %s33, 1
      %p303 = scmp.ne.s32.totalorder %s298, %s300
      %p304 = scmp.eq.s32.totalorder %s33, 0
      %p305 = por %p303, %p304
      %p306 = scmp.ne.s32.totalorder %s298, %s300
      %p307 = scmp.eq.s32.totalorder %s38, 1
      %p308 = por %p306, %p307
      %p309 = scmp.ne.s32.totalorder %s300, %s301
      %p310 = scmp.eq.s32.totalorder %s38, 0
      %p311 = por %p309, %p310
      %p312 = scmp.ne.s32.totalorder %s300, %s301
      %p313 = scmp.eq.s32.totalorder %s39, 1
      %p314 = por %p312, %p313
      %p316 = scmp.ne.s32.totalorder %s301, %s315
      %p317 = scmp.eq.s32.totalorder %s39, 0
      %p318 = por %p316, %p317
      %s320 = sadd.s32 %s319, 1
      %p323 = scmp.eq.s32.totalorder %s33, 1
      %p324 = scmp.ne.s32.totalorder %s319, %s321
      %p325 = scmp.eq.s32.totalorder %s33, 0
      %p326 = por %p324, %p325
      %p327 = scmp.ne.s32.totalorder %s319, %s321
      %p328 = scmp.eq.s32.totalorder %s38, 1
      %p329 = por %p327, %p328
      %p330 = scmp.ne.s32.totalorder %s321, %s322
      %p331 = scmp.eq.s32.totalorder %s38, 0
      %p332 = por %p330, %p331
      %p333 = scmp.ne.s32.totalorder %s321, %s322
      %p334 = scmp.eq.s32.totalorder %s39, 1
      %p335 = por %p333, %p334
      %p337 = scmp.ne.s32.totalorder %s322, %s336
      %p338 = scmp.eq.s32.totalorder %s39, 0
      %p339 = por %p337, %p338
      %s341 = sadd.s32 %s340, 1
      %p344 = scmp.eq.s32.totalorder %s33, 1
      %p345 = scmp.ne.s32.totalorder %s340, %s342
      %p346 = scmp.eq.s32.totalorder %s33, 0
      %p347 = por %p345, %p346
      %p348 = scmp.ne.s32.totalorder %s340, %s342
      %p349 = scmp.eq.s32.totalorder %s38, 1
      %p350 = por %p348, %p349
      %p351 = scmp.ne.s32.totalorder %s342, %s343
      %p352 = scmp.eq.s32.totalorder %s38, 0
      %p353 = por %p351, %p352
      %p354 = scmp.ne.s32.totalorder %s342, %s343
      %p355 = scmp.eq.s32.totalorder %s39, 1
      %p356 = por %p354, %p355
      %p358 = scmp.ne.s32.totalorder %s343, %s357
      %p359 = scmp.eq.s32.totalorder %s39, 0
      %p360 = por %p358, %p359
      %s362 = sadd.s32 %s361, 1
      %p365 = scmp.eq.s32.totalorder %s33, 1
      %p366 = scmp.ne.s32.totalorder %s361, %s363
      %p367 = scmp.eq.s32.totalorder %s33, 0
      %p368 = por %p366, %p367
      %p369 = scmp.ne.s32.totalorder %s361, %s363
      %p370 = scmp.eq.s32.totalorder %s38, 1
      %p371 = por %p369, %p370
      %p372 = scmp.ne.s32.totalorder %s363, %s364
      %p373 = scmp.eq.s32.totalorder %s38, 0
      %p374 = por %p372, %p373
      %p375 = scmp.ne.s32.totalorder %s363, %s364
      %p376 = scmp.eq.s32.totalorder %s39, 1
      %p377 = por %p375, %p376
      %p379 = scmp.ne.s32.totalorder %s364, %s378
      %p380 = scmp.eq.s32.totalorder %s39, 0
      %p381 = por %p379, %p380
      %s383 = sadd.s32 %s382, 1
      %p386 = scmp.eq.s32.totalorder %s33, 1
      %p387 = scmp.ne.s32.totalorder %s382, %s384
      %p388 = scmp.eq.s32.totalorder %s33, 0
      %p389 = por %p387, %p388
      %p390 = scmp.ne.s32.totalorder %s382, %s384
      %p391 = scmp.eq.s32.totalorder %s38, 1
      %p392 = por %p390, %p391
      %p393 = scmp.ne.s32.totalorder %s384, %s385
      %p394 = scmp.eq.s32.totalorder %s38, 0
      %p395 = por %p393, %p394
      %p396 = scmp.ne.s32.totalorder %s384, %s385
      %p397 = scmp.eq.s32.totalorder %s39, 1
      %p398 = por %p396, %p397
      %p400 = scmp.ne.s32.totalorder %s385, %s399
      %p401 = scmp.eq.s32.totalorder %s39, 0
      %p402 = por %p400, %p401
      %s403 = ssub.s32 %s33, %s40
      %p404 = scmp.eq.s32.totalorder %s403, 0
      %s406 = sadd.s32 %s405, 1
      %s407 = scalar_select %p404, %s405, %s406
      %p410 = pneg %p404
      %p411 = scmp.eq.s32.totalorder %s33, 1
      %p412 = por %p410, %p411
      %p413 = scmp.ne.s32.totalorder %s405, %s408
      %p414 = scmp.eq.s32.totalorder %s33, 0
      %p415 = por %p413, %p414
      %p416 = scmp.ne.s32.totalorder %s405, %s408
      %p417 = scmp.eq.s32.totalorder %s38, 1
      %p418 = por %p416, %p417
      %p419 = scmp.ne.s32.totalorder %s408, %s409
      %p420 = scmp.eq.s32.totalorder %s38, 0
      %p421 = por %p419, %p420
      %p422 = scmp.ne.s32.totalorder %s408, %s409
      %p423 = scmp.eq.s32.totalorder %s39, 1
      %p424 = por %p422, %p423
      %p426 = scmp.ne.s32.totalorder %s409, %s425
      %p427 = scmp.eq.s32.totalorder %s39, 0
      %p428 = por %p426, %p427
      %p429 = scmp.le.s32.totalorder 1, %s33
      %p430 = scmp.lt.s32.totalorder %s33, 3
      %p431 = pnand %p429, %p430
      %p432 = pneg %p431
      // Predicated region
      $region9: #{tpu_custom_call.1} parent=5 // pred_check
        _
      $region10: #{tpu_custom_call.1} parent=5 // pred_check_branch
        %434 = sbr.rel (%p431) target = $region12
      $region11: #{tpu_custom_call.1} parent=5 // pred_region
        %s435 = ssub.s32 %s33, 1
        // Predicated region
        $region13: #{tpu_custom_call.1} parent=11 // pred_check
          %p436 = pneg %p80
        $region14: #{tpu_custom_call.1} parent=11 // pred_check_branch
          %438 = sbr.rel (%p436) target = $region16
        $region15: #{tpu_custom_call.1} parent=11 // pred_region
          _
        $region16: #{tpu_custom_call.1} parent=11 // pred_fallthru
          _
        // Predicated region
        $region17: #{tpu_custom_call.1} parent=11 // pred_check
          %p439 = pneg %p101
        $region18: #{tpu_custom_call.1} parent=11 // pred_check_branch
          %441 = sbr.rel (%p439) target = $region20
        $region19: #{tpu_custom_call.1} parent=11 // pred_region
          %s443 = ssub.s32 16, 16
          %444 = vsyncadd [#allocation7], %s443
          %s446 = sshll.u32 [#allocation6], 4
          %s447 = int_to_ptr.vmem [resolvable:$true] %s446
          %449 = dma.hbm_to_vmem [thread:$0]  %s2, 16, %s447, [#allocation7]
        $region20: #{tpu_custom_call.1} parent=11 // pred_fallthru
          _
        // Predicated region
        $region21: #{tpu_custom_call.1} parent=11 // pred_check
          %p450 = pneg %p122
        $region22: #{tpu_custom_call.1} parent=11 // pred_check_branch
          %452 = sbr.rel (%p450) target = $region24
        $region23: #{tpu_custom_call.1} parent=11 // pred_region
          %s454 = ssub.s32 512, 512
          %455 = vsyncadd [#allocation7], %s454
          %s456 = sshll.u32 [#allocation8], 4
          %s457 = int_to_ptr.vmem [resolvable:$true] %s456
          %462 = dma.hbm_to_vmem [thread:$0]  %s3, 512, %s457, [#allocation7], 128, 128, 8
        $region24: #{tpu_custom_call.1} parent=11 // pred_fallthru
          _
        // Predicated region
        $region25: #{tpu_custom_call.1} parent=11 // pred_check
          %p463 = pneg %p143
        $region26: #{tpu_custom_call.1} parent=11 // pred_check_branch
          %465 = sbr.rel (%p463) target = $region28
        $region27: #{tpu_custom_call.1} parent=11 // pred_region
          %s467 = ssub.s32 16, 16
          %468 = vsyncadd [#allocation10], %s467
          %s470 = sshll.u32 [#allocation9], 4
          %s471 = int_to_ptr.vmem [resolvable:$true] %s470
          %473 = dma.hbm_to_vmem [thread:$0]  %s4, 16, %s471, [#allocation10]
        $region28: #{tpu_custom_call.1} parent=11 // pred_fallthru
          _
        // Predicated region
        $region29: #{tpu_custom_call.1} parent=11 // pred_check
          %p474 = pneg %p164
        $region30: #{tpu_custom_call.1} parent=11 // pred_check_branch
          %476 = sbr.rel (%p474) target = $region32
        $region31: #{tpu_custom_call.1} parent=11 // pred_region
          _
        $region32: #{tpu_custom_call.1} parent=11 // pred_fallthru
          _
        // Predicated region
        $region33: #{tpu_custom_call.1} parent=11 // pred_check
          %p477 = pneg %p185
        $region34: #{tpu_custom_call.1} parent=11 // pred_check_branch
          %479 = sbr.rel (%p477) target = $region36
        $region35: #{tpu_custom_call.1} parent=11 // pred_region
          _
        $region36: #{tpu_custom_call.1} parent=11 // pred_fallthru
          _
        // Predicated region
        $region37: #{tpu_custom_call.1} parent=11 // pred_check
          %p480 = pneg %p206
        $region38: #{tpu_custom_call.1} parent=11 // pred_check_branch
          %482 = sbr.rel (%p480) target = $region40
        $region39: #{tpu_custom_call.1} parent=11 // pred_region
          _
        $region40: #{tpu_custom_call.1} parent=11 // pred_fallthru
          _
        // Predicated region
        $region41: #{tpu_custom_call.1} parent=11 // pred_check
          %p483 = pneg %p227
        $region42: #{tpu_custom_call.1} parent=11 // pred_check_branch
          %485 = sbr.rel (%p483) target = $region44
        $region43: #{tpu_custom_call.1} parent=11 // pred_region
          _
        $region44: #{tpu_custom_call.1} parent=11 // pred_fallthru
          _
        // Predicated region
        $region45: #{tpu_custom_call.1} parent=11 // pred_check
          %p486 = pneg %p248
        $region46: #{tpu_custom_call.1} parent=11 // pred_check_branch
          %488 = sbr.rel (%p486) target = $region48
        $region47: #{tpu_custom_call.1} parent=11 // pred_region
          _
        $region48: #{tpu_custom_call.1} parent=11 // pred_fallthru
          _
        // Predicated region
        $region49: #{tpu_custom_call.1} parent=11 // pred_check
          %p489 = pneg %p269
        $region50: #{tpu_custom_call.1} parent=11 // pred_check_branch
          %491 = sbr.rel (%p489) target = $region52
        $region51: #{tpu_custom_call.1} parent=11 // pred_region
          _
        $region52: #{tpu_custom_call.1} parent=11 // pred_fallthru
          _
        // Predicated region
        $region53: #{tpu_custom_call.1} parent=11 // pred_check
          %p492 = pneg %p290
        $region54: #{tpu_custom_call.1} parent=11 // pred_check_branch
          %494 = sbr.rel (%p492) target = $region56
        $region55: #{tpu_custom_call.1} parent=11 // pred_region
          _
        $region56: #{tpu_custom_call.1} parent=11 // pred_fallthru
          _
        // Predicated region
        $region57: #{tpu_custom_call.1} parent=11 // pred_check
          %p495 = pneg %p311
        $region58: #{tpu_custom_call.1} parent=11 // pred_check_branch
          %497 = sbr.rel (%p495) target = $region60
        $region59: #{tpu_custom_call.1} parent=11 // pred_region
          _
        $region60: #{tpu_custom_call.1} parent=11 // pred_fallthru
          _
        // Predicated region
        $region61: #{tpu_custom_call.1} parent=11 // pred_check
          %p498 = pneg %p332
        $region62: #{tpu_custom_call.1} parent=11 // pred_check_branch
          %500 = sbr.rel (%p498) target = $region64
        $region63: #{tpu_custom_call.1} parent=11 // pred_region
          _
        $region64: #{tpu_custom_call.1} parent=11 // pred_fallthru
          _
        // Predicated region
        $region65: #{tpu_custom_call.1} parent=11 // pred_check
          %p501 = pneg %p353
        $region66: #{tpu_custom_call.1} parent=11 // pred_check_branch
          %503 = sbr.rel (%p501) target = $region68
        $region67: #{tpu_custom_call.1} parent=11 // pred_region
          %s505 = ssub.s32 1536, 1536
          %506 = vsyncadd [#allocation10], %s505
          %s507 = sshll.u32 [#allocation11], 4
          %s508 = int_to_ptr.vmem [resolvable:$true] %s507
          %513 = dma.hbm_to_vmem [thread:$0]  %s14, 1536, %s508, [#allocation10], 128, 128, 8
        $region68: #{tpu_custom_call.1} parent=11 // pred_fallthru
          _
        // Predicated region
        $region69: #{tpu_custom_call.1} parent=11 // pred_check
          %p514 = pneg %p374
        $region70: #{tpu_custom_call.1} parent=11 // pred_check_branch
          %516 = sbr.rel (%p514) target = $region72
        $region71: #{tpu_custom_call.1} parent=11 // pred_region
          %s518 = ssub.s32 2560, 2560
          %519 = vsyncadd [#allocation13], %s518
          %s520 = sshll.u32 [#allocation12], 4
          %s521 = int_to_ptr.vmem [resolvable:$true] %s520
          %526 = dma.hbm_to_vmem [thread:$0]  %s15, 2560, %s521, [#allocation13], 128, 128, 8
        $region72: #{tpu_custom_call.1} parent=11 // pred_fallthru
          _
        // Predicated region
        $region73: #{tpu_custom_call.1} parent=11 // pred_check
          %p527 = pneg %p395
        $region74: #{tpu_custom_call.1} parent=11 // pred_check_branch
          %529 = sbr.rel (%p527) target = $region76
        $region75: #{tpu_custom_call.1} parent=11 // pred_region
          %s531 = ssub.s32 16, 16
          %532 = vsyncadd [#allocation5], %s531
          %s534 = sshll.u32 %s16, 4
          %s535 = int_to_ptr.vmem [resolvable:$true] %s534
          %537 = dma.vmem_to_smem %s535, 16, [#allocation14], [#allocation5]
        $region76: #{tpu_custom_call.1} parent=11 // pred_fallthru
          _
      $region12: #{tpu_custom_call.1} parent=5 // pred_fallthru
        _
      %p538 = scmp.lt.s32.totalorder %s33, 2
      // Predicated region
      $region77: #{tpu_custom_call.1} parent=5 // pred_check
        %p539 = pneg %p538
      $region78: #{tpu_custom_call.1} parent=5 // pred_check_branch
        %541 = sbr.rel (%p539) target = $region80
      $region79: #{tpu_custom_call.1} parent=5 // pred_region
        // Predicated region
        $region81: #{tpu_custom_call.1} parent=79 // pred_check
          %p542 = pneg %p53
        $region82: #{tpu_custom_call.1} parent=79 // pred_check_branch
          %544 = sbr.rel (%p542) target = $region84
        $region83: #{tpu_custom_call.1} parent=79 // pred_region
          %s545 = sand.u32 %s43, 1
          %s546 = scalar_lea.sflag [#allocation3], %s545
          %s547 = sand.u32 %s43, 1
          %s548 = smul.addr %s547, 8
          %s549 = scalar_lea.vmem [#allocation2], %s548
          %s551 = ssub.s32 128, 128
          %552 = vsyncadd %s546, %s551
          %s553 = smul.addr %s33, 128
          %s554 = scalar_lea.hbm %s0, %s553
          %s556 = sshll.u32 %s549, 4
          %s557 = int_to_ptr.vmem [resolvable:$true] %s556
          %559 = dma.hbm_to_vmem [thread:$0]  %s554, 128, %s557, %s546
        $region84: #{tpu_custom_call.1} parent=79 // pred_fallthru
          _
      $region80: #{tpu_custom_call.1} parent=5 // pred_fallthru
        _
      %p560 = scmp.le.s32.totalorder 1, %s33
      %p561 = scmp.lt.s32.totalorder %s33, 3
      %p562 = pnand %p560, %p561
      %p563 = pneg %p562
      // Predicated region
      $region85: #{tpu_custom_call.1} parent=5 // pred_check
        _
      $region86: #{tpu_custom_call.1} parent=5 // pred_check_branch
        %565 = sbr.rel (%p562) target = $region88
      $region87: #{tpu_custom_call.1} parent=5 // pred_region
        %s566 = ssub.s32 %s33, 1
        %s567 = sand.u32 %s46, 1
        %s568 = scalar_lea.sflag [#allocation3], %s567
        %s569 = sand.u32 %s46, 1
        %s570 = smul.addr %s569, 8
        %s571 = scalar_lea.vmem [#allocation2], %s570
        // Predicated region
        $region89: #{tpu_custom_call.1} parent=87 // pred_check
          %p572 = pneg %p59
        $region90: #{tpu_custom_call.1} parent=87 // pred_check_branch
          %574 = sbr.rel (%p572) target = $region92
        $region91: #{tpu_custom_call.1} parent=87 // pred_region
          %575 = dma.done %s568, 128
        $region92: #{tpu_custom_call.1} parent=87 // pred_fallthru
          _
        // Predicated region
        $region93: #{tpu_custom_call.1} parent=87 // pred_check
          %p576 = pneg %p101
        $region94: #{tpu_custom_call.1} parent=87 // pred_check_branch
          %578 = sbr.rel (%p576) target = $region96
        $region95: #{tpu_custom_call.1} parent=87 // pred_region
          %579 = dma.done [#allocation7], 16
        $region96: #{tpu_custom_call.1} parent=87 // pred_fallthru
          _
        // Predicated region
        $region97: #{tpu_custom_call.1} parent=87 // pred_check
          %p580 = pneg %p122
        $region98: #{tpu_custom_call.1} parent=87 // pred_check_branch
          %582 = sbr.rel (%p580) target = $region100
        $region99: #{tpu_custom_call.1} parent=87 // pred_region
          %583 = dma.done [#allocation7], 512
        $region100: #{tpu_custom_call.1} parent=87 // pred_fallthru
          _
        // Predicated region
        $region101: #{tpu_custom_call.1} parent=87 // pred_check
          %p584 = pneg %p143
        $region102: #{tpu_custom_call.1} parent=87 // pred_check_branch
          %586 = sbr.rel (%p584) target = $region104
        $region103: #{tpu_custom_call.1} parent=87 // pred_region
          %587 = dma.done [#allocation10], 16
        $region104: #{tpu_custom_call.1} parent=87 // pred_fallthru
          _
        // Predicated region
        $region105: #{tpu_custom_call.1} parent=87 // pred_check
          %p588 = pneg %p353
        $region106: #{tpu_custom_call.1} parent=87 // pred_check_branch
          %590 = sbr.rel (%p588) target = $region108
        $region107: #{tpu_custom_call.1} parent=87 // pred_region
          %591 = dma.done [#allocation10], 1536
        $region108: #{tpu_custom_call.1} parent=87 // pred_fallthru
          _
        // Predicated region
        $region109: #{tpu_custom_call.1} parent=87 // pred_check
          %p592 = pneg %p374
        $region110: #{tpu_custom_call.1} parent=87 // pred_check_branch
          %594 = sbr.rel (%p592) target = $region112
        $region111: #{tpu_custom_call.1} parent=87 // pred_region
          %595 = dma.done [#allocation13], 2560
        $region112: #{tpu_custom_call.1} parent=87 // pred_fallthru
          _
        // Predicated region
        $region113: #{tpu_custom_call.1} parent=87 // pred_check
          %p596 = pneg %p395
        $region114: #{tpu_custom_call.1} parent=87 // pred_check_branch
          %598 = sbr.rel (%p596) target = $region116
        $region115: #{tpu_custom_call.1} parent=87 // pred_region
          %599 = dma.done [#allocation5], 16
        $region116: #{tpu_custom_call.1} parent=87 // pred_fallthru
          _
        %600 = sfence
        %s601 = sand.u32 %s46, 1
        %s602 = scalar_lea.sflag [#allocation3], %s601
        %s603 = sand.u32 %s46, 1
        %s604 = smul.addr %s603, 8
        %s605 = scalar_lea.vmem [#allocation2], %s604
        %p606 = pneg %p59
        %p607 = pneg %p56
        %p608 = pneg %p80
        %p609 = pneg %p77
        %p610 = pneg %p101
        %p611 = pneg %p98
        %p612 = pneg %p122
        %p613 = pneg %p119
        %p614 = pneg %p143
        %p615 = pneg %p140
        %p616 = pneg %p164
        %p617 = pneg %p161
        %p618 = pneg %p185
        %p619 = pneg %p182
        %p620 = pneg %p206
        %p621 = pneg %p203
        %p622 = pneg %p227
        %p623 = pneg %p224
        %p624 = pneg %p248
        %p625 = pneg %p245
        %p626 = pneg %p269
        %p627 = pneg %p266
        %p628 = pneg %p290
        %p629 = pneg %p287
        %p630 = pneg %p311
        %p631 = pneg %p308
        %p632 = pneg %p332
        %p633 = pneg %p329
        %p634 = pneg %p353
        %p635 = pneg %p350
        %p636 = pneg %p374
        %p637 = pneg %p371
        %p638 = pneg %p395
        %p639 = pneg %p392
        %p640 = pneg %p421
        %p641 = pneg %p418
        %s642 = sand.u32 %s408, 1
        %s643 = scalar_lea.sflag [#allocation4], %s642
        %s644 = sand.u32 %s408, 1
        %s645 = smul.addr %s644, 8
        %s646 = scalar_lea.vmem [#allocation15], %s645
        %v647 = vld [vmem:[%s571] sm:$0xff]
        %v648 = vld [vmem:[%s1] sm:$0xff]
        %v649 = vld [vmem:[%s1 + $0x8] sm:$0xff]
        %v650 = vld [vmem:[%s1 + $0x10] sm:$0xff]
        %v651 = vld [vmem:[%s1 + $0x18] sm:$0xff]
        %v652 = vld [vmem:[#allocation6] sm:$0x1]
        %v654 = vlaneseq
        %v655 = vshrl.u32 %v654, 7
        %v656 = vsub.s32 0, %v655
        %v657 = vrot.slane %v652, %v656
        %vm659 = vcmask 261120
        %v661 = vsel %vm659, %v647, 0
        %663 = vmatprep.subr.mxu0 0.0
        %664 = vmatpush1.msra.mxu0 0.0
        %665 = vmatprep.subr.mxu0 0.0
        %666 = vmatpush1.msra.mxu0 0.0
        %667 = vmatprep.subr.mxu0 0.0
        %668 = vmatpush1.msra.mxu0 0.0
        %669 = vmatprep.subr.mxu0 0.0
        %670 = vmatpush1.msra.mxu0 0.0
        %671 = vmatprep.subr.mxu0 0.0
        %672 = vmatpush1.msra.mxu0 0.0
        %673 = vmatprep.subr.mxu0 0.0
        %674 = vmatpush1.msra.mxu0 0.0
        %675 = vmatprep.subr.mxu0 0.0
        %676 = vmatpush1.msra.mxu0 0.0
        %677 = vmatprep.subr.mxu0 0.0
        %678 = vmatpush1.msra.mxu0 0.0
        %679 = vmatprep.subr.mxu0 0.0
        %680 = vmatpush1.msra.mxu0 0.0
        %681 = vmatprep.subr.mxu0 0.0
        %682 = vmatpush1.msra.mxu0 0.0
        %683 = vmatprep.subr.mxu0 0.0
        %684 = vmatpush1.msra.mxu0 0.0
        %685 = vmatprep.subr.mxu0 0.0
        %686 = vmatpush1.msra.mxu0 0.0
        %687 = vmatprep.subr.mxu0 0.0
        %688 = vmatpush1.msra.mxu0 %v651
        %689 = vmatprep.subr.mxu0 0.0
        %690 = vmatpush1.msra.mxu0 %v650
        %691 = vmatprep.subr.mxu0 0.0
        %692 = vmatpush1.msra.mxu0 %v649
        %693 = vmatprep.subr.mxu0 0.0
        %694 = vmatpush1.msra.mxu0 %v648
        %695 = vmatprep.subr.mxu0 0.0
        %696 = vmatpush2.msra.mxu0 0.0
        %697 = vmatprep.subr.mxu0 0.0
        %698 = vmatpush2.msra.mxu0 0.0
        %699 = vmatprep.subr.mxu0 0.0
        %700 = vmatpush2.msra.mxu0 0.0
        %701 = vmatprep.subr.mxu0 0.0
        %702 = vmatpush2.msra.mxu0 0.0
        %703 = vmatprep.subr.mxu0 0.0
        %704 = vmatpush2.msra.mxu0 0.0
        %705 = vmatprep.subr.mxu0 0.0
        %706 = vmatpush2.msra.mxu0 0.0
        %707 = vmatprep.subr.mxu0 0.0
        %708 = vmatpush2.msra.mxu0 0.0
        %709 = vmatprep.subr.mxu0 0.0
        %710 = vmatpush2.msra.mxu0 0.0
        %711 = vmatprep.subr.mxu0 0.0
        %712 = vmatpush2.msra.mxu0 0.0
        %713 = vmatprep.subr.mxu0 0.0
        %714 = vmatpush2.msra.mxu0 0.0
        %715 = vmatprep.subr.mxu0 0.0
        %716 = vmatpush2.msra.mxu0 0.0
        %717 = vmatprep.subr.mxu0 0.0
        %718 = vmatpush2.msra.mxu0 0.0
        %719 = vmatprep.subr.mxu0 0.0
        %720 = vmatpush2.msra.mxu0 0.0
        %721 = vmatprep.subr.mxu0 0.0
        %722 = vmatpush2.msra.mxu0 0.0
        %723 = vmatprep.subr.mxu0 0.0
        %724 = vmatpush2.msra.mxu0 0.0
        %725 = vmatprep.subr.mxu0 0.0
        %726 = vmatpush2.msra.mxu0 0.0
        %727 = vmatprep.mubr.f32.mxu0 0.0
        %728 = vmatmul.mubr.f32.gmra.mxu0 %v661
        %v729 = vpop.f32.mrf.mxu0
        %v730 = vadd.f32 %v657, %v729
        %v731 = vpop.f32.mrf.mxu0
        %732 = vdwg.mxu0
        %734 = vrot.lane.b32.xlu0 %v730, 96
        %v735 = vpop.permute.xlu0 %734
        %vm736 = vcmask 64512
        %v737 = vsel %vm736, %v730, 0
        %v739 = vsel %vm736, %v735, 0
        %741 = vmatprep.subr.mxu0 0.0
        %742 = vmatpush1.xpose.msra.mxu0 0.0
        %743 = vmatprep.subr.mxu0 0.0
        %744 = vmatpush1.xpose.msra.mxu0 0.0
        %745 = vmatprep.subr.mxu0 0.0
        %746 = vmatpush1.xpose.msra.mxu0 0.0
        %747 = vmatprep.subr.mxu0 0.0
        %748 = vmatpush1.xpose.msra.mxu0 0.0
        %749 = vmatprep.subr.mxu0 0.0
        %750 = vmatpush1.xpose.msra.mxu0 0.0
        %751 = vmatprep.subr.mxu0 0.0
        %752 = vmatpush1.xpose.msra.mxu0 0.0
        %753 = vmatprep.subr.mxu0 0.0
        %754 = vmatpush1.xpose.msra.mxu0 0.0
        %755 = vmatprep.subr.mxu0 0.0
        %756 = vmatpush1.xpose.msra.mxu0 0.0
        %757 = vmatprep.subr.mxu0 0.0
        %758 = vmatpush1.xpose.msra.mxu0 0.0
        %759 = vmatprep.subr.mxu0 0.0
        %760 = vmatpush1.xpose.msra.mxu0 0.0
        %761 = vmatprep.subr.mxu0 0.0
        %762 = vmatpush1.xpose.msra.mxu0 0.0
        %763 = vmatprep.subr.mxu0 0.0
        %764 = vmatpush1.xpose.msra.mxu0 0.0
        %765 = vmatprep.subr.mxu0 0.0
        %766 = vmatpush1.xpose.msra.mxu0 0.0
        %767 = vmatprep.subr.mxu0 0.0
        %768 = vmatpush1.xpose.msra.mxu0 0.0
        %769 = vmatprep.subr.mxu0 0.0
        %770 = vmatpush1.xpose.msra.mxu0 0.0
        %771 = vmatprep.subr.mxu0 0.0
        %772 = vmatpush1.xpose.msra.mxu0 %v739
        %773 = vmatprep.subr.mxu0 0.0
        %774 = vmatpush2.xpose.msra.mxu0 0.0
        %775 = vmatprep.subr.mxu0 0.0
        %776 = vmatpush2.xpose.msra.mxu0 0.0
        %777 = vmatprep.subr.mxu0 0.0
        %778 = vmatpush2.xpose.msra.mxu0 0.0
        %779 = vmatprep.subr.mxu0 0.0
        %780 = vmatpush2.xpose.msra.mxu0 0.0
        %781 = vmatprep.subr.mxu0 0.0
        %782 = vmatpush2.xpose.msra.mxu0 0.0
        %783 = vmatprep.subr.mxu0 0.0
        %784 = vmatpush2.xpose.msra.mxu0 0.0
        %785 = vmatprep.subr.mxu0 0.0
        %786 = vmatpush2.xpose.msra.mxu0 0.0
        %787 = vmatprep.subr.mxu0 0.0
        %788 = vmatpush2.xpose.msra.mxu0 0.0
        %789 = vmatprep.subr.mxu0 0.0
        %790 = vmatpush2.xpose.msra.mxu0 0.0
        %791 = vmatprep.subr.mxu0 0.0
        %792 = vmatpush2.xpose.msra.mxu0 0.0
        %793 = vmatprep.subr.mxu0 0.0
        %794 = vmatpush2.xpose.msra.mxu0 0.0
        %795 = vmatprep.subr.mxu0 0.0
        %796 = vmatpush2.xpose.msra.mxu0 0.0
        %797 = vmatprep.subr.mxu0 0.0
        %798 = vmatpush2.xpose.msra.mxu0 0.0
        %799 = vmatprep.subr.mxu0 0.0
        %800 = vmatpush2.xpose.msra.mxu0 0.0
        %801 = vmatprep.subr.mxu0 0.0
        %802 = vmatpush2.xpose.msra.mxu0 0.0
        %803 = vmatprep.subr.mxu0 0.0
        %804 = vmatpush2.xpose.msra.mxu0 0.0
        %805 = vmatprep.mubr.f32.mxu0 0.0
        %806 = vmatmul.mubr.f32.gmra.mxu0 %v737
        %v807 = vpop.f32.mrf.mxu0
        %v808 = vadd.f32 0.0, %v807
        %v809 = vpop.f32.mrf.mxu0
        %810 = vdwg.mxu0
        %v811 = vsel %vm736, %v808, -inf
        %812 = vmax.xlane.f32.xlu0 %v811
        %v813 = vpop.xlane.xlu0 %812
        %v814 = vsub.f32 %v808, %v813
        %v815 = vmul.f32 %v814, 1.442695
        %v816 = vpow.pop %v815
        %v817 = vsel %vm736, %v816, 0.0
        %818 = vadd.xlane.f32.xlu0 %v817
        %v819 = vpop.xlane.xlu0 %818
        %v820 = vrcp.pop %v819
        %v821 = vmul.f32 %v816, %v820
        %822 = vrot.lane.b32.xlu0 %v730, 64
        %v823 = vpop.permute.xlu0 %822
        %v826 = vsel %vm736, %v821, 0
        %828 = vmatprep.subr.mxu0 0.0
        %829 = vmatpush1.msra.mxu0 0.0
        %830 = vmatprep.subr.mxu0 0.0
        %831 = vmatpush1.msra.mxu0 0.0
        %832 = vmatprep.subr.mxu0 0.0
        %833 = vmatpush1.msra.mxu0 0.0
        %834 = vmatprep.subr.mxu0 0.0
        %835 = vmatpush1.msra.mxu0 0.0
        %836 = vmatprep.subr.mxu0 0.0
        %837 = vmatpush1.msra.mxu0 0.0
        %838 = vmatprep.subr.mxu0 0.0
        %839 = vmatpush1.msra.mxu0 0.0
        %840 = vmatprep.subr.mxu0 0.0
        %841 = vmatpush1.msra.mxu0 0.0
        %842 = vmatprep.subr.mxu0 0.0
        %843 = vmatpush1.msra.mxu0 0.0
        %844 = vmatprep.subr.mxu0 0.0
        %845 = vmatpush1.msra.mxu0 0.0
        %846 = vmatprep.subr.mxu0 0.0
        %847 = vmatpush1.msra.mxu0 0.0
        %848 = vmatprep.subr.mxu0 0.0
        %849 = vmatpush1.msra.mxu0 0.0
        %850 = vmatprep.subr.mxu0 0.0
        %851 = vmatpush1.msra.mxu0 0.0
        %852 = vmatprep.subr.mxu0 0.0
        %853 = vmatpush1.msra.mxu0 0.0
        %854 = vmatprep.subr.mxu0 0.0
        %855 = vmatpush1.msra.mxu0 0.0
        %856 = vmatprep.subr.mxu0 0.0
        %857 = vmatpush1.msra.mxu0 0.0
        %858 = vmatprep.subr.mxu0 0.0
        %859 = vmatpush1.msra.mxu0 %v823
        %860 = vmatprep.subr.mxu0 0.0
        %861 = vmatpush2.msra.mxu0 0.0
        %862 = vmatprep.subr.mxu0 0.0
        %863 = vmatpush2.msra.mxu0 0.0
        %864 = vmatprep.subr.mxu0 0.0
        %865 = vmatpush2.msra.mxu0 0.0
        %866 = vmatprep.subr.mxu0 0.0
        %867 = vmatpush2.msra.mxu0 0.0
        %868 = vmatprep.subr.mxu0 0.0
        %869 = vmatpush2.msra.mxu0 0.0
        %870 = vmatprep.subr.mxu0 0.0
        %871 = vmatpush2.msra.mxu0 0.0
        %872 = vmatprep.subr.mxu0 0.0
        %873 = vmatpush2.msra.mxu0 0.0
        %874 = vmatprep.subr.mxu0 0.0
        %875 = vmatpush2.msra.mxu0 0.0
        %876 = vmatprep.subr.mxu0 0.0
        %877 = vmatpush2.msra.mxu0 0.0
        %878 = vmatprep.subr.mxu0 0.0
        %879 = vmatpush2.msra.mxu0 0.0
        %880 = vmatprep.subr.mxu0 0.0
        %881 = vmatpush2.msra.mxu0 0.0
        %882 = vmatprep.subr.mxu0 0.0
        %883 = vmatpush2.msra.mxu0 0.0
        %884 = vmatprep.subr.mxu0 0.0
        %885 = vmatpush2.msra.mxu0 0.0
        %886 = vmatprep.subr.mxu0 0.0
        %887 = vmatpush2.msra.mxu0 0.0
        %888 = vmatprep.subr.mxu0 0.0
        %889 = vmatpush2.msra.mxu0 0.0
        %890 = vmatprep.subr.mxu0 0.0
        %891 = vmatpush2.msra.mxu0 0.0
        %892 = vmatprep.mubr.f32.mxu0 0.0
        %893 = vmatmul.mubr.f32.gmra.mxu0 %v826
        %v894 = vpop.f32.mrf.mxu0
        %v895 = vadd.f32 0.0, %v894
        %v896 = vpop.f32.mrf.mxu0
        %897 = vdwg.mxu0
        %898 = vrot.lane.b32.xlu0 %v730, 120
        %v899 = vpop.permute.xlu0 %898
        %900 = vrot.lane.b32.xlu0 %v730, 88
        %v901 = vpop.permute.xlu0 %900
        %v902 = vsel %vm736, %v899, 0
        %v904 = vsel %vm736, %v901, 0
        %906 = vmatprep.subr.mxu0 0.0
        %907 = vmatpush1.xpose.msra.mxu0 0.0
        %908 = vmatprep.subr.mxu0 0.0
        %909 = vmatpush1.xpose.msra.mxu0 0.0
        %910 = vmatprep.subr.mxu0 0.0
        %911 = vmatpush1.xpose.msra.mxu0 0.0
        %912 = vmatprep.subr.mxu0 0.0
        %913 = vmatpush1.xpose.msra.mxu0 0.0
        %914 = vmatprep.subr.mxu0 0.0
        %915 = vmatpush1.xpose.msra.mxu0 0.0
        %916 = vmatprep.subr.mxu0 0.0
        %917 = vmatpush1.xpose.msra.mxu0 0.0
        %918 = vmatprep.subr.mxu0 0.0
        %919 = vmatpush1.xpose.msra.mxu0 0.0
        %920 = vmatprep.subr.mxu0 0.0
        %921 = vmatpush1.xpose.msra.mxu0 0.0
        %922 = vmatprep.subr.mxu0 0.0
        %923 = vmatpush1.xpose.msra.mxu0 0.0
        %924 = vmatprep.subr.mxu0 0.0
        %925 = vmatpush1.xpose.msra.mxu0 0.0
        %926 = vmatprep.subr.mxu0 0.0
        %927 = vmatpush1.xpose.msra.mxu0 0.0
        %928 = vmatprep.subr.mxu0 0.0
        %929 = vmatpush1.xpose.msra.mxu0 0.0
        %930 = vmatprep.subr.mxu0 0.0
        %931 = vmatpush1.xpose.msra.mxu0 0.0
        %932 = vmatprep.subr.mxu0 0.0
        %933 = vmatpush1.xpose.msra.mxu0 0.0
        %934 = vmatprep.subr.mxu0 0.0
        %935 = vmatpush1.xpose.msra.mxu0 0.0
        %936 = vmatprep.subr.mxu0 0.0
        %937 = vmatpush1.xpose.msra.mxu0 %v904
        %938 = vmatprep.subr.mxu0 0.0
        %939 = vmatpush2.xpose.msra.mxu0 0.0
        %940 = vmatprep.subr.mxu0 0.0
        %941 = vmatpush2.xpose.msra.mxu0 0.0
        %942 = vmatprep.subr.mxu0 0.0
        %943 = vmatpush2.xpose.msra.mxu0 0.0
        %944 = vmatprep.subr.mxu0 0.0
        %945 = vmatpush2.xpose.msra.mxu0 0.0
        %946 = vmatprep.subr.mxu0 0.0
        %947 = vmatpush2.xpose.msra.mxu0 0.0
        %948 = vmatprep.subr.mxu0 0.0
        %949 = vmatpush2.xpose.msra.mxu0 0.0
        %950 = vmatprep.subr.mxu0 0.0
        %951 = vmatpush2.xpose.msra.mxu0 0.0
        %952 = vmatprep.subr.mxu0 0.0
        %953 = vmatpush2.xpose.msra.mxu0 0.0
        %954 = vmatprep.subr.mxu0 0.0
        %955 = vmatpush2.xpose.msra.mxu0 0.0
        %956 = vmatprep.subr.mxu0 0.0
        %957 = vmatpush2.xpose.msra.mxu0 0.0
        %958 = vmatprep.subr.mxu0 0.0
        %959 = vmatpush2.xpose.msra.mxu0 0.0
        %960 = vmatprep.subr.mxu0 0.0
        %961 = vmatpush2.xpose.msra.mxu0 0.0
        %962 = vmatprep.subr.mxu0 0.0
        %963 = vmatpush2.xpose.msra.mxu0 0.0
        %964 = vmatprep.subr.mxu0 0.0
        %965 = vmatpush2.xpose.msra.mxu0 0.0
        %966 = vmatprep.subr.mxu0 0.0
        %967 = vmatpush2.xpose.msra.mxu0 0.0
        %968 = vmatprep.subr.mxu0 0.0
        %969 = vmatpush2.xpose.msra.mxu0 0.0
        %970 = vmatprep.mubr.f32.mxu0 0.0
        %971 = vmatmul.mubr.f32.gmra.mxu0 %v902
        %v972 = vpop.f32.mrf.mxu0
        %v973 = vadd.f32 0.0, %v972
        %v974 = vpop.f32.mrf.mxu0
        %975 = vdwg.mxu0
        %v976 = vsel %vm736, %v973, -inf
        %977 = vmax.xlane.f32.xlu0 %v976
        %v978 = vpop.xlane.xlu0 %977
        %v979 = vsub.f32 %v973, %v978
        %v980 = vmul.f32 %v979, 1.442695
        %v981 = vpow.pop %v980
        %v982 = vsel %vm736, %v981, 0.0
        %983 = vadd.xlane.f32.xlu0 %v982
        %v984 = vpop.xlane.xlu0 %983
        %v985 = vrcp.pop %v984
        %v986 = vmul.f32 %v981, %v985
        %987 = vrot.lane.b32.xlu0 %v730, 56
        %v988 = vpop.permute.xlu0 %987
        %v991 = vsel %vm736, %v986, 0
        %993 = vmatprep.subr.mxu0 0.0
        %994 = vmatpush1.msra.mxu0 0.0
        %995 = vmatprep.subr.mxu0 0.0
        %996 = vmatpush1.msra.mxu0 0.0
        %997 = vmatprep.subr.mxu0 0.0
        %998 = vmatpush1.msra.mxu0 0.0
        %999 = vmatprep.subr.mxu0 0.0
        %1000 = vmatpush1.msra.mxu0 0.0
        %1001 = vmatprep.subr.mxu0 0.0
        %1002 = vmatpush1.msra.mxu0 0.0
        %1003 = vmatprep.subr.mxu0 0.0
        %1004 = vmatpush1.msra.mxu0 0.0
        %1005 = vmatprep.subr.mxu0 0.0
        %1006 = vmatpush1.msra.mxu0 0.0
        %1007 = vmatprep.subr.mxu0 0.0
        %1008 = vmatpush1.msra.mxu0 0.0
        %1009 = vmatprep.subr.mxu0 0.0
        %1010 = vmatpush1.msra.mxu0 0.0
        %1011 = vmatprep.subr.mxu0 0.0
        %1012 = vmatpush1.msra.mxu0 0.0
        %1013 = vmatprep.subr.mxu0 0.0
        %1014 = vmatpush1.msra.mxu0 0.0
        %1015 = vmatprep.subr.mxu0 0.0
        %1016 = vmatpush1.msra.mxu0 0.0
        %1017 = vmatprep.subr.mxu0 0.0
        %1018 = vmatpush1.msra.mxu0 0.0
        %1019 = vmatprep.subr.mxu0 0.0
        %1020 = vmatpush1.msra.mxu0 0.0
        %1021 = vmatprep.subr.mxu0 0.0
        %1022 = vmatpush1.msra.mxu0 0.0
        %1023 = vmatprep.subr.mxu0 0.0
        %1024 = vmatpush1.msra.mxu0 %v988
        %1025 = vmatprep.subr.mxu0 0.0
        %1026 = vmatpush2.msra.mxu0 0.0
        %1027 = vmatprep.subr.mxu0 0.0
        %1028 = vmatpush2.msra.mxu0 0.0
        %1029 = vmatprep.subr.mxu0 0.0
        %1030 = vmatpush2.msra.mxu0 0.0
        %1031 = vmatprep.subr.mxu0 0.0
        %1032 = vmatpush2.msra.mxu0 0.0
        %1033 = vmatprep.subr.mxu0 0.0
        %1034 = vmatpush2.msra.mxu0 0.0
        %1035 = vmatprep.subr.mxu0 0.0
        %1036 = vmatpush2.msra.mxu0 0.0
        %1037 = vmatprep.subr.mxu0 0.0
        %1038 = vmatpush2.msra.mxu0 0.0
        %1039 = vmatprep.subr.mxu0 0.0
        %1040 = vmatpush2.msra.mxu0 0.0
        %1041 = vmatprep.subr.mxu0 0.0
        %1042 = vmatpush2.msra.mxu0 0.0
        %1043 = vmatprep.subr.mxu0 0.0
        %1044 = vmatpush2.msra.mxu0 0.0
        %1045 = vmatprep.subr.mxu0 0.0
        %1046 = vmatpush2.msra.mxu0 0.0
        %1047 = vmatprep.subr.mxu0 0.0
        %1048 = vmatpush2.msra.mxu0 0.0
        %1049 = vmatprep.subr.mxu0 0.0
        %1050 = vmatpush2.msra.mxu0 0.0
        %1051 = vmatprep.subr.mxu0 0.0
        %1052 = vmatpush2.msra.mxu0 0.0
        %1053 = vmatprep.subr.mxu0 0.0
        %1054 = vmatpush2.msra.mxu0 0.0
        %1055 = vmatprep.subr.mxu0 0.0
        %1056 = vmatpush2.msra.mxu0 0.0
        %1057 = vmatprep.mubr.f32.mxu0 0.0
        %1058 = vmatmul.mubr.f32.gmra.mxu0 %v991
        %v1059 = vpop.f32.mrf.mxu0
        %v1060 = vadd.f32 0.0, %v1059
        %v1061 = vpop.f32.mrf.mxu0
        %1062 = vdwg.mxu0
        %1063 = vrot.lane.b32.xlu0 %v730, 112
        %v1064 = vpop.permute.xlu0 %1063
        %1065 = vrot.lane.b32.xlu0 %v730, 80
        %v1066 = vpop.permute.xlu0 %1065
        %v1067 = vsel %vm736, %v1064, 0
        %v1069 = vsel %vm736, %v1066, 0
        %1071 = vmatprep.subr.mxu0 0.0
        %1072 = vmatpush1.xpose.msra.mxu0 0.0
        %1073 = vmatprep.subr.mxu0 0.0
        %1074 = vmatpush1.xpose.msra.mxu0 0.0
        %1075 = vmatprep.subr.mxu0 0.0
        %1076 = vmatpush1.xpose.msra.mxu0 0.0
        %1077 = vmatprep.subr.mxu0 0.0
        %1078 = vmatpush1.xpose.msra.mxu0 0.0
        %1079 = vmatprep.subr.mxu0 0.0
        %1080 = vmatpush1.xpose.msra.mxu0 0.0
        %1081 = vmatprep.subr.mxu0 0.0
        %1082 = vmatpush1.xpose.msra.mxu0 0.0
        %1083 = vmatprep.subr.mxu0 0.0
        %1084 = vmatpush1.xpose.msra.mxu0 0.0
        %1085 = vmatprep.subr.mxu0 0.0
        %1086 = vmatpush1.xpose.msra.mxu0 0.0
        %1087 = vmatprep.subr.mxu0 0.0
        %1088 = vmatpush1.xpose.msra.mxu0 0.0
        %1089 = vmatprep.subr.mxu0 0.0
        %1090 = vmatpush1.xpose.msra.mxu0 0.0
        %1091 = vmatprep.subr.mxu0 0.0
        %1092 = vmatpush1.xpose.msra.mxu0 0.0
        %1093 = vmatprep.subr.mxu0 0.0
        %1094 = vmatpush1.xpose.msra.mxu0 0.0
        %1095 = vmatprep.subr.mxu0 0.0
        %1096 = vmatpush1.xpose.msra.mxu0 0.0
        %1097 = vmatprep.subr.mxu0 0.0
        %1098 = vmatpush1.xpose.msra.mxu0 0.0
        %1099 = vmatprep.subr.mxu0 0.0
        %1100 = vmatpush1.xpose.msra.mxu0 0.0
        %1101 = vmatprep.subr.mxu0 0.0
        %1102 = vmatpush1.xpose.msra.mxu0 %v1069
        %1103 = vmatprep.subr.mxu0 0.0
        %1104 = vmatpush2.xpose.msra.mxu0 0.0
        %1105 = vmatprep.subr.mxu0 0.0
        %1106 = vmatpush2.xpose.msra.mxu0 0.0
        %1107 = vmatprep.subr.mxu0 0.0
        %1108 = vmatpush2.xpose.msra.mxu0 0.0
        %1109 = vmatprep.subr.mxu0 0.0
        %1110 = vmatpush2.xpose.msra.mxu0 0.0
        %1111 = vmatprep.subr.mxu0 0.0
        %1112 = vmatpush2.xpose.msra.mxu0 0.0
        %1113 = vmatprep.subr.mxu0 0.0
        %1114 = vmatpush2.xpose.msra.mxu0 0.0
        %1115 = vmatprep.subr.mxu0 0.0
        %1116 = vmatpush2.xpose.msra.mxu0 0.0
        %1117 = vmatprep.subr.mxu0 0.0
        %1118 = vmatpush2.xpose.msra.mxu0 0.0
        %1119 = vmatprep.subr.mxu0 0.0
        %1120 = vmatpush2.xpose.msra.mxu0 0.0
        %1121 = vmatprep.subr.mxu0 0.0
        %1122 = vmatpush2.xpose.msra.mxu0 0.0
        %1123 = vmatprep.subr.mxu0 0.0
        %1124 = vmatpush2.xpose.msra.mxu0 0.0
        %1125 = vmatprep.subr.mxu0 0.0
        %1126 = vmatpush2.xpose.msra.mxu0 0.0
        %1127 = vmatprep.subr.mxu0 0.0
        %1128 = vmatpush2.xpose.msra.mxu0 0.0
        %1129 = vmatprep.subr.mxu0 0.0
        %1130 = vmatpush2.xpose.msra.mxu0 0.0
        %1131 = vmatprep.subr.mxu0 0.0
        %1132 = vmatpush2.xpose.msra.mxu0 0.0
        %1133 = vmatprep.subr.mxu0 0.0
        %1134 = vmatpush2.xpose.msra.mxu0 0.0
        %1135 = vmatprep.mubr.f32.mxu0 0.0
        %1136 = vmatmul.mubr.f32.gmra.mxu0 %v1067
        %v1137 = vpop.f32.mrf.mxu0
        %v1138 = vadd.f32 0.0, %v1137
        %v1139 = vpop.f32.mrf.mxu0
        %1140 = vdwg.mxu0
        %v1141 = vsel %vm736, %v1138, -inf
        %1142 = vmax.xlane.f32.xlu0 %v1141
        %v1143 = vpop.xlane.xlu0 %1142
        %v1144 = vsub.f32 %v1138, %v1143
        %v1145 = vmul.f32 %v1144, 1.442695
        %v1146 = vpow.pop %v1145
        %v1147 = vsel %vm736, %v1146, 0.0
        %1148 = vadd.xlane.f32.xlu0 %v1147
        %v1149 = vpop.xlane.xlu0 %1148
        %v1150 = vrcp.pop %v1149
        %v1151 = vmul.f32 %v1146, %v1150
        %1152 = vrot.lane.b32.xlu0 %v730, 48
        %v1153 = vpop.permute.xlu0 %1152
        %v1156 = vsel %vm736, %v1151, 0
        %1158 = vmatprep.subr.mxu0 0.0
        %1159 = vmatpush1.msra.mxu0 0.0
        %1160 = vmatprep.subr.mxu0 0.0
        %1161 = vmatpush1.msra.mxu0 0.0
        %1162 = vmatprep.subr.mxu0 0.0
        %1163 = vmatpush1.msra.mxu0 0.0
        %1164 = vmatprep.subr.mxu0 0.0
        %1165 = vmatpush1.msra.mxu0 0.0
        %1166 = vmatprep.subr.mxu0 0.0
        %1167 = vmatpush1.msra.mxu0 0.0
        %1168 = vmatprep.subr.mxu0 0.0
        %1169 = vmatpush1.msra.mxu0 0.0
        %1170 = vmatprep.subr.mxu0 0.0
        %1171 = vmatpush1.msra.mxu0 0.0
        %1172 = vmatprep.subr.mxu0 0.0
        %1173 = vmatpush1.msra.mxu0 0.0
        %1174 = vmatprep.subr.mxu0 0.0
        %1175 = vmatpush1.msra.mxu0 0.0
        %1176 = vmatprep.subr.mxu0 0.0
        %1177 = vmatpush1.msra.mxu0 0.0
        %1178 = vmatprep.subr.mxu0 0.0
        %1179 = vmatpush1.msra.mxu0 0.0
        %1180 = vmatprep.subr.mxu0 0.0
        %1181 = vmatpush1.msra.mxu0 0.0
        %1182 = vmatprep.subr.mxu0 0.0
        %1183 = vmatpush1.msra.mxu0 0.0
        %1184 = vmatprep.subr.mxu0 0.0
        %1185 = vmatpush1.msra.mxu0 0.0
        %1186 = vmatprep.subr.mxu0 0.0
        %1187 = vmatpush1.msra.mxu0 0.0
        %1188 = vmatprep.subr.mxu0 0.0
        %1189 = vmatpush1.msra.mxu0 %v1153
        %1190 = vmatprep.subr.mxu0 0.0
        %1191 = vmatpush2.msra.mxu0 0.0
        %1192 = vmatprep.subr.mxu0 0.0
        %1193 = vmatpush2.msra.mxu0 0.0
        %1194 = vmatprep.subr.mxu0 0.0
        %1195 = vmatpush2.msra.mxu0 0.0
        %1196 = vmatprep.subr.mxu0 0.0
        %1197 = vmatpush2.msra.mxu0 0.0
        %1198 = vmatprep.subr.mxu0 0.0
        %1199 = vmatpush2.msra.mxu0 0.0
        %1200 = vmatprep.subr.mxu0 0.0
        %1201 = vmatpush2.msra.mxu0 0.0
        %1202 = vmatprep.subr.mxu0 0.0
        %1203 = vmatpush2.msra.mxu0 0.0
        %1204 = vmatprep.subr.mxu0 0.0
        %1205 = vmatpush2.msra.mxu0 0.0
        %1206 = vmatprep.subr.mxu0 0.0
        %1207 = vmatpush2.msra.mxu0 0.0
        %1208 = vmatprep.subr.mxu0 0.0
        %1209 = vmatpush2.msra.mxu0 0.0
        %1210 = vmatprep.subr.mxu0 0.0
        %1211 = vmatpush2.msra.mxu0 0.0
        %1212 = vmatprep.subr.mxu0 0.0
        %1213 = vmatpush2.msra.mxu0 0.0
        %1214 = vmatprep.subr.mxu0 0.0
        %1215 = vmatpush2.msra.mxu0 0.0
        %1216 = vmatprep.subr.mxu0 0.0
        %1217 = vmatpush2.msra.mxu0 0.0
        %1218 = vmatprep.subr.mxu0 0.0
        %1219 = vmatpush2.msra.mxu0 0.0
        %1220 = vmatprep.subr.mxu0 0.0
        %1221 = vmatpush2.msra.mxu0 0.0
        %1222 = vmatprep.mubr.f32.mxu0 0.0
        %1223 = vmatmul.mubr.f32.gmra.mxu0 %v1156
        %v1224 = vpop.f32.mrf.mxu0
        %v1225 = vadd.f32 0.0, %v1224
        %v1226 = vpop.f32.mrf.mxu0
        %1227 = vdwg.mxu0
        %1228 = vrot.lane.b32.xlu0 %v730, 104
        %v1229 = vpop.permute.xlu0 %1228
        %1230 = vrot.lane.b32.xlu0 %v730, 72
        %v1231 = vpop.permute.xlu0 %1230
        %v1232 = vsel %vm736, %v1229, 0
        %v1234 = vsel %vm736, %v1231, 0
        %1236 = vmatprep.subr.mxu0 0.0
        %1237 = vmatpush1.xpose.msra.mxu0 0.0
        %1238 = vmatprep.subr.mxu0 0.0
        %1239 = vmatpush1.xpose.msra.mxu0 0.0
        %1240 = vmatprep.subr.mxu0 0.0
        %1241 = vmatpush1.xpose.msra.mxu0 0.0
        %1242 = vmatprep.subr.mxu0 0.0
        %1243 = vmatpush1.xpose.msra.mxu0 0.0
        %1244 = vmatprep.subr.mxu0 0.0
        %1245 = vmatpush1.xpose.msra.mxu0 0.0
        %1246 = vmatprep.subr.mxu0 0.0
        %1247 = vmatpush1.xpose.msra.mxu0 0.0
        %1248 = vmatprep.subr.mxu0 0.0
        %1249 = vmatpush1.xpose.msra.mxu0 0.0
        %1250 = vmatprep.subr.mxu0 0.0
        %1251 = vmatpush1.xpose.msra.mxu0 0.0
        %1252 = vmatprep.subr.mxu0 0.0
        %1253 = vmatpush1.xpose.msra.mxu0 0.0
        %1254 = vmatprep.subr.mxu0 0.0
        %1255 = vmatpush1.xpose.msra.mxu0 0.0
        %1256 = vmatprep.subr.mxu0 0.0
        %1257 = vmatpush1.xpose.msra.mxu0 0.0
        %1258 = vmatprep.subr.mxu0 0.0
        %1259 = vmatpush1.xpose.msra.mxu0 0.0
        %1260 = vmatprep.subr.mxu0 0.0
        %1261 = vmatpush1.xpose.msra.mxu0 0.0
        %1262 = vmatprep.subr.mxu0 0.0
        %1263 = vmatpush1.xpose.msra.mxu0 0.0
        %1264 = vmatprep.subr.mxu0 0.0
        %1265 = vmatpush1.xpose.msra.mxu0 0.0
        %1266 = vmatprep.subr.mxu0 0.0
        %1267 = vmatpush1.xpose.msra.mxu0 %v1234
        %1268 = vmatprep.subr.mxu0 0.0
        %1269 = vmatpush2.xpose.msra.mxu0 0.0
        %1270 = vmatprep.subr.mxu0 0.0
        %1271 = vmatpush2.xpose.msra.mxu0 0.0
        %1272 = vmatprep.subr.mxu0 0.0
        %1273 = vmatpush2.xpose.msra.mxu0 0.0
        %1274 = vmatprep.subr.mxu0 0.0
        %1275 = vmatpush2.xpose.msra.mxu0 0.0
        %1276 = vmatprep.subr.mxu0 0.0
        %1277 = vmatpush2.xpose.msra.mxu0 0.0
        %1278 = vmatprep.subr.mxu0 0.0
        %1279 = vmatpush2.xpose.msra.mxu0 0.0
        %1280 = vmatprep.subr.mxu0 0.0
        %1281 = vmatpush2.xpose.msra.mxu0 0.0
        %1282 = vmatprep.subr.mxu0 0.0
        %1283 = vmatpush2.xpose.msra.mxu0 0.0
        %1284 = vmatprep.subr.mxu0 0.0
        %1285 = vmatpush2.xpose.msra.mxu0 0.0
        %1286 = vmatprep.subr.mxu0 0.0
        %1287 = vmatpush2.xpose.msra.mxu0 0.0
        %1288 = vmatprep.subr.mxu0 0.0
        %1289 = vmatpush2.xpose.msra.mxu0 0.0
        %1290 = vmatprep.subr.mxu0 0.0
        %1291 = vmatpush2.xpose.msra.mxu0 0.0
        %1292 = vmatprep.subr.mxu0 0.0
        %1293 = vmatpush2.xpose.msra.mxu0 0.0
        %1294 = vmatprep.subr.mxu0 0.0
        %1295 = vmatpush2.xpose.msra.mxu0 0.0
        %1296 = vmatprep.subr.mxu0 0.0
        %1297 = vmatpush2.xpose.msra.mxu0 0.0
        %1298 = vmatprep.subr.mxu0 0.0
        %1299 = vmatpush2.xpose.msra.mxu0 0.0
        %1300 = vmatprep.mubr.f32.mxu0 0.0
        %1301 = vmatmul.mubr.f32.gmra.mxu0 %v1232
        %v1302 = vpop.f32.mrf.mxu0
        %v1303 = vadd.f32 0.0, %v1302
        %v1304 = vpop.f32.mrf.mxu0
        %1305 = vdwg.mxu0
        %v1306 = vsel %vm736, %v1303, -inf
        %1307 = vmax.xlane.f32.xlu0 %v1306
        %v1308 = vpop.xlane.xlu0 %1307
        %v1309 = vsub.f32 %v1303, %v1308
        %v1310 = vmul.f32 %v1309, 1.442695
        %v1311 = vpow.pop %v1310
        %v1312 = vsel %vm736, %v1311, 0.0
        %1313 = vadd.xlane.f32.xlu0 %v1312
        %v1314 = vpop.xlane.xlu0 %1313
        %v1315 = vrcp.pop %v1314
        %v1316 = vmul.f32 %v1311, %v1315
        %1317 = vrot.lane.b32.xlu0 %v730, 40
        %v1318 = vpop.permute.xlu0 %1317
        %v1321 = vsel %vm736, %v1316, 0
        %1323 = vmatprep.subr.mxu0 0.0
        %1324 = vmatpush1.msra.mxu0 0.0
        %1325 = vmatprep.subr.mxu0 0.0
        %1326 = vmatpush1.msra.mxu0 0.0
        %1327 = vmatprep.subr.mxu0 0.0
        %1328 = vmatpush1.msra.mxu0 0.0
        %1329 = vmatprep.subr.mxu0 0.0
        %1330 = vmatpush1.msra.mxu0 0.0
        %1331 = vmatprep.subr.mxu0 0.0
        %1332 = vmatpush1.msra.mxu0 0.0
        %1333 = vmatprep.subr.mxu0 0.0
        %1334 = vmatpush1.msra.mxu0 0.0
        %1335 = vmatprep.subr.mxu0 0.0
        %1336 = vmatpush1.msra.mxu0 0.0
        %1337 = vmatprep.subr.mxu0 0.0
        %1338 = vmatpush1.msra.mxu0 0.0
        %1339 = vmatprep.subr.mxu0 0.0
        %1340 = vmatpush1.msra.mxu0 0.0
        %1341 = vmatprep.subr.mxu0 0.0
        %1342 = vmatpush1.msra.mxu0 0.0
        %1343 = vmatprep.subr.mxu0 0.0
        %1344 = vmatpush1.msra.mxu0 0.0
        %1345 = vmatprep.subr.mxu0 0.0
        %1346 = vmatpush1.msra.mxu0 0.0
        %1347 = vmatprep.subr.mxu0 0.0
        %1348 = vmatpush1.msra.mxu0 0.0
        %1349 = vmatprep.subr.mxu0 0.0
        %1350 = vmatpush1.msra.mxu0 0.0
        %1351 = vmatprep.subr.mxu0 0.0
        %1352 = vmatpush1.msra.mxu0 0.0
        %1353 = vmatprep.subr.mxu0 0.0
        %1354 = vmatpush1.msra.mxu0 %v1318
        %1355 = vmatprep.subr.mxu0 0.0
        %1356 = vmatpush2.msra.mxu0 0.0
        %1357 = vmatprep.subr.mxu0 0.0
        %1358 = vmatpush2.msra.mxu0 0.0
        %1359 = vmatprep.subr.mxu0 0.0
        %1360 = vmatpush2.msra.mxu0 0.0
        %1361 = vmatprep.subr.mxu0 0.0
        %1362 = vmatpush2.msra.mxu0 0.0
        %1363 = vmatprep.subr.mxu0 0.0
        %1364 = vmatpush2.msra.mxu0 0.0
        %1365 = vmatprep.subr.mxu0 0.0
        %1366 = vmatpush2.msra.mxu0 0.0
        %1367 = vmatprep.subr.mxu0 0.0
        %1368 = vmatpush2.msra.mxu0 0.0
        %1369 = vmatprep.subr.mxu0 0.0
        %1370 = vmatpush2.msra.mxu0 0.0
        %1371 = vmatprep.subr.mxu0 0.0
        %1372 = vmatpush2.msra.mxu0 0.0
        %1373 = vmatprep.subr.mxu0 0.0
        %1374 = vmatpush2.msra.mxu0 0.0
        %1375 = vmatprep.subr.mxu0 0.0
        %1376 = vmatpush2.msra.mxu0 0.0
        %1377 = vmatprep.subr.mxu0 0.0
        %1378 = vmatpush2.msra.mxu0 0.0
        %1379 = vmatprep.subr.mxu0 0.0
        %1380 = vmatpush2.msra.mxu0 0.0
        %1381 = vmatprep.subr.mxu0 0.0
        %1382 = vmatpush2.msra.mxu0 0.0
        %1383 = vmatprep.subr.mxu0 0.0
        %1384 = vmatpush2.msra.mxu0 0.0
        %1385 = vmatprep.subr.mxu0 0.0
        %1386 = vmatpush2.msra.mxu0 0.0
        %1387 = vmatprep.mubr.f32.mxu0 0.0
        %1388 = vmatmul.mubr.f32.gmra.mxu0 %v1321
        %v1389 = vpop.f32.mrf.mxu0
        %v1390 = vadd.f32 0.0, %v1389
        %v1391 = vpop.f32.mrf.mxu0
        %1392 = vdwg.mxu0
        %1394 = vrot.lane.b32.xlu0 %v1060, 8
        %v1395 = vpop.permute.xlu0 %1394
        %1398 = vrot.lane.b32.xlu0 %v1225, 16
        %v1399 = vpop.permute.xlu0 %1398
        %1402 = vrot.lane.b32.xlu0 %v1390, 24
        %v1403 = vpop.permute.xlu0 %1402
        %v1405 = vsel %vm736, %v895, %v1395
        %vm1406 = vcmask 130048
        %v1407 = vsel %vm1406, %v1405, %v1399
        %vm1408 = vcmask 195584
        %v1409 = vsel %vm1408, %v1407, %v1403
        %v1410 = vld [vmem:[#allocation8] sm:$0xff]
        %v1411 = vld [vmem:[#allocation8 + $0x8] sm:$0xff]
        %v1412 = vld [vmem:[#allocation8 + $0x10] sm:$0xff]
        %v1413 = vld [vmem:[#allocation8 + $0x18] sm:$0xff]
        %v1414 = vld [vmem:[#allocation9] sm:$0x1]
        %v1416 = vlaneseq
        %v1417 = vshrl.u32 %v1416, 7
        %v1418 = vsub.s32 0, %v1417
        %v1419 = vrot.slane %v1414, %v1418
        %v1422 = vsel %vm659, %v1409, 0
        %1424 = vmatprep.subr.mxu0 0.0
        %1425 = vmatpush1.msra.mxu0 0.0
        %1426 = vmatprep.subr.mxu0 0.0
        %1427 = vmatpush1.msra.mxu0 0.0
        %1428 = vmatprep.subr.mxu0 0.0
        %1429 = vmatpush1.msra.mxu0 0.0
        %1430 = vmatprep.subr.mxu0 0.0
        %1431 = vmatpush1.msra.mxu0 0.0
        %1432 = vmatprep.subr.mxu0 0.0
        %1433 = vmatpush1.msra.mxu0 0.0
        %1434 = vmatprep.subr.mxu0 0.0
        %1435 = vmatpush1.msra.mxu0 0.0
        %1436 = vmatprep.subr.mxu0 0.0
        %1437 = vmatpush1.msra.mxu0 0.0
        %1438 = vmatprep.subr.mxu0 0.0
        %1439 = vmatpush1.msra.mxu0 0.0
        %1440 = vmatprep.subr.mxu0 0.0
        %1441 = vmatpush1.msra.mxu0 0.0
        %1442 = vmatprep.subr.mxu0 0.0
        %1443 = vmatpush1.msra.mxu0 0.0
        %1444 = vmatprep.subr.mxu0 0.0
        %1445 = vmatpush1.msra.mxu0 0.0
        %1446 = vmatprep.subr.mxu0 0.0
        %1447 = vmatpush1.msra.mxu0 0.0
        %1448 = vmatprep.subr.mxu0 0.0
        %1449 = vmatpush1.msra.mxu0 %v1413
        %1450 = vmatprep.subr.mxu0 0.0
        %1451 = vmatpush1.msra.mxu0 %v1412
        %1452 = vmatprep.subr.mxu0 0.0
        %1453 = vmatpush1.msra.mxu0 %v1411
        %1454 = vmatprep.subr.mxu0 0.0
        %1455 = vmatpush1.msra.mxu0 %v1410
        %1456 = vmatprep.subr.mxu0 0.0
        %1457 = vmatpush2.msra.mxu0 0.0
        %1458 = vmatprep.subr.mxu0 0.0
        %1459 = vmatpush2.msra.mxu0 0.0
        %1460 = vmatprep.subr.mxu0 0.0
        %1461 = vmatpush2.msra.mxu0 0.0
        %1462 = vmatprep.subr.mxu0 0.0
        %1463 = vmatpush2.msra.mxu0 0.0
        %1464 = vmatprep.subr.mxu0 0.0
        %1465 = vmatpush2.msra.mxu0 0.0
        %1466 = vmatprep.subr.mxu0 0.0
        %1467 = vmatpush2.msra.mxu0 0.0
        %1468 = vmatprep.subr.mxu0 0.0
        %1469 = vmatpush2.msra.mxu0 0.0
        %1470 = vmatprep.subr.mxu0 0.0
        %1471 = vmatpush2.msra.mxu0 0.0
        %1472 = vmatprep.subr.mxu0 0.0
        %1473 = vmatpush2.msra.mxu0 0.0
        %1474 = vmatprep.subr.mxu0 0.0
        %1475 = vmatpush2.msra.mxu0 0.0
        %1476 = vmatprep.subr.mxu0 0.0
        %1477 = vmatpush2.msra.mxu0 0.0
        %1478 = vmatprep.subr.mxu0 0.0
        %1479 = vmatpush2.msra.mxu0 0.0
        %1480 = vmatprep.subr.mxu0 0.0
        %1481 = vmatpush2.msra.mxu0 0.0
        %1482 = vmatprep.subr.mxu0 0.0
        %1483 = vmatpush2.msra.mxu0 0.0
        %1484 = vmatprep.subr.mxu0 0.0
        %1485 = vmatpush2.msra.mxu0 0.0
        %1486 = vmatprep.subr.mxu0 0.0
        %1487 = vmatpush2.msra.mxu0 0.0
        %1488 = vmatprep.mubr.f32.mxu0 0.0
        %1489 = vmatmul.mubr.f32.gmra.mxu0 %v1422
        %v1490 = vpop.f32.mrf.mxu0
        %v1491 = vadd.f32 %v1419, %v1490
        %v1492 = vpop.f32.mrf.mxu0
        %1493 = vdwg.mxu0
        %v1494 = vld [vmem:[%s5] sm:$0xff]
        %v1495 = vld [vmem:[%s5 + $0x8] sm:$0xff]
        %v1496 = vld [vmem:[%s5 + $0x10] sm:$0xff]
        %v1497 = vld [vmem:[%s6] sm:$0xff]
        %v1498 = vld [vmem:[%s6 + $0x8] sm:$0xff]
        %v1499 = vld [vmem:[%s6 + $0x10] sm:$0xff]
        %1501 = vset.pattern.permute.xlu0 0
        %1502 = vperm.xlu0 %1501, %v1497
        %v1503 = vpop.permute.xlu0 %1502
        %1506 = vset.pattern.permute.xlu0 0
        %1507 = vperm.xlu0 %1506, %v1498
        %v1508 = vpop.permute.xlu0 %1507
        %1511 = vset.pattern.permute.xlu0 0
        %1512 = vperm.xlu0 %1511, %v1499
        %v1513 = vpop.permute.xlu0 %1512
        %v1516 = vsel %vm736, %v1494, 0
        %v1519 = vsel %vm736, %v1495, 0
        %v1522 = vsel %vm736, %v1496, 0
        %1524 = vmatprep.subr.mxu0 0.0
        %1525 = vmatpush1.msra.mxu0 0.0
        %1526 = vmatprep.subr.mxu0 0.0
        %1527 = vmatpush1.msra.mxu0 0.0
        %1528 = vmatprep.subr.mxu0 0.0
        %1529 = vmatpush1.msra.mxu0 0.0
        %1530 = vmatprep.subr.mxu0 0.0
        %1531 = vmatpush1.msra.mxu0 0.0
        %1532 = vmatprep.subr.mxu0 0.0
        %1533 = vmatpush1.msra.mxu0 0.0
        %1534 = vmatprep.subr.mxu0 0.0
        %1535 = vmatpush1.msra.mxu0 0.0
        %1536 = vmatprep.subr.mxu0 0.0
        %1537 = vmatpush1.msra.mxu0 0.0
        %1538 = vmatprep.subr.mxu0 0.0
        %1539 = vmatpush1.msra.mxu0 0.0
        %1540 = vmatprep.subr.mxu0 0.0
        %1541 = vmatpush1.msra.mxu0 0.0
        %1542 = vmatprep.subr.mxu0 0.0
        %1543 = vmatpush1.msra.mxu0 0.0
        %1544 = vmatprep.subr.mxu0 0.0
        %1545 = vmatpush1.msra.mxu0 0.0
        %1546 = vmatprep.subr.mxu0 0.0
        %1547 = vmatpush1.msra.mxu0 0.0
        %1548 = vmatprep.subr.mxu0 0.0
        %1549 = vmatpush1.msra.mxu0 0.0
        %1550 = vmatprep.subr.mxu0 0.0
        %1551 = vmatpush1.msra.mxu0 0.0
        %1552 = vmatprep.subr.mxu0 0.0
        %1553 = vmatpush1.msra.mxu0 0.0
        %1554 = vmatprep.subr.mxu0 0.0
        %1555 = vmatpush1.msra.mxu0 %v647
        %1556 = vmatprep.subr.mxu0 0.0
        %1557 = vmatpush2.msra.mxu0 0.0
        %1558 = vmatprep.subr.mxu0 0.0
        %1559 = vmatpush2.msra.mxu0 0.0
        %1560 = vmatprep.subr.mxu0 0.0
        %1561 = vmatpush2.msra.mxu0 0.0
        %1562 = vmatprep.subr.mxu0 0.0
        %1563 = vmatpush2.msra.mxu0 0.0
        %1564 = vmatprep.subr.mxu0 0.0
        %1565 = vmatpush2.msra.mxu0 0.0
        %1566 = vmatprep.subr.mxu0 0.0
        %1567 = vmatpush2.msra.mxu0 0.0
        %1568 = vmatprep.subr.mxu0 0.0
        %1569 = vmatpush2.msra.mxu0 0.0
        %1570 = vmatprep.subr.mxu0 0.0
        %1571 = vmatpush2.msra.mxu0 0.0
        %1572 = vmatprep.subr.mxu0 0.0
        %1573 = vmatpush2.msra.mxu0 0.0
        %1574 = vmatprep.subr.mxu0 0.0
        %1575 = vmatpush2.msra.mxu0 0.0
        %1576 = vmatprep.subr.mxu0 0.0
        %1577 = vmatpush2.msra.mxu0 0.0
        %1578 = vmatprep.subr.mxu0 0.0
        %1579 = vmatpush2.msra.mxu0 0.0
        %1580 = vmatprep.subr.mxu0 0.0
        %1581 = vmatpush2.msra.mxu0 0.0
        %1582 = vmatprep.subr.mxu0 0.0
        %1583 = vmatpush2.msra.mxu0 0.0
        %1584 = vmatprep.subr.mxu0 0.0
        %1585 = vmatpush2.msra.mxu0 0.0
        %1586 = vmatprep.subr.mxu0 0.0
        %1587 = vmatpush2.msra.mxu0 0.0
        %1588 = vmatprep.mubr.f32.mxu0 0.0
        %1589 = vmatmul.mubr.f32.gmra.mxu0 %v1516
        %v1590 = vpop.f32.mrf.mxu0
        %v1591 = vadd.f32 %v1503, %v1590
        %v1592 = vpop.f32.mrf.mxu0
        %1593 = vmatprep.mubr.f32.mxu0 0.0
        %1594 = vmatmul.mubr.f32.gmra.mxu0 %v1519
        %v1595 = vpop.f32.mrf.mxu0
        %v1596 = vadd.f32 %v1508, %v1595
        %v1597 = vpop.f32.mrf.mxu0
        %1598 = vmatprep.mubr.f32.mxu0 0.0
        %1599 = vmatmul.mubr.f32.gmra.mxu0 %v1522
        %v1600 = vpop.f32.mrf.mxu0
        %v1601 = vadd.f32 %v1513, %v1600
        %v1602 = vpop.f32.mrf.mxu0
        %1603 = vdwg.mxu0
        %v1604 = vlaneseq
        %v1605 = vshrl.u32 %v1604, 7
        %v1606 = vadd.s32 %v1605, 8
        %v1607 = vadd.s32 %v1605, 16
        %v1608 = vadd.s32 %v1605, 24
        %v1609 = vlaneseq
        %v1610 = vand.u32 %v1609, 127
        %vm1611 = vcmp.eq.s32.totalorder %v1605, %v1610
        %vm1612 = vcmp.eq.s32.totalorder %v1606, %v1610
        %vm1613 = vcmp.eq.s32.totalorder %v1607, %v1610
        %vm1614 = vcmp.eq.s32.totalorder %v1608, %v1610
        %v1615 = vsel %vm1611, 1, 0
        %v1616 = vsel %vm1612, 1, 0
        %v1617 = vsel %vm1613, 1, 0
        %v1618 = vsel %vm1614, 1, 0
        %v1619 = vcvt.s32.f32 %v1615
        %v1620 = vcvt.s32.f32 %v1616
        %v1621 = vcvt.s32.f32 %v1617
        %v1622 = vcvt.s32.f32 %v1618
        %v1624 = vsel %vm659, %v1619, 0
        %v1627 = vsel %vm659, %v1620, 0
        %v1630 = vsel %vm659, %v1621, 0
        %v1633 = vsel %vm659, %v1622, 0
        %v1636 = vsel %vm659, %v1591, 0
        %v1639 = vsel %vm659, %v1596, 0
        %1641 = vmatprep.subr.mxu0 0.0
        %1642 = vmatpush1.xpose.msra.mxu0 0.0
        %1643 = vmatprep.subr.mxu0 0.0
        %1644 = vmatpush1.xpose.msra.mxu0 0.0
        %1645 = vmatprep.subr.mxu0 0.0
        %1646 = vmatpush1.xpose.msra.mxu0 0.0
        %1647 = vmatprep.subr.mxu0 0.0
        %1648 = vmatpush1.xpose.msra.mxu0 0.0
        %1649 = vmatprep.subr.mxu0 0.0
        %1650 = vmatpush1.xpose.msra.mxu0 0.0
        %1651 = vmatprep.subr.mxu0 0.0
        %1652 = vmatpush1.xpose.msra.mxu0 0.0
        %1653 = vmatprep.subr.mxu0 0.0
        %1654 = vmatpush1.xpose.msra.mxu0 0.0
        %1655 = vmatprep.subr.mxu0 0.0
        %1656 = vmatpush1.xpose.msra.mxu0 0.0
        %1657 = vmatprep.subr.mxu0 0.0
        %1658 = vmatpush1.xpose.msra.mxu0 0.0
        %1659 = vmatprep.subr.mxu0 0.0
        %1660 = vmatpush1.xpose.msra.mxu0 0.0
        %1661 = vmatprep.subr.mxu0 0.0
        %1662 = vmatpush1.xpose.msra.mxu0 0.0
        %1663 = vmatprep.subr.mxu0 0.0
        %1664 = vmatpush1.xpose.msra.mxu0 0.0
        %1665 = vmatprep.subr.mxu0 0.0
        %1666 = vmatpush1.xpose.msra.mxu0 0.0
        %1667 = vmatprep.subr.mxu0 0.0
        %1668 = vmatpush1.xpose.msra.mxu0 0.0
        %1669 = vmatprep.subr.mxu0 0.0
        %1670 = vmatpush1.xpose.msra.mxu0 %v1639
        %1671 = vmatprep.subr.mxu0 0.0
        %1672 = vmatpush1.xpose.msra.mxu0 %v1636
        %1673 = vmatprep.subr.mxu0 0.0
        %1674 = vmatpush2.xpose.msra.mxu0 0.0
        %1675 = vmatprep.subr.mxu0 0.0
        %1676 = vmatpush2.xpose.msra.mxu0 0.0
        %1677 = vmatprep.subr.mxu0 0.0
        %1678 = vmatpush2.xpose.msra.mxu0 0.0
        %1679 = vmatprep.subr.mxu0 0.0
        %1680 = vmatpush2.xpose.msra.mxu0 0.0
        %1681 = vmatprep.subr.mxu0 0.0
        %1682 = vmatpush2.xpose.msra.mxu0 0.0
        %1683 = vmatprep.subr.mxu0 0.0
        %1684 = vmatpush2.xpose.msra.mxu0 0.0
        %1685 = vmatprep.subr.mxu0 0.0
        %1686 = vmatpush2.xpose.msra.mxu0 0.0
        %1687 = vmatprep.subr.mxu0 0.0
        %1688 = vmatpush2.xpose.msra.mxu0 0.0
        %1689 = vmatprep.subr.mxu0 0.0
        %1690 = vmatpush2.xpose.msra.mxu0 0.0
        %1691 = vmatprep.subr.mxu0 0.0
        %1692 = vmatpush2.xpose.msra.mxu0 0.0
        %1693 = vmatprep.subr.mxu0 0.0
        %1694 = vmatpush2.xpose.msra.mxu0 0.0
        %1695 = vmatprep.subr.mxu0 0.0
        %1696 = vmatpush2.xpose.msra.mxu0 0.0
        %1697 = vmatprep.subr.mxu0 0.0
        %1698 = vmatpush2.xpose.msra.mxu0 0.0
        %1699 = vmatprep.subr.mxu0 0.0
        %1700 = vmatpush2.xpose.msra.mxu0 0.0
        %1701 = vmatprep.subr.mxu0 0.0
        %1702 = vmatpush2.xpose.msra.mxu0 0.0
        %1703 = vmatprep.subr.mxu0 0.0
        %1704 = vmatpush2.xpose.msra.mxu0 0.0
        %1705 = vmatprep.mubr.f32.mxu0 0.0
        %1706 = vmatmul.mubr.f32.gmra.mxu0 %v1624
        %v1707 = vpop.f32.mrf.mxu0
        %v1708 = vadd.f32 0.0, %v1707
        %v1709 = vpop.f32.mrf.mxu0
        %1710 = vmatprep.mubr.f32.mxu0 0.0
        %1711 = vmatmul.mubr.f32.gmra.mxu0 %v1627
        %v1712 = vpop.f32.mrf.mxu0
        %v1713 = vadd.f32 0.0, %v1712
        %v1714 = vpop.f32.mrf.mxu0
        %1715 = vmatprep.mubr.f32.mxu0 0.0
        %1716 = vmatmul.mubr.f32.gmra.mxu0 %v1630
        %v1717 = vpop.f32.mrf.mxu0
        %v1718 = vadd.f32 0.0, %v1717
        %v1719 = vpop.f32.mrf.mxu0
        %1720 = vmatprep.mubr.f32.mxu0 0.0
        %1721 = vmatmul.mubr.f32.gmra.mxu0 %v1633
        %v1722 = vpop.f32.mrf.mxu0
        %v1723 = vadd.f32 0.0, %v1722
        %v1724 = vpop.f32.mrf.mxu0
        %1725 = vdwg.mxu0
        %1730 = vrot.lane.b32.xlu0 %v1708, 120
        %v1731 = vpop.permute.xlu0 %1730
        %1732 = vrot.lane.b32.xlu0 %v1713, 120
        %v1733 = vpop.permute.xlu0 %1732
        %1734 = vrot.lane.b32.xlu0 %v1718, 120
        %v1735 = vpop.permute.xlu0 %1734
        %1736 = vrot.lane.b32.xlu0 %v1723, 120
        %v1737 = vpop.permute.xlu0 %1736
        %vm1738 = vcmask 31744
        %v1739 = vsel %vm1738, %v1708, 0
        %v1741 = vsel %vm1738, %v1713, 0
        %v1743 = vsel %vm1738, %v1718, 0
        %v1745 = vsel %vm1738, %v1723, 0
        %v1747 = vsel %vm1738, %v1731, 0
        %v1749 = vsel %vm1738, %v1733, 0
        %v1751 = vsel %vm1738, %v1735, 0
        %v1753 = vsel %vm1738, %v1737, 0
        %1755 = vmatprep.subr.mxu0 0.0
        %1756 = vmatpush1.xpose.msra.mxu0 0.0
        %1757 = vmatprep.subr.mxu0 0.0
        %1758 = vmatpush1.xpose.msra.mxu0 0.0
        %1759 = vmatprep.subr.mxu0 0.0
        %1760 = vmatpush1.xpose.msra.mxu0 0.0
        %1761 = vmatprep.subr.mxu0 0.0
        %1762 = vmatpush1.xpose.msra.mxu0 0.0
        %1763 = vmatprep.subr.mxu0 0.0
        %1764 = vmatpush1.xpose.msra.mxu0 0.0
        %1765 = vmatprep.subr.mxu0 0.0
        %1766 = vmatpush1.xpose.msra.mxu0 0.0
        %1767 = vmatprep.subr.mxu0 0.0
        %1768 = vmatpush1.xpose.msra.mxu0 0.0
        %1769 = vmatprep.subr.mxu0 0.0
        %1770 = vmatpush1.xpose.msra.mxu0 0.0
        %1771 = vmatprep.subr.mxu0 0.0
        %1772 = vmatpush1.xpose.msra.mxu0 0.0
        %1773 = vmatprep.subr.mxu0 0.0
        %1774 = vmatpush1.xpose.msra.mxu0 0.0
        %1775 = vmatprep.subr.mxu0 0.0
        %1776 = vmatpush1.xpose.msra.mxu0 0.0
        %1777 = vmatprep.subr.mxu0 0.0
        %1778 = vmatpush1.xpose.msra.mxu0 0.0
        %1779 = vmatprep.subr.mxu0 0.0
        %1780 = vmatpush1.xpose.msra.mxu0 %v1753
        %1781 = vmatprep.subr.mxu0 0.0
        %1782 = vmatpush1.xpose.msra.mxu0 %v1751
        %1783 = vmatprep.subr.mxu0 0.0
        %1784 = vmatpush1.xpose.msra.mxu0 %v1749
        %1785 = vmatprep.subr.mxu0 0.0
        %1786 = vmatpush1.xpose.msra.mxu0 %v1747
        %1787 = vmatprep.subr.mxu0 0.0
        %1788 = vmatpush2.xpose.msra.mxu0 0.0
        %1789 = vmatprep.subr.mxu0 0.0
        %1790 = vmatpush2.xpose.msra.mxu0 0.0
        %1791 = vmatprep.subr.mxu0 0.0
        %1792 = vmatpush2.xpose.msra.mxu0 0.0
        %1793 = vmatprep.subr.mxu0 0.0
        %1794 = vmatpush2.xpose.msra.mxu0 0.0
        %1795 = vmatprep.subr.mxu0 0.0
        %1796 = vmatpush2.xpose.msra.mxu0 0.0
        %1797 = vmatprep.subr.mxu0 0.0
        %1798 = vmatpush2.xpose.msra.mxu0 0.0
        %1799 = vmatprep.subr.mxu0 0.0
        %1800 = vmatpush2.xpose.msra.mxu0 0.0
        %1801 = vmatprep.subr.mxu0 0.0
        %1802 = vmatpush2.xpose.msra.mxu0 0.0
        %1803 = vmatprep.subr.mxu0 0.0
        %1804 = vmatpush2.xpose.msra.mxu0 0.0
        %1805 = vmatprep.subr.mxu0 0.0
        %1806 = vmatpush2.xpose.msra.mxu0 0.0
        %1807 = vmatprep.subr.mxu0 0.0
        %1808 = vmatpush2.xpose.msra.mxu0 0.0
        %1809 = vmatprep.subr.mxu0 0.0
        %1810 = vmatpush2.xpose.msra.mxu0 0.0
        %1811 = vmatprep.subr.mxu0 0.0
        %1812 = vmatpush2.xpose.msra.mxu0 0.0
        %1813 = vmatprep.subr.mxu0 0.0
        %1814 = vmatpush2.xpose.msra.mxu0 0.0
        %1815 = vmatprep.subr.mxu0 0.0
        %1816 = vmatpush2.xpose.msra.mxu0 0.0
        %1817 = vmatprep.subr.mxu0 0.0
        %1818 = vmatpush2.xpose.msra.mxu0 0.0
        %1819 = vmatprep.mubr.f32.mxu0 0.0
        %1820 = vmatmul.mubr.f32.gmra.mxu0 %v1739
        %v1821 = vpop.f32.mrf.mxu0
        %v1822 = vadd.f32 0.0, %v1821
        %v1823 = vpop.f32.mrf.mxu0
        %1824 = vmatprep.mubr.f32.mxu0 0.0
        %1825 = vmatmul.mubr.f32.gmra.mxu0 %v1741
        %v1826 = vpop.f32.mrf.mxu0
        %v1827 = vadd.f32 0.0, %v1826
        %v1828 = vpop.f32.mrf.mxu0
        %1829 = vmatprep.mubr.f32.mxu0 0.0
        %1830 = vmatmul.mubr.f32.gmra.mxu0 %v1743
        %v1831 = vpop.f32.mrf.mxu0
        %v1832 = vadd.f32 0.0, %v1831
        %v1833 = vpop.f32.mrf.mxu0
        %1834 = vmatprep.mubr.f32.mxu0 0.0
        %1835 = vmatmul.mubr.f32.gmra.mxu0 %v1745
        %v1836 = vpop.f32.mrf.mxu0
        %v1837 = vadd.f32 0.0, %v1836
        %v1838 = vpop.f32.mrf.mxu0
        %1839 = vdwg.mxu0
        %v1840 = vsel %vm659, %v1822, -inf
        %1841 = vmax.xlane.f32.xlu0 %v1840
        %v1842 = vpop.xlane.xlu0 %1841
        %v1843 = vsel %vm659, %v1827, -inf
        %1844 = vmax.xlane.f32.xlu0 %v1843
        %v1845 = vpop.xlane.xlu0 %1844
        %v1846 = vsel %vm659, %v1832, -inf
        %1847 = vmax.xlane.f32.xlu0 %v1846
        %v1848 = vpop.xlane.xlu0 %1847
        %v1849 = vsel %vm659, %v1837, -inf
        %1850 = vmax.xlane.f32.xlu0 %v1849
        %v1851 = vpop.xlane.xlu0 %1850
        %v1852 = vsub.f32 %v1822, %v1842
        %v1853 = vsub.f32 %v1827, %v1845
        %v1854 = vsub.f32 %v1832, %v1848
        %v1855 = vsub.f32 %v1837, %v1851
        %v1856 = vmul.f32 %v1852, 1.442695
        %v1857 = vpow.pop %v1856
        %v1858 = vmul.f32 %v1853, 1.442695
        %v1859 = vpow.pop %v1858
        %v1860 = vmul.f32 %v1854, 1.442695
        %v1861 = vpow.pop %v1860
        %v1862 = vmul.f32 %v1855, 1.442695
        %v1863 = vpow.pop %v1862
        %v1864 = vsel %vm659, %v1857, 0.0
        %1865 = vadd.xlane.f32.xlu0 %v1864
        %v1866 = vpop.xlane.xlu0 %1865
        %v1867 = vsel %vm659, %v1859, 0.0
        %1868 = vadd.xlane.f32.xlu0 %v1867
        %v1869 = vpop.xlane.xlu0 %1868
        %v1870 = vsel %vm659, %v1861, 0.0
        %1871 = vadd.xlane.f32.xlu0 %v1870
        %v1872 = vpop.xlane.xlu0 %1871
        %v1873 = vsel %vm659, %v1863, 0.0
        %1874 = vadd.xlane.f32.xlu0 %v1873
        %v1875 = vpop.xlane.xlu0 %1874
        %v1876 = vrcp.pop %v1866
        %v1877 = vrcp.pop %v1869
        %v1878 = vrcp.pop %v1872
        %v1879 = vrcp.pop %v1875
        %v1880 = vmul.f32 %v1857, %v1876
        %v1881 = vmul.f32 %v1859, %v1877
        %v1882 = vmul.f32 %v1861, %v1878
        %v1883 = vmul.f32 %v1863, %v1879
        %v1885 = vsel %vm659, %v1601, 0
        %v1888 = vsel %vm659, %v1880, 0
        %v1891 = vsel %vm659, %v1881, 0
        %v1894 = vsel %vm659, %v1882, 0
        %v1897 = vsel %vm659, %v1883, 0
        %1899 = vmatprep.subr.mxu0 0.0
        %1900 = vmatpush1.xpose.msra.mxu0 0.0
        %1901 = vmatprep.subr.mxu0 0.0
        %1902 = vmatpush1.xpose.msra.mxu0 0.0
        %1903 = vmatprep.subr.mxu0 0.0
        %1904 = vmatpush1.xpose.msra.mxu0 0.0
        %1905 = vmatprep.subr.mxu0 0.0
        %1906 = vmatpush1.xpose.msra.mxu0 0.0
        %1907 = vmatprep.subr.mxu0 0.0
        %1908 = vmatpush1.xpose.msra.mxu0 0.0
        %1909 = vmatprep.subr.mxu0 0.0
        %1910 = vmatpush1.xpose.msra.mxu0 0.0
        %1911 = vmatprep.subr.mxu0 0.0
        %1912 = vmatpush1.xpose.msra.mxu0 0.0
        %1913 = vmatprep.subr.mxu0 0.0
        %1914 = vmatpush1.xpose.msra.mxu0 0.0
        %1915 = vmatprep.subr.mxu0 0.0
        %1916 = vmatpush1.xpose.msra.mxu0 0.0
        %1917 = vmatprep.subr.mxu0 0.0
        %1918 = vmatpush1.xpose.msra.mxu0 0.0
        %1919 = vmatprep.subr.mxu0 0.0
        %1920 = vmatpush1.xpose.msra.mxu0 0.0
        %1921 = vmatprep.subr.mxu0 0.0
        %1922 = vmatpush1.xpose.msra.mxu0 0.0
        %1923 = vmatprep.subr.mxu0 0.0
        %1924 = vmatpush1.xpose.msra.mxu0 %v1897
        %1925 = vmatprep.subr.mxu0 0.0
        %1926 = vmatpush1.xpose.msra.mxu0 %v1894
        %1927 = vmatprep.subr.mxu0 0.0
        %1928 = vmatpush1.xpose.msra.mxu0 %v1891
        %1929 = vmatprep.subr.mxu0 0.0
        %1930 = vmatpush1.xpose.msra.mxu0 %v1888
        %1931 = vmatprep.subr.mxu0 0.0
        %1932 = vmatpush2.xpose.msra.mxu0 0.0
        %1933 = vmatprep.subr.mxu0 0.0
        %1934 = vmatpush2.xpose.msra.mxu0 0.0
        %1935 = vmatprep.subr.mxu0 0.0
        %1936 = vmatpush2.xpose.msra.mxu0 0.0
        %1937 = vmatprep.subr.mxu0 0.0
        %1938 = vmatpush2.xpose.msra.mxu0 0.0
        %1939 = vmatprep.subr.mxu0 0.0
        %1940 = vmatpush2.xpose.msra.mxu0 0.0
        %1941 = vmatprep.subr.mxu0 0.0
        %1942 = vmatpush2.xpose.msra.mxu0 0.0
        %1943 = vmatprep.subr.mxu0 0.0
        %1944 = vmatpush2.xpose.msra.mxu0 0.0
        %1945 = vmatprep.subr.mxu0 0.0
        %1946 = vmatpush2.xpose.msra.mxu0 0.0
        %1947 = vmatprep.subr.mxu0 0.0
        %1948 = vmatpush2.xpose.msra.mxu0 0.0
        %1949 = vmatprep.subr.mxu0 0.0
        %1950 = vmatpush2.xpose.msra.mxu0 0.0
        %1951 = vmatprep.subr.mxu0 0.0
        %1952 = vmatpush2.xpose.msra.mxu0 0.0
        %1953 = vmatprep.subr.mxu0 0.0
        %1954 = vmatpush2.xpose.msra.mxu0 0.0
        %1955 = vmatprep.subr.mxu0 0.0
        %1956 = vmatpush2.xpose.msra.mxu0 0.0
        %1957 = vmatprep.subr.mxu0 0.0
        %1958 = vmatpush2.xpose.msra.mxu0 0.0
        %1959 = vmatprep.subr.mxu0 0.0
        %1960 = vmatpush2.xpose.msra.mxu0 0.0
        %1961 = vmatprep.subr.mxu0 0.0
        %1962 = vmatpush2.xpose.msra.mxu0 0.0
        %1963 = vmatprep.mubr.f32.mxu0 0.0
        %1964 = vmatmul.mubr.f32.gmra.mxu0 %v1885
        %v1965 = vpop.f32.mrf.mxu0
        %v1966 = vadd.f32 0.0, %v1965
        %v1967 = vpop.f32.mrf.mxu0
        %1968 = vdwg.mxu0
        %1969 = vrot.lane.b32.xlu0 %v1708, 124
        %v1970 = vpop.permute.xlu0 %1969
        %1971 = vrot.lane.b32.xlu0 %v1713, 124
        %v1972 = vpop.permute.xlu0 %1971
        %1973 = vrot.lane.b32.xlu0 %v1718, 124
        %v1974 = vpop.permute.xlu0 %1973
        %1975 = vrot.lane.b32.xlu0 %v1723, 124
        %v1976 = vpop.permute.xlu0 %1975
        %1977 = vrot.lane.b32.xlu0 %v1708, 116
        %v1978 = vpop.permute.xlu0 %1977
        %1979 = vrot.lane.b32.xlu0 %v1713, 116
        %v1980 = vpop.permute.xlu0 %1979
        %1981 = vrot.lane.b32.xlu0 %v1718, 116
        %v1982 = vpop.permute.xlu0 %1981
        %1983 = vrot.lane.b32.xlu0 %v1723, 116
        %v1984 = vpop.permute.xlu0 %1983
        %v1985 = vsel %vm1738, %v1970, 0
        %v1987 = vsel %vm1738, %v1972, 0
        %v1989 = vsel %vm1738, %v1974, 0
        %v1991 = vsel %vm1738, %v1976, 0
        %v1993 = vsel %vm1738, %v1978, 0
        %v1995 = vsel %vm1738, %v1980, 0
        %v1997 = vsel %vm1738, %v1982, 0
        %v1999 = vsel %vm1738, %v1984, 0
        %2001 = vmatprep.subr.mxu0 0.0
        %2002 = vmatpush1.xpose.msra.mxu0 0.0
        %2003 = vmatprep.subr.mxu0 0.0
        %2004 = vmatpush1.xpose.msra.mxu0 0.0
        %2005 = vmatprep.subr.mxu0 0.0
        %2006 = vmatpush1.xpose.msra.mxu0 0.0
        %2007 = vmatprep.subr.mxu0 0.0
        %2008 = vmatpush1.xpose.msra.mxu0 0.0
        %2009 = vmatprep.subr.mxu0 0.0
        %2010 = vmatpush1.xpose.msra.mxu0 0.0
        %2011 = vmatprep.subr.mxu0 0.0
        %2012 = vmatpush1.xpose.msra.mxu0 0.0
        %2013 = vmatprep.subr.mxu0 0.0
        %2014 = vmatpush1.xpose.msra.mxu0 0.0
        %2015 = vmatprep.subr.mxu0 0.0
        %2016 = vmatpush1.xpose.msra.mxu0 0.0
        %2017 = vmatprep.subr.mxu0 0.0
        %2018 = vmatpush1.xpose.msra.mxu0 0.0
        %2019 = vmatprep.subr.mxu0 0.0
        %2020 = vmatpush1.xpose.msra.mxu0 0.0
        %2021 = vmatprep.subr.mxu0 0.0
        %2022 = vmatpush1.xpose.msra.mxu0 0.0
        %2023 = vmatprep.subr.mxu0 0.0
        %2024 = vmatpush1.xpose.msra.mxu0 0.0
        %2025 = vmatprep.subr.mxu0 0.0
        %2026 = vmatpush1.xpose.msra.mxu0 %v1999
        %2027 = vmatprep.subr.mxu0 0.0
        %2028 = vmatpush1.xpose.msra.mxu0 %v1997
        %2029 = vmatprep.subr.mxu0 0.0
        %2030 = vmatpush1.xpose.msra.mxu0 %v1995
        %2031 = vmatprep.subr.mxu0 0.0
        %2032 = vmatpush1.xpose.msra.mxu0 %v1993
        %2033 = vmatprep.subr.mxu0 0.0
        %2034 = vmatpush2.xpose.msra.mxu0 0.0
        %2035 = vmatprep.subr.mxu0 0.0
        %2036 = vmatpush2.xpose.msra.mxu0 0.0
        %2037 = vmatprep.subr.mxu0 0.0
        %2038 = vmatpush2.xpose.msra.mxu0 0.0
        %2039 = vmatprep.subr.mxu0 0.0
        %2040 = vmatpush2.xpose.msra.mxu0 0.0
        %2041 = vmatprep.subr.mxu0 0.0
        %2042 = vmatpush2.xpose.msra.mxu0 0.0
        %2043 = vmatprep.subr.mxu0 0.0
        %2044 = vmatpush2.xpose.msra.mxu0 0.0
        %2045 = vmatprep.subr.mxu0 0.0
        %2046 = vmatpush2.xpose.msra.mxu0 0.0
        %2047 = vmatprep.subr.mxu0 0.0
        %2048 = vmatpush2.xpose.msra.mxu0 0.0
        %2049 = vmatprep.subr.mxu0 0.0
        %2050 = vmatpush2.xpose.msra.mxu0 0.0
        %2051 = vmatprep.subr.mxu0 0.0
        %2052 = vmatpush2.xpose.msra.mxu0 0.0
        %2053 = vmatprep.subr.mxu0 0.0
        %2054 = vmatpush2.xpose.msra.mxu0 0.0
        %2055 = vmatprep.subr.mxu0 0.0
        %2056 = vmatpush2.xpose.msra.mxu0 0.0
        %2057 = vmatprep.subr.mxu0 0.0
        %2058 = vmatpush2.xpose.msra.mxu0 0.0
        %2059 = vmatprep.subr.mxu0 0.0
        %2060 = vmatpush2.xpose.msra.mxu0 0.0
        %2061 = vmatprep.subr.mxu0 0.0
        %2062 = vmatpush2.xpose.msra.mxu0 0.0
        %2063 = vmatprep.subr.mxu0 0.0
        %2064 = vmatpush2.xpose.msra.mxu0 0.0
        %2065 = vmatprep.mubr.f32.mxu0 0.0
        %2066 = vmatmul.mubr.f32.gmra.mxu0 %v1985
        %v2067 = vpop.f32.mrf.mxu0
        %v2068 = vadd.f32 0.0, %v2067
        %v2069 = vpop.f32.mrf.mxu0
        %2070 = vmatprep.mubr.f32.mxu0 0.0
        %2071 = vmatmul.mubr.f32.gmra.mxu0 %v1987
        %v2072 = vpop.f32.mrf.mxu0
        %v2073 = vadd.f32 0.0, %v2072
        %v2074 = vpop.f32.mrf.mxu0
        %2075 = vmatprep.mubr.f32.mxu0 0.0
        %2076 = vmatmul.mubr.f32.gmra.mxu0 %v1989
        %v2077 = vpop.f32.mrf.mxu0
        %v2078 = vadd.f32 0.0, %v2077
        %v2079 = vpop.f32.mrf.mxu0
        %2080 = vmatprep.mubr.f32.mxu0 0.0
        %2081 = vmatmul.mubr.f32.gmra.mxu0 %v1991
        %v2082 = vpop.f32.mrf.mxu0
        %v2083 = vadd.f32 0.0, %v2082
        %v2084 = vpop.f32.mrf.mxu0
        %2085 = vdwg.mxu0
        %v2086 = vsel %vm659, %v2068, -inf
        %2087 = vmax.xlane.f32.xlu0 %v2086
        %v2088 = vpop.xlane.xlu0 %2087
        %v2089 = vsel %vm659, %v2073, -inf
        %2090 = vmax.xlane.f32.xlu0 %v2089
        %v2091 = vpop.xlane.xlu0 %2090
        %v2092 = vsel %vm659, %v2078, -inf
        %2093 = vmax.xlane.f32.xlu0 %v2092
        %v2094 = vpop.xlane.xlu0 %2093
        %v2095 = vsel %vm659, %v2083, -inf
        %2096 = vmax.xlane.f32.xlu0 %v2095
        %v2097 = vpop.xlane.xlu0 %2096
        %v2098 = vsub.f32 %v2068, %v2088
        %v2099 = vsub.f32 %v2073, %v2091
        %v2100 = vsub.f32 %v2078, %v2094
        %v2101 = vsub.f32 %v2083, %v2097
        %v2102 = vmul.f32 %v2098, 1.442695
        %v2103 = vpow.pop %v2102
        %v2104 = vmul.f32 %v2099, 1.442695
        %v2105 = vpow.pop %v2104
        %v2106 = vmul.f32 %v2100, 1.442695
        %v2107 = vpow.pop %v2106
        %v2108 = vmul.f32 %v2101, 1.442695
        %v2109 = vpow.pop %v2108
        %v2110 = vsel %vm659, %v2103, 0.0
        %2111 = vadd.xlane.f32.xlu0 %v2110
        %v2112 = vpop.xlane.xlu0 %2111
        %v2113 = vsel %vm659, %v2105, 0.0
        %2114 = vadd.xlane.f32.xlu0 %v2113
        %v2115 = vpop.xlane.xlu0 %2114
        %v2116 = vsel %vm659, %v2107, 0.0
        %2117 = vadd.xlane.f32.xlu0 %v2116
        %v2118 = vpop.xlane.xlu0 %2117
        %v2119 = vsel %vm659, %v2109, 0.0
        %2120 = vadd.xlane.f32.xlu0 %v2119
        %v2121 = vpop.xlane.xlu0 %2120
        %v2122 = vrcp.pop %v2112
        %v2123 = vrcp.pop %v2115
        %v2124 = vrcp.pop %v2118
        %v2125 = vrcp.pop %v2121
        %v2126 = vmul.f32 %v2103, %v2122
        %v2127 = vmul.f32 %v2105, %v2123
        %v2128 = vmul.f32 %v2107, %v2124
        %v2129 = vmul.f32 %v2109, %v2125
        %v2130 = vrot.slane %v1601, 4
        %v2131 = vsel %vm659, %v2130, 0
        %v2134 = vsel %vm659, %v2126, 0
        %v2137 = vsel %vm659, %v2127, 0
        %v2140 = vsel %vm659, %v2128, 0
        %v2143 = vsel %vm659, %v2129, 0
        %2145 = vmatprep.subr.mxu0 0.0
        %2146 = vmatpush1.xpose.msra.mxu0 0.0
        %2147 = vmatprep.subr.mxu0 0.0
        %2148 = vmatpush1.xpose.msra.mxu0 0.0
        %2149 = vmatprep.subr.mxu0 0.0
        %2150 = vmatpush1.xpose.msra.mxu0 0.0
        %2151 = vmatprep.subr.mxu0 0.0
        %2152 = vmatpush1.xpose.msra.mxu0 0.0
        %2153 = vmatprep.subr.mxu0 0.0
        %2154 = vmatpush1.xpose.msra.mxu0 0.0
        %2155 = vmatprep.subr.mxu0 0.0
        %2156 = vmatpush1.xpose.msra.mxu0 0.0
        %2157 = vmatprep.subr.mxu0 0.0
        %2158 = vmatpush1.xpose.msra.mxu0 0.0
        %2159 = vmatprep.subr.mxu0 0.0
        %2160 = vmatpush1.xpose.msra.mxu0 0.0
        %2161 = vmatprep.subr.mxu0 0.0
        %2162 = vmatpush1.xpose.msra.mxu0 0.0
        %2163 = vmatprep.subr.mxu0 0.0
        %2164 = vmatpush1.xpose.msra.mxu0 0.0
        %2165 = vmatprep.subr.mxu0 0.0
        %2166 = vmatpush1.xpose.msra.mxu0 0.0
        %2167 = vmatprep.subr.mxu0 0.0
        %2168 = vmatpush1.xpose.msra.mxu0 0.0
        %2169 = vmatprep.subr.mxu0 0.0
        %2170 = vmatpush1.xpose.msra.mxu0 %v2143
        %2171 = vmatprep.subr.mxu0 0.0
        %2172 = vmatpush1.xpose.msra.mxu0 %v2140
        %2173 = vmatprep.subr.mxu0 0.0
        %2174 = vmatpush1.xpose.msra.mxu0 %v2137
        %2175 = vmatprep.subr.mxu0 0.0
        %2176 = vmatpush1.xpose.msra.mxu0 %v2134
        %2177 = vmatprep.subr.mxu0 0.0
        %2178 = vmatpush2.xpose.msra.mxu0 0.0
        %2179 = vmatprep.subr.mxu0 0.0
        %2180 = vmatpush2.xpose.msra.mxu0 0.0
        %2181 = vmatprep.subr.mxu0 0.0
        %2182 = vmatpush2.xpose.msra.mxu0 0.0
        %2183 = vmatprep.subr.mxu0 0.0
        %2184 = vmatpush2.xpose.msra.mxu0 0.0
        %2185 = vmatprep.subr.mxu0 0.0
        %2186 = vmatpush2.xpose.msra.mxu0 0.0
        %2187 = vmatprep.subr.mxu0 0.0
        %2188 = vmatpush2.xpose.msra.mxu0 0.0
        %2189 = vmatprep.subr.mxu0 0.0
        %2190 = vmatpush2.xpose.msra.mxu0 0.0
        %2191 = vmatprep.subr.mxu0 0.0
        %2192 = vmatpush2.xpose.msra.mxu0 0.0
        %2193 = vmatprep.subr.mxu0 0.0
        %2194 = vmatpush2.xpose.msra.mxu0 0.0
        %2195 = vmatprep.subr.mxu0 0.0
        %2196 = vmatpush2.xpose.msra.mxu0 0.0
        %2197 = vmatprep.subr.mxu0 0.0
        %2198 = vmatpush2.xpose.msra.mxu0 0.0
        %2199 = vmatprep.subr.mxu0 0.0
        %2200 = vmatpush2.xpose.msra.mxu0 0.0
        %2201 = vmatprep.subr.mxu0 0.0
        %2202 = vmatpush2.xpose.msra.mxu0 0.0
        %2203 = vmatprep.subr.mxu0 0.0
        %2204 = vmatpush2.xpose.msra.mxu0 0.0
        %2205 = vmatprep.subr.mxu0 0.0
        %2206 = vmatpush2.xpose.msra.mxu0 0.0
        %2207 = vmatprep.subr.mxu0 0.0
        %2208 = vmatpush2.xpose.msra.mxu0 0.0
        %2209 = vmatprep.mubr.f32.mxu0 0.0
        %2210 = vmatmul.mubr.f32.gmra.mxu0 %v2131
        %v2211 = vpop.f32.mrf.mxu0
        %v2212 = vadd.f32 0.0, %v2211
        %v2213 = vpop.f32.mrf.mxu0
        %2214 = vdwg.mxu0
        %v2216 = vrot.slane %v2212, 4
        %vm2218 = vcmask 1043456
        %v2219 = vsel %vm2218, %v1966, %v2216
        %v2220 = vld [vmem:[%s7] sm:$0xff]
        %v2221 = vld [vmem:[%s8] sm:$0xff]
        %2223 = vset.pattern.permute.xlu0 0
        %2224 = vperm.xlu0 %2223, %v2221
        %v2225 = vpop.permute.xlu0 %2224
        %v2228 = vsel %vm736, %v2220, 0
        %2230 = vmatprep.subr.mxu0 0.0
        %2231 = vmatpush1.msra.mxu0 0.0
        %2232 = vmatprep.subr.mxu0 0.0
        %2233 = vmatpush1.msra.mxu0 0.0
        %2234 = vmatprep.subr.mxu0 0.0
        %2235 = vmatpush1.msra.mxu0 0.0
        %2236 = vmatprep.subr.mxu0 0.0
        %2237 = vmatpush1.msra.mxu0 0.0
        %2238 = vmatprep.subr.mxu0 0.0
        %2239 = vmatpush1.msra.mxu0 0.0
        %2240 = vmatprep.subr.mxu0 0.0
        %2241 = vmatpush1.msra.mxu0 0.0
        %2242 = vmatprep.subr.mxu0 0.0
        %2243 = vmatpush1.msra.mxu0 0.0
        %2244 = vmatprep.subr.mxu0 0.0
        %2245 = vmatpush1.msra.mxu0 0.0
        %2246 = vmatprep.subr.mxu0 0.0
        %2247 = vmatpush1.msra.mxu0 0.0
        %2248 = vmatprep.subr.mxu0 0.0
        %2249 = vmatpush1.msra.mxu0 0.0
        %2250 = vmatprep.subr.mxu0 0.0
        %2251 = vmatpush1.msra.mxu0 0.0
        %2252 = vmatprep.subr.mxu0 0.0
        %2253 = vmatpush1.msra.mxu0 0.0
        %2254 = vmatprep.subr.mxu0 0.0
        %2255 = vmatpush1.msra.mxu0 0.0
        %2256 = vmatprep.subr.mxu0 0.0
        %2257 = vmatpush1.msra.mxu0 0.0
        %2258 = vmatprep.subr.mxu0 0.0
        %2259 = vmatpush1.msra.mxu0 0.0
        %2260 = vmatprep.subr.mxu0 0.0
        %2261 = vmatpush1.msra.mxu0 %v2219
        %2262 = vmatprep.subr.mxu0 0.0
        %2263 = vmatpush2.msra.mxu0 0.0
        %2264 = vmatprep.subr.mxu0 0.0
        %2265 = vmatpush2.msra.mxu0 0.0
        %2266 = vmatprep.subr.mxu0 0.0
        %2267 = vmatpush2.msra.mxu0 0.0
        %2268 = vmatprep.subr.mxu0 0.0
        %2269 = vmatpush2.msra.mxu0 0.0
        %2270 = vmatprep.subr.mxu0 0.0
        %2271 = vmatpush2.msra.mxu0 0.0
        %2272 = vmatprep.subr.mxu0 0.0
        %2273 = vmatpush2.msra.mxu0 0.0
        %2274 = vmatprep.subr.mxu0 0.0
        %2275 = vmatpush2.msra.mxu0 0.0
        %2276 = vmatprep.subr.mxu0 0.0
        %2277 = vmatpush2.msra.mxu0 0.0
        %2278 = vmatprep.subr.mxu0 0.0
        %2279 = vmatpush2.msra.mxu0 0.0
        %2280 = vmatprep.subr.mxu0 0.0
        %2281 = vmatpush2.msra.mxu0 0.0
        %2282 = vmatprep.subr.mxu0 0.0
        %2283 = vmatpush2.msra.mxu0 0.0
        %2284 = vmatprep.subr.mxu0 0.0
        %2285 = vmatpush2.msra.mxu0 0.0
        %2286 = vmatprep.subr.mxu0 0.0
        %2287 = vmatpush2.msra.mxu0 0.0
        %2288 = vmatprep.subr.mxu0 0.0
        %2289 = vmatpush2.msra.mxu0 0.0
        %2290 = vmatprep.subr.mxu0 0.0
        %2291 = vmatpush2.msra.mxu0 0.0
        %2292 = vmatprep.subr.mxu0 0.0
        %2293 = vmatpush2.msra.mxu0 0.0
        %2294 = vmatprep.mubr.f32.mxu0 0.0
        %2295 = vmatmul.mubr.f32.gmra.mxu0 %v2228
        %v2296 = vpop.f32.mrf.mxu0
        %v2297 = vadd.f32 %v2225, %v2296
        %v2298 = vpop.f32.mrf.mxu0
        %2299 = vdwg.mxu0
        %v2300 = vadd.f32 %v647, %v1491
        %v2301 = vadd.f32 %v2300, %v2297
        %v2302 = vld [vmem:[%s9] sm:$0x1]
        %v2303 = vld [vmem:[%s10] sm:$0x1]
        %v2304 = vsel %vm659, %v2301, 0.0
        %2305 = vadd.xlane.f32.xlu0 %v2304
        %v2306 = vpop.xlane.xlu0 %2305
        %v2307 = vrcp.pop 32.0
        %v2308 = vmul.f32 %v2306, %v2307
        %v2309 = vsub.f32 %v2301, %v2308
        %v2310 = vmul.f32 %v2309, %v2309
        %v2311 = vsel %vm659, %v2310, 0.0
        %2312 = vadd.xlane.f32.xlu0 %v2311
        %v2313 = vpop.xlane.xlu0 %2312
        %v2314 = vmul.f32 %v2313, %v2307
        %v2315 = vadd.f32 %v2314, 1e-05
        %v2316 = vrsqrt.pop %v2315
        %v2317 = vmul.f32 %v2309, %v2316
        %v2319 = vlaneseq
        %v2320 = vshrl.u32 %v2319, 7
        %v2321 = vsub.s32 0, %v2320
        %v2322 = vrot.slane %v2302, %v2321
        %v2324 = vmul.f32 %v2317, %v2322
        %v2326 = vlaneseq
        %v2327 = vshrl.u32 %v2326, 7
        %v2328 = vsub.s32 0, %v2327
        %v2329 = vrot.slane %v2303, %v2328
        %v2331 = vadd.f32 %v2324, %v2329
        %s2332 = sld [smem:[#allocation14]]
        %v2333 = vstv %s2332
        %v2334 = vmul.f32 %v2333, %v2331
        %s2335 = sld [smem:[#allocation14 + $0x1]]
        %v2336 = vstv %s2335
        %v2337 = vadd.f32 %v2334, %v2336
        %v2338 = vmax.f32 %v2337, 0.0
        %s2339 = sld [smem:[#allocation14 + $0x2]]
        %v2340 = vld [vmem:[#allocation11] sm:$0xff]
        %v2341 = vld [vmem:[#allocation11 + $0x8] sm:$0xff]
        %v2342 = vld [vmem:[#allocation11 + $0x10] sm:$0xff]
        %v2343 = vld [vmem:[#allocation11 + $0x18] sm:$0xff]
        %v2345 = vsel %vm659, %v2338, 0
        %2347 = vmatprep.subr.mxu0 0.0
        %2348 = vmatpush1.msra.mxu0 0.0
        %2349 = vmatprep.subr.mxu0 0.0
        %2350 = vmatpush1.msra.mxu0 0.0
        %2351 = vmatprep.subr.mxu0 0.0
        %2352 = vmatpush1.msra.mxu0 0.0
        %2353 = vmatprep.subr.mxu0 0.0
        %2354 = vmatpush1.msra.mxu0 0.0
        %2355 = vmatprep.subr.mxu0 0.0
        %2356 = vmatpush1.msra.mxu0 0.0
        %2357 = vmatprep.subr.mxu0 0.0
        %2358 = vmatpush1.msra.mxu0 0.0
        %2359 = vmatprep.subr.mxu0 0.0
        %2360 = vmatpush1.msra.mxu0 0.0
        %2361 = vmatprep.subr.mxu0 0.0
        %2362 = vmatpush1.msra.mxu0 0.0
        %2363 = vmatprep.subr.mxu0 0.0
        %2364 = vmatpush1.msra.mxu0 0.0
        %2365 = vmatprep.subr.mxu0 0.0
        %2366 = vmatpush1.msra.mxu0 0.0
        %2367 = vmatprep.subr.mxu0 0.0
        %2368 = vmatpush1.msra.mxu0 0.0
        %2369 = vmatprep.subr.mxu0 0.0
        %2370 = vmatpush1.msra.mxu0 0.0
        %2371 = vmatprep.subr.mxu0 0.0
        %2372 = vmatpush1.msra.mxu0 %v2343
        %2373 = vmatprep.subr.mxu0 0.0
        %2374 = vmatpush1.msra.mxu0 %v2342
        %2375 = vmatprep.subr.mxu0 0.0
        %2376 = vmatpush1.msra.mxu0 %v2341
        %2377 = vmatprep.subr.mxu0 0.0
        %2378 = vmatpush1.msra.mxu0 %v2340
        %2379 = vmatprep.subr.mxu0 0.0
        %2380 = vmatpush2.msra.mxu0 0.0
        %2381 = vmatprep.subr.mxu0 0.0
        %2382 = vmatpush2.msra.mxu0 0.0
        %2383 = vmatprep.subr.mxu0 0.0
        %2384 = vmatpush2.msra.mxu0 0.0
        %2385 = vmatprep.subr.mxu0 0.0
        %2386 = vmatpush2.msra.mxu0 0.0
        %2387 = vmatprep.subr.mxu0 0.0
        %2388 = vmatpush2.msra.mxu0 0.0
        %2389 = vmatprep.subr.mxu0 0.0
        %2390 = vmatpush2.msra.mxu0 0.0
        %2391 = vmatprep.subr.mxu0 0.0
        %2392 = vmatpush2.msra.mxu0 0.0
        %2393 = vmatprep.subr.mxu0 0.0
        %2394 = vmatpush2.msra.mxu0 0.0
        %2395 = vmatprep.subr.mxu0 0.0
        %2396 = vmatpush2.msra.mxu0 0.0
        %2397 = vmatprep.subr.mxu0 0.0
        %2398 = vmatpush2.msra.mxu0 0.0
        %2399 = vmatprep.subr.mxu0 0.0
        %2400 = vmatpush2.msra.mxu0 0.0
        %2401 = vmatprep.subr.mxu0 0.0
        %2402 = vmatpush2.msra.mxu0 0.0
        %2403 = vmatprep.subr.mxu0 0.0
        %2404 = vmatpush2.msra.mxu0 0.0
        %2405 = vmatprep.subr.mxu0 0.0
        %2406 = vmatpush2.msra.mxu0 0.0
        %2407 = vmatprep.subr.mxu0 0.0
        %2408 = vmatpush2.msra.mxu0 0.0
        %2409 = vmatprep.subr.mxu0 0.0
        %2410 = vmatpush2.msra.mxu0 0.0
        %2411 = vmatprep.mubr.f32.mxu0 0.0
        %2412 = vmatmul.mubr.f32.gmra.mxu0 %v2345
        %v2413 = vpop.f32.mrf.mxu0
        %v2414 = vadd.f32 0.0, %v2413
        %v2415 = vpop.f32.mrf.mxu0
        %2416 = vdwg.mxu0
        %s2417 = scalar_lea.vmem %s13, 8
        %v2418 = vld [vmem:[%s2417] sm:$0xff]
        %s2419 = scalar_lea.vmem [#allocation11], 32
        %v2420 = vld [vmem:[%s2419] sm:$0xff]
        %v2421 = vld [vmem:[%s2419 + $0x8] sm:$0xff]
        %v2422 = vld [vmem:[%s2419 + $0x10] sm:$0xff]
        %v2423 = vld [vmem:[%s2419 + $0x18] sm:$0xff]
        %2424 = vmatprep.subr.mxu0 0.0
        %2425 = vmatpush1.msra.mxu0 0.0
        %2426 = vmatprep.subr.mxu0 0.0
        %2427 = vmatpush1.msra.mxu0 0.0
        %2428 = vmatprep.subr.mxu0 0.0
        %2429 = vmatpush1.msra.mxu0 0.0
        %2430 = vmatprep.subr.mxu0 0.0
        %2431 = vmatpush1.msra.mxu0 0.0
        %2432 = vmatprep.subr.mxu0 0.0
        %2433 = vmatpush1.msra.mxu0 0.0
        %2434 = vmatprep.subr.mxu0 0.0
        %2435 = vmatpush1.msra.mxu0 0.0
        %2436 = vmatprep.subr.mxu0 0.0
        %2437 = vmatpush1.msra.mxu0 0.0
        %2438 = vmatprep.subr.mxu0 0.0
        %2439 = vmatpush1.msra.mxu0 0.0
        %2440 = vmatprep.subr.mxu0 0.0
        %2441 = vmatpush1.msra.mxu0 0.0
        %2442 = vmatprep.subr.mxu0 0.0
        %2443 = vmatpush1.msra.mxu0 0.0
        %2444 = vmatprep.subr.mxu0 0.0
        %2445 = vmatpush1.msra.mxu0 0.0
        %2446 = vmatprep.subr.mxu0 0.0
        %2447 = vmatpush1.msra.mxu0 0.0
        %2448 = vmatprep.subr.mxu0 0.0
        %2449 = vmatpush1.msra.mxu0 %v2423
        %2450 = vmatprep.subr.mxu0 0.0
        %2451 = vmatpush1.msra.mxu0 %v2422
        %2452 = vmatprep.subr.mxu0 0.0
        %2453 = vmatpush1.msra.mxu0 %v2421
        %2454 = vmatprep.subr.mxu0 0.0
        %2455 = vmatpush1.msra.mxu0 %v2420
        %2456 = vmatprep.subr.mxu0 0.0
        %2457 = vmatpush2.msra.mxu0 0.0
        %2458 = vmatprep.subr.mxu0 0.0
        %2459 = vmatpush2.msra.mxu0 0.0
        %2460 = vmatprep.subr.mxu0 0.0
        %2461 = vmatpush2.msra.mxu0 0.0
        %2462 = vmatprep.subr.mxu0 0.0
        %2463 = vmatpush2.msra.mxu0 0.0
        %2464 = vmatprep.subr.mxu0 0.0
        %2465 = vmatpush2.msra.mxu0 0.0
        %2466 = vmatprep.subr.mxu0 0.0
        %2467 = vmatpush2.msra.mxu0 0.0
        %2468 = vmatprep.subr.mxu0 0.0
        %2469 = vmatpush2.msra.mxu0 0.0
        %2470 = vmatprep.subr.mxu0 0.0
        %2471 = vmatpush2.msra.mxu0 0.0
        %2472 = vmatprep.subr.mxu0 0.0
        %2473 = vmatpush2.msra.mxu0 0.0
        %2474 = vmatprep.subr.mxu0 0.0
        %2475 = vmatpush2.msra.mxu0 0.0
        %2476 = vmatprep.subr.mxu0 0.0
        %2477 = vmatpush2.msra.mxu0 0.0
        %2478 = vmatprep.subr.mxu0 0.0
        %2479 = vmatpush2.msra.mxu0 0.0
        %2480 = vmatprep.subr.mxu0 0.0
        %2481 = vmatpush2.msra.mxu0 0.0
        %2482 = vmatprep.subr.mxu0 0.0
        %2483 = vmatpush2.msra.mxu0 0.0
        %2484 = vmatprep.subr.mxu0 0.0
        %2485 = vmatpush2.msra.mxu0 0.0
        %2486 = vmatprep.subr.mxu0 0.0
        %2487 = vmatpush2.msra.mxu0 0.0
        %2488 = vmatprep.mubr.f32.mxu0 0.0
        %2489 = vmatmul.mubr.f32.gmra.mxu0 %v2345
        %v2490 = vpop.f32.mrf.mxu0
        %v2491 = vadd.f32 0.0, %v2490
        %v2492 = vpop.f32.mrf.mxu0
        %2493 = vdwg.mxu0
        %s2494 = scalar_lea.vmem %s13, 16
        %v2495 = vld [vmem:[%s2494] sm:$0xff]
        %v2497 = vsel %vm736, %v2495, 0
        %2499 = vmatprep.subr.mxu0 0.0
        %2500 = vmatpush1.msra.mxu0 0.0
        %2501 = vmatprep.subr.mxu0 0.0
        %2502 = vmatpush1.msra.mxu0 0.0
        %2503 = vmatprep.subr.mxu0 0.0
        %2504 = vmatpush1.msra.mxu0 0.0
        %2505 = vmatprep.subr.mxu0 0.0
        %2506 = vmatpush1.msra.mxu0 0.0
        %2507 = vmatprep.subr.mxu0 0.0
        %2508 = vmatpush1.msra.mxu0 0.0
        %2509 = vmatprep.subr.mxu0 0.0
        %2510 = vmatpush1.msra.mxu0 0.0
        %2511 = vmatprep.subr.mxu0 0.0
        %2512 = vmatpush1.msra.mxu0 0.0
        %2513 = vmatprep.subr.mxu0 0.0
        %2514 = vmatpush1.msra.mxu0 0.0
        %2515 = vmatprep.subr.mxu0 0.0
        %2516 = vmatpush1.msra.mxu0 0.0
        %2517 = vmatprep.subr.mxu0 0.0
        %2518 = vmatpush1.msra.mxu0 0.0
        %2519 = vmatprep.subr.mxu0 0.0
        %2520 = vmatpush1.msra.mxu0 0.0
        %2521 = vmatprep.subr.mxu0 0.0
        %2522 = vmatpush1.msra.mxu0 0.0
        %2523 = vmatprep.subr.mxu0 0.0
        %2524 = vmatpush1.msra.mxu0 0.0
        %2525 = vmatprep.subr.mxu0 0.0
        %2526 = vmatpush1.msra.mxu0 0.0
        %2527 = vmatprep.subr.mxu0 0.0
        %2528 = vmatpush1.msra.mxu0 0.0
        %2529 = vmatprep.subr.mxu0 0.0
        %2530 = vmatpush1.msra.mxu0 %v2491
        %2531 = vmatprep.subr.mxu0 0.0
        %2532 = vmatpush2.msra.mxu0 0.0
        %2533 = vmatprep.subr.mxu0 0.0
        %2534 = vmatpush2.msra.mxu0 0.0
        %2535 = vmatprep.subr.mxu0 0.0
        %2536 = vmatpush2.msra.mxu0 0.0
        %2537 = vmatprep.subr.mxu0 0.0
        %2538 = vmatpush2.msra.mxu0 0.0
        %2539 = vmatprep.subr.mxu0 0.0
        %2540 = vmatpush2.msra.mxu0 0.0
        %2541 = vmatprep.subr.mxu0 0.0
        %2542 = vmatpush2.msra.mxu0 0.0
        %2543 = vmatprep.subr.mxu0 0.0
        %2544 = vmatpush2.msra.mxu0 0.0
        %2545 = vmatprep.subr.mxu0 0.0
        %2546 = vmatpush2.msra.mxu0 0.0
        %2547 = vmatprep.subr.mxu0 0.0
        %2548 = vmatpush2.msra.mxu0 0.0
        %2549 = vmatprep.subr.mxu0 0.0
        %2550 = vmatpush2.msra.mxu0 0.0
        %2551 = vmatprep.subr.mxu0 0.0
        %2552 = vmatpush2.msra.mxu0 0.0
        %2553 = vmatprep.subr.mxu0 0.0
        %2554 = vmatpush2.msra.mxu0 0.0
        %2555 = vmatprep.subr.mxu0 0.0
        %2556 = vmatpush2.msra.mxu0 0.0
        %2557 = vmatprep.subr.mxu0 0.0
        %2558 = vmatpush2.msra.mxu0 0.0
        %2559 = vmatprep.subr.mxu0 0.0
        %2560 = vmatpush2.msra.mxu0 0.0
        %2561 = vmatprep.subr.mxu0 0.0
        %2562 = vmatpush2.msra.mxu0 0.0
        %2563 = vmatprep.mubr.f32.mxu0 0.0
        %2564 = vmatmul.mubr.f32.gmra.mxu0 %v2497
        %v2565 = vpop.f32.mrf.mxu0
        %v2566 = vadd.f32 0.0, %v2565
        %v2567 = vpop.f32.mrf.mxu0
        %2568 = vdwg.mxu0
        %v2570 = vsel %vm736, %v2418, 0
        %2572 = vmatprep.subr.mxu0 0.0
        %2573 = vmatpush1.msra.mxu0 0.0
        %2574 = vmatprep.subr.mxu0 0.0
        %2575 = vmatpush1.msra.mxu0 0.0
        %2576 = vmatprep.subr.mxu0 0.0
        %2577 = vmatpush1.msra.mxu0 0.0
        %2578 = vmatprep.subr.mxu0 0.0
        %2579 = vmatpush1.msra.mxu0 0.0
        %2580 = vmatprep.subr.mxu0 0.0
        %2581 = vmatpush1.msra.mxu0 0.0
        %2582 = vmatprep.subr.mxu0 0.0
        %2583 = vmatpush1.msra.mxu0 0.0
        %2584 = vmatprep.subr.mxu0 0.0
        %2585 = vmatpush1.msra.mxu0 0.0
        %2586 = vmatprep.subr.mxu0 0.0
        %2587 = vmatpush1.msra.mxu0 0.0
        %2588 = vmatprep.subr.mxu0 0.0
        %2589 = vmatpush1.msra.mxu0 0.0
        %2590 = vmatprep.subr.mxu0 0.0
        %2591 = vmatpush1.msra.mxu0 0.0
        %2592 = vmatprep.subr.mxu0 0.0
        %2593 = vmatpush1.msra.mxu0 0.0
        %2594 = vmatprep.subr.mxu0 0.0
        %2595 = vmatpush1.msra.mxu0 0.0
        %2596 = vmatprep.subr.mxu0 0.0
        %2597 = vmatpush1.msra.mxu0 0.0
        %2598 = vmatprep.subr.mxu0 0.0
        %2599 = vmatpush1.msra.mxu0 0.0
        %2600 = vmatprep.subr.mxu0 0.0
        %2601 = vmatpush1.msra.mxu0 0.0
        %2602 = vmatprep.subr.mxu0 0.0
        %2603 = vmatpush1.msra.mxu0 %v2414
        %2604 = vmatprep.subr.mxu0 0.0
        %2605 = vmatpush2.msra.mxu0 0.0
        %2606 = vmatprep.subr.mxu0 0.0
        %2607 = vmatpush2.msra.mxu0 0.0
        %2608 = vmatprep.subr.mxu0 0.0
        %2609 = vmatpush2.msra.mxu0 0.0
        %2610 = vmatprep.subr.mxu0 0.0
        %2611 = vmatpush2.msra.mxu0 0.0
        %2612 = vmatprep.subr.mxu0 0.0
        %2613 = vmatpush2.msra.mxu0 0.0
        %2614 = vmatprep.subr.mxu0 0.0
        %2615 = vmatpush2.msra.mxu0 0.0
        %2616 = vmatprep.subr.mxu0 0.0
        %2617 = vmatpush2.msra.mxu0 0.0
        %2618 = vmatprep.subr.mxu0 0.0
        %2619 = vmatpush2.msra.mxu0 0.0
        %2620 = vmatprep.subr.mxu0 0.0
        %2621 = vmatpush2.msra.mxu0 0.0
        %2622 = vmatprep.subr.mxu0 0.0
        %2623 = vmatpush2.msra.mxu0 0.0
        %2624 = vmatprep.subr.mxu0 0.0
        %2625 = vmatpush2.msra.mxu0 0.0
        %2626 = vmatprep.subr.mxu0 0.0
        %2627 = vmatpush2.msra.mxu0 0.0
        %2628 = vmatprep.subr.mxu0 0.0
        %2629 = vmatpush2.msra.mxu0 0.0
        %2630 = vmatprep.subr.mxu0 0.0
        %2631 = vmatpush2.msra.mxu0 0.0
        %2632 = vmatprep.subr.mxu0 0.0
        %2633 = vmatpush2.msra.mxu0 0.0
        %2634 = vmatprep.subr.mxu0 0.0
        %2635 = vmatpush2.msra.mxu0 0.0
        %2636 = vmatprep.mubr.f32.mxu0 0.0
        %2637 = vmatmul.mubr.f32.gmra.mxu0 %v2570
        %v2638 = vpop.f32.mrf.mxu0
        %v2639 = vadd.f32 %v2566, %v2638
        %v2640 = vpop.f32.mrf.mxu0
        %2641 = vdwg.mxu0
        %s2642 = scalar_lea.vmem [#allocation11], 64
        %v2643 = vld [vmem:[%s2642] sm:$0xff]
        %v2644 = vld [vmem:[%s2642 + $0x8] sm:$0xff]
        %v2645 = vld [vmem:[%s2642 + $0x10] sm:$0xff]
        %v2646 = vld [vmem:[%s2642 + $0x18] sm:$0xff]
        %2647 = vmatprep.subr.mxu0 0.0
        %2648 = vmatpush1.msra.mxu0 0.0
        %2649 = vmatprep.subr.mxu0 0.0
        %2650 = vmatpush1.msra.mxu0 0.0
        %2651 = vmatprep.subr.mxu0 0.0
        %2652 = vmatpush1.msra.mxu0 0.0
        %2653 = vmatprep.subr.mxu0 0.0
        %2654 = vmatpush1.msra.mxu0 0.0
        %2655 = vmatprep.subr.mxu0 0.0
        %2656 = vmatpush1.msra.mxu0 0.0
        %2657 = vmatprep.subr.mxu0 0.0
        %2658 = vmatpush1.msra.mxu0 0.0
        %2659 = vmatprep.subr.mxu0 0.0
        %2660 = vmatpush1.msra.mxu0 0.0
        %2661 = vmatprep.subr.mxu0 0.0
        %2662 = vmatpush1.msra.mxu0 0.0
        %2663 = vmatprep.subr.mxu0 0.0
        %2664 = vmatpush1.msra.mxu0 0.0
        %2665 = vmatprep.subr.mxu0 0.0
        %2666 = vmatpush1.msra.mxu0 0.0
        %2667 = vmatprep.subr.mxu0 0.0
        %2668 = vmatpush1.msra.mxu0 0.0
        %2669 = vmatprep.subr.mxu0 0.0
        %2670 = vmatpush1.msra.mxu0 0.0
        %2671 = vmatprep.subr.mxu0 0.0
        %2672 = vmatpush1.msra.mxu0 %v2646
        %2673 = vmatprep.subr.mxu0 0.0
        %2674 = vmatpush1.msra.mxu0 %v2645
        %2675 = vmatprep.subr.mxu0 0.0
        %2676 = vmatpush1.msra.mxu0 %v2644
        %2677 = vmatprep.subr.mxu0 0.0
        %2678 = vmatpush1.msra.mxu0 %v2643
        %2679 = vmatprep.subr.mxu0 0.0
        %2680 = vmatpush2.msra.mxu0 0.0
        %2681 = vmatprep.subr.mxu0 0.0
        %2682 = vmatpush2.msra.mxu0 0.0
        %2683 = vmatprep.subr.mxu0 0.0
        %2684 = vmatpush2.msra.mxu0 0.0
        %2685 = vmatprep.subr.mxu0 0.0
        %2686 = vmatpush2.msra.mxu0 0.0
        %2687 = vmatprep.subr.mxu0 0.0
        %2688 = vmatpush2.msra.mxu0 0.0
        %2689 = vmatprep.subr.mxu0 0.0
        %2690 = vmatpush2.msra.mxu0 0.0
        %2691 = vmatprep.subr.mxu0 0.0
        %2692 = vmatpush2.msra.mxu0 0.0
        %2693 = vmatprep.subr.mxu0 0.0
        %2694 = vmatpush2.msra.mxu0 0.0
        %2695 = vmatprep.subr.mxu0 0.0
        %2696 = vmatpush2.msra.mxu0 0.0
        %2697 = vmatprep.subr.mxu0 0.0
        %2698 = vmatpush2.msra.mxu0 0.0
        %2699 = vmatprep.subr.mxu0 0.0
        %2700 = vmatpush2.msra.mxu0 0.0
        %2701 = vmatprep.subr.mxu0 0.0
        %2702 = vmatpush2.msra.mxu0 0.0
        %2703 = vmatprep.subr.mxu0 0.0
        %2704 = vmatpush2.msra.mxu0 0.0
        %2705 = vmatprep.subr.mxu0 0.0
        %2706 = vmatpush2.msra.mxu0 0.0
        %2707 = vmatprep.subr.mxu0 0.0
        %2708 = vmatpush2.msra.mxu0 0.0
        %2709 = vmatprep.subr.mxu0 0.0
        %2710 = vmatpush2.msra.mxu0 0.0
        %2711 = vmatprep.mubr.f32.mxu0 0.0
        %2712 = vmatmul.mubr.f32.gmra.mxu0 %v2345
        %v2713 = vpop.f32.mrf.mxu0
        %v2714 = vadd.f32 0.0, %v2713
        %v2715 = vpop.f32.mrf.mxu0
        %2716 = vdwg.mxu0
        %s2717 = scalar_lea.vmem %s13, 24
        %v2718 = vld [vmem:[%s2717] sm:$0xff]
        %v2720 = vsel %vm736, %v2718, 0
        %2722 = vmatprep.subr.mxu0 0.0
        %2723 = vmatpush1.msra.mxu0 0.0
        %2724 = vmatprep.subr.mxu0 0.0
        %2725 = vmatpush1.msra.mxu0 0.0
        %2726 = vmatprep.subr.mxu0 0.0
        %2727 = vmatpush1.msra.mxu0 0.0
        %2728 = vmatprep.subr.mxu0 0.0
        %2729 = vmatpush1.msra.mxu0 0.0
        %2730 = vmatprep.subr.mxu0 0.0
        %2731 = vmatpush1.msra.mxu0 0.0
        %2732 = vmatprep.subr.mxu0 0.0
        %2733 = vmatpush1.msra.mxu0 0.0
        %2734 = vmatprep.subr.mxu0 0.0
        %2735 = vmatpush1.msra.mxu0 0.0
        %2736 = vmatprep.subr.mxu0 0.0
        %2737 = vmatpush1.msra.mxu0 0.0
        %2738 = vmatprep.subr.mxu0 0.0
        %2739 = vmatpush1.msra.mxu0 0.0
        %2740 = vmatprep.subr.mxu0 0.0
        %2741 = vmatpush1.msra.mxu0 0.0
        %2742 = vmatprep.subr.mxu0 0.0
        %2743 = vmatpush1.msra.mxu0 0.0
        %2744 = vmatprep.subr.mxu0 0.0
        %2745 = vmatpush1.msra.mxu0 0.0
        %2746 = vmatprep.subr.mxu0 0.0
        %2747 = vmatpush1.msra.mxu0 0.0
        %2748 = vmatprep.subr.mxu0 0.0
        %2749 = vmatpush1.msra.mxu0 0.0
        %2750 = vmatprep.subr.mxu0 0.0
        %2751 = vmatpush1.msra.mxu0 0.0
        %2752 = vmatprep.subr.mxu0 0.0
        %2753 = vmatpush1.msra.mxu0 %v2714
        %2754 = vmatprep.subr.mxu0 0.0
        %2755 = vmatpush2.msra.mxu0 0.0
        %2756 = vmatprep.subr.mxu0 0.0
        %2757 = vmatpush2.msra.mxu0 0.0
        %2758 = vmatprep.subr.mxu0 0.0
        %2759 = vmatpush2.msra.mxu0 0.0
        %2760 = vmatprep.subr.mxu0 0.0
        %2761 = vmatpush2.msra.mxu0 0.0
        %2762 = vmatprep.subr.mxu0 0.0
        %2763 = vmatpush2.msra.mxu0 0.0
        %2764 = vmatprep.subr.mxu0 0.0
        %2765 = vmatpush2.msra.mxu0 0.0
        %2766 = vmatprep.subr.mxu0 0.0
        %2767 = vmatpush2.msra.mxu0 0.0
        %2768 = vmatprep.subr.mxu0 0.0
        %2769 = vmatpush2.msra.mxu0 0.0
        %2770 = vmatprep.subr.mxu0 0.0
        %2771 = vmatpush2.msra.mxu0 0.0
        %2772 = vmatprep.subr.mxu0 0.0
        %2773 = vmatpush2.msra.mxu0 0.0
        %2774 = vmatprep.subr.mxu0 0.0
        %2775 = vmatpush2.msra.mxu0 0.0
        %2776 = vmatprep.subr.mxu0 0.0
        %2777 = vmatpush2.msra.mxu0 0.0
        %2778 = vmatprep.subr.mxu0 0.0
        %2779 = vmatpush2.msra.mxu0 0.0
        %2780 = vmatprep.subr.mxu0 0.0
        %2781 = vmatpush2.msra.mxu0 0.0
        %2782 = vmatprep.subr.mxu0 0.0
        %2783 = vmatpush2.msra.mxu0 0.0
        %2784 = vmatprep.subr.mxu0 0.0
        %2785 = vmatpush2.msra.mxu0 0.0
        %2786 = vmatprep.mubr.f32.mxu0 0.0
        %2787 = vmatmul.mubr.f32.gmra.mxu0 %v2720
        %v2788 = vpop.f32.mrf.mxu0
        %v2789 = vadd.f32 0.0, %v2788
        %v2790 = vpop.f32.mrf.mxu0
        %2791 = vdwg.mxu0
        %v2792 = vadd.f32 %v2639, %v2789
        %v2793 = vstv %s2339
        %v2794 = vadd.f32 %v2792, %v2793
        %v2795 = vmax.f32 %v2794, 0.0
        %s2796 = sld [smem:[#allocation14 + $0x3]]
        %v2797 = vld [vmem:[#allocation12] sm:$0xff]
        %v2798 = vld [vmem:[#allocation12 + $0x8] sm:$0xff]
        %v2799 = vld [vmem:[#allocation12 + $0x10] sm:$0xff]
        %v2800 = vld [vmem:[#allocation12 + $0x18] sm:$0xff]
        %v2802 = vsel %vm659, %v2795, 0
        %2804 = vmatprep.subr.mxu0 0.0
        %2805 = vmatpush1.msra.mxu0 0.0
        %2806 = vmatprep.subr.mxu0 0.0
        %2807 = vmatpush1.msra.mxu0 0.0
        %2808 = vmatprep.subr.mxu0 0.0
        %2809 = vmatpush1.msra.mxu0 0.0
        %2810 = vmatprep.subr.mxu0 0.0
        %2811 = vmatpush1.msra.mxu0 0.0
        %2812 = vmatprep.subr.mxu0 0.0
        %2813 = vmatpush1.msra.mxu0 0.0
        %2814 = vmatprep.subr.mxu0 0.0
        %2815 = vmatpush1.msra.mxu0 0.0
        %2816 = vmatprep.subr.mxu0 0.0
        %2817 = vmatpush1.msra.mxu0 0.0
        %2818 = vmatprep.subr.mxu0 0.0
        %2819 = vmatpush1.msra.mxu0 0.0
        %2820 = vmatprep.subr.mxu0 0.0
        %2821 = vmatpush1.msra.mxu0 0.0
        %2822 = vmatprep.subr.mxu0 0.0
        %2823 = vmatpush1.msra.mxu0 0.0
        %2824 = vmatprep.subr.mxu0 0.0
        %2825 = vmatpush1.msra.mxu0 0.0
        %2826 = vmatprep.subr.mxu0 0.0
        %2827 = vmatpush1.msra.mxu0 0.0
        %2828 = vmatprep.subr.mxu0 0.0
        %2829 = vmatpush1.msra.mxu0 %v2800
        %2830 = vmatprep.subr.mxu0 0.0
        %2831 = vmatpush1.msra.mxu0 %v2799
        %2832 = vmatprep.subr.mxu0 0.0
        %2833 = vmatpush1.msra.mxu0 %v2798
        %2834 = vmatprep.subr.mxu0 0.0
        %2835 = vmatpush1.msra.mxu0 %v2797
        %2836 = vmatprep.subr.mxu0 0.0
        %2837 = vmatpush2.msra.mxu0 0.0
        %2838 = vmatprep.subr.mxu0 0.0
        %2839 = vmatpush2.msra.mxu0 0.0
        %2840 = vmatprep.subr.mxu0 0.0
        %2841 = vmatpush2.msra.mxu0 0.0
        %2842 = vmatprep.subr.mxu0 0.0
        %2843 = vmatpush2.msra.mxu0 0.0
        %2844 = vmatprep.subr.mxu0 0.0
        %2845 = vmatpush2.msra.mxu0 0.0
        %2846 = vmatprep.subr.mxu0 0.0
        %2847 = vmatpush2.msra.mxu0 0.0
        %2848 = vmatprep.subr.mxu0 0.0
        %2849 = vmatpush2.msra.mxu0 0.0
        %2850 = vmatprep.subr.mxu0 0.0
        %2851 = vmatpush2.msra.mxu0 0.0
        %2852 = vmatprep.subr.mxu0 0.0
        %2853 = vmatpush2.msra.mxu0 0.0
        %2854 = vmatprep.subr.mxu0 0.0
        %2855 = vmatpush2.msra.mxu0 0.0
        %2856 = vmatprep.subr.mxu0 0.0
        %2857 = vmatpush2.msra.mxu0 0.0
        %2858 = vmatprep.subr.mxu0 0.0
        %2859 = vmatpush2.msra.mxu0 0.0
        %2860 = vmatprep.subr.mxu0 0.0
        %2861 = vmatpush2.msra.mxu0 0.0
        %2862 = vmatprep.subr.mxu0 0.0
        %2863 = vmatpush2.msra.mxu0 0.0
        %2864 = vmatprep.subr.mxu0 0.0
        %2865 = vmatpush2.msra.mxu0 0.0
        %2866 = vmatprep.subr.mxu0 0.0
        %2867 = vmatpush2.msra.mxu0 0.0
        %2868 = vmatprep.mubr.f32.mxu0 0.0
        %2869 = vmatmul.mubr.f32.gmra.mxu0 %v2802
        %v2870 = vpop.f32.mrf.mxu0
        %v2871 = vadd.f32 0.0, %v2870
        %v2872 = vpop.f32.mrf.mxu0
        %2873 = vdwg.mxu0
        %v2874 = vld [vmem:[%s13] sm:$0xff]
        %s2875 = scalar_lea.vmem [#allocation12], 32
        %v2876 = vld [vmem:[%s2875] sm:$0xff]
        %v2877 = vld [vmem:[%s2875 + $0x8] sm:$0xff]
        %v2878 = vld [vmem:[%s2875 + $0x10] sm:$0xff]
        %v2879 = vld [vmem:[%s2875 + $0x18] sm:$0xff]
        %2880 = vmatprep.subr.mxu0 0.0
        %2881 = vmatpush1.msra.mxu0 0.0
        %2882 = vmatprep.subr.mxu0 0.0
        %2883 = vmatpush1.msra.mxu0 0.0
        %2884 = vmatprep.subr.mxu0 0.0
        %2885 = vmatpush1.msra.mxu0 0.0
        %2886 = vmatprep.subr.mxu0 0.0
        %2887 = vmatpush1.msra.mxu0 0.0
        %2888 = vmatprep.subr.mxu0 0.0
        %2889 = vmatpush1.msra.mxu0 0.0
        %2890 = vmatprep.subr.mxu0 0.0
        %2891 = vmatpush1.msra.mxu0 0.0
        %2892 = vmatprep.subr.mxu0 0.0
        %2893 = vmatpush1.msra.mxu0 0.0
        %2894 = vmatprep.subr.mxu0 0.0
        %2895 = vmatpush1.msra.mxu0 0.0
        %2896 = vmatprep.subr.mxu0 0.0
        %2897 = vmatpush1.msra.mxu0 0.0
        %2898 = vmatprep.subr.mxu0 0.0
        %2899 = vmatpush1.msra.mxu0 0.0
        %2900 = vmatprep.subr.mxu0 0.0
        %2901 = vmatpush1.msra.mxu0 0.0
        %2902 = vmatprep.subr.mxu0 0.0
        %2903 = vmatpush1.msra.mxu0 0.0
        %2904 = vmatprep.subr.mxu0 0.0
        %2905 = vmatpush1.msra.mxu0 %v2879
        %2906 = vmatprep.subr.mxu0 0.0
        %2907 = vmatpush1.msra.mxu0 %v2878
        %2908 = vmatprep.subr.mxu0 0.0
        %2909 = vmatpush1.msra.mxu0 %v2877
        %2910 = vmatprep.subr.mxu0 0.0
        %2911 = vmatpush1.msra.mxu0 %v2876
        %2912 = vmatprep.subr.mxu0 0.0
        %2913 = vmatpush2.msra.mxu0 0.0
        %2914 = vmatprep.subr.mxu0 0.0
        %2915 = vmatpush2.msra.mxu0 0.0
        %2916 = vmatprep.subr.mxu0 0.0
        %2917 = vmatpush2.msra.mxu0 0.0
        %2918 = vmatprep.subr.mxu0 0.0
        %2919 = vmatpush2.msra.mxu0 0.0
        %2920 = vmatprep.subr.mxu0 0.0
        %2921 = vmatpush2.msra.mxu0 0.0
        %2922 = vmatprep.subr.mxu0 0.0
        %2923 = vmatpush2.msra.mxu0 0.0
        %2924 = vmatprep.subr.mxu0 0.0
        %2925 = vmatpush2.msra.mxu0 0.0
        %2926 = vmatprep.subr.mxu0 0.0
        %2927 = vmatpush2.msra.mxu0 0.0
        %2928 = vmatprep.subr.mxu0 0.0
        %2929 = vmatpush2.msra.mxu0 0.0
        %2930 = vmatprep.subr.mxu0 0.0
        %2931 = vmatpush2.msra.mxu0 0.0
        %2932 = vmatprep.subr.mxu0 0.0
        %2933 = vmatpush2.msra.mxu0 0.0
        %2934 = vmatprep.subr.mxu0 0.0
        %2935 = vmatpush2.msra.mxu0 0.0
        %2936 = vmatprep.subr.mxu0 0.0
        %2937 = vmatpush2.msra.mxu0 0.0
        %2938 = vmatprep.subr.mxu0 0.0
        %2939 = vmatpush2.msra.mxu0 0.0
        %2940 = vmatprep.subr.mxu0 0.0
        %2941 = vmatpush2.msra.mxu0 0.0
        %2942 = vmatprep.subr.mxu0 0.0
        %2943 = vmatpush2.msra.mxu0 0.0
        %2944 = vmatprep.mubr.f32.mxu0 0.0
        %2945 = vmatmul.mubr.f32.gmra.mxu0 %v2802
        %v2946 = vpop.f32.mrf.mxu0
        %v2947 = vadd.f32 0.0, %v2946
        %v2948 = vpop.f32.mrf.mxu0
        %2949 = vdwg.mxu0
        %2950 = vmatprep.subr.mxu0 0.0
        %2951 = vmatpush1.msra.mxu0 0.0
        %2952 = vmatprep.subr.mxu0 0.0
        %2953 = vmatpush1.msra.mxu0 0.0
        %2954 = vmatprep.subr.mxu0 0.0
        %2955 = vmatpush1.msra.mxu0 0.0
        %2956 = vmatprep.subr.mxu0 0.0
        %2957 = vmatpush1.msra.mxu0 0.0
        %2958 = vmatprep.subr.mxu0 0.0
        %2959 = vmatpush1.msra.mxu0 0.0
        %2960 = vmatprep.subr.mxu0 0.0
        %2961 = vmatpush1.msra.mxu0 0.0
        %2962 = vmatprep.subr.mxu0 0.0
        %2963 = vmatpush1.msra.mxu0 0.0
        %2964 = vmatprep.subr.mxu0 0.0
        %2965 = vmatpush1.msra.mxu0 0.0
        %2966 = vmatprep.subr.mxu0 0.0
        %2967 = vmatpush1.msra.mxu0 0.0
        %2968 = vmatprep.subr.mxu0 0.0
        %2969 = vmatpush1.msra.mxu0 0.0
        %2970 = vmatprep.subr.mxu0 0.0
        %2971 = vmatpush1.msra.mxu0 0.0
        %2972 = vmatprep.subr.mxu0 0.0
        %2973 = vmatpush1.msra.mxu0 0.0
        %2974 = vmatprep.subr.mxu0 0.0
        %2975 = vmatpush1.msra.mxu0 0.0
        %2976 = vmatprep.subr.mxu0 0.0
        %2977 = vmatpush1.msra.mxu0 0.0
        %2978 = vmatprep.subr.mxu0 0.0
        %2979 = vmatpush1.msra.mxu0 0.0
        %2980 = vmatprep.subr.mxu0 0.0
        %2981 = vmatpush1.msra.mxu0 %v2947
        %2982 = vmatprep.subr.mxu0 0.0
        %2983 = vmatpush2.msra.mxu0 0.0
        %2984 = vmatprep.subr.mxu0 0.0
        %2985 = vmatpush2.msra.mxu0 0.0
        %2986 = vmatprep.subr.mxu0 0.0
        %2987 = vmatpush2.msra.mxu0 0.0
        %2988 = vmatprep.subr.mxu0 0.0
        %2989 = vmatpush2.msra.mxu0 0.0
        %2990 = vmatprep.subr.mxu0 0.0
        %2991 = vmatpush2.msra.mxu0 0.0
        %2992 = vmatprep.subr.mxu0 0.0
        %2993 = vmatpush2.msra.mxu0 0.0
        %2994 = vmatprep.subr.mxu0 0.0
        %2995 = vmatpush2.msra.mxu0 0.0
        %2996 = vmatprep.subr.mxu0 0.0
        %2997 = vmatpush2.msra.mxu0 0.0
        %2998 = vmatprep.subr.mxu0 0.0
        %2999 = vmatpush2.msra.mxu0 0.0
        %3000 = vmatprep.subr.mxu0 0.0
        %3001 = vmatpush2.msra.mxu0 0.0
        %3002 = vmatprep.subr.mxu0 0.0
        %3003 = vmatpush2.msra.mxu0 0.0
        %3004 = vmatprep.subr.mxu0 0.0
        %3005 = vmatpush2.msra.mxu0 0.0
        %3006 = vmatprep.subr.mxu0 0.0
        %3007 = vmatpush2.msra.mxu0 0.0
        %3008 = vmatprep.subr.mxu0 0.0
        %3009 = vmatpush2.msra.mxu0 0.0
        %3010 = vmatprep.subr.mxu0 0.0
        %3011 = vmatpush2.msra.mxu0 0.0
        %3012 = vmatprep.subr.mxu0 0.0
        %3013 = vmatpush2.msra.mxu0 0.0
        %3014 = vmatprep.mubr.f32.mxu0 0.0
        %3015 = vmatmul.mubr.f32.gmra.mxu0 %v2570
        %v3016 = vpop.f32.mrf.mxu0
        %v3017 = vadd.f32 0.0, %v3016
        %v3018 = vpop.f32.mrf.mxu0
        %3019 = vdwg.mxu0
        %v3021 = vsel %vm736, %v2874, 0
        %3023 = vmatprep.subr.mxu0 0.0
        %3024 = vmatpush1.msra.mxu0 0.0
        %3025 = vmatprep.subr.mxu0 0.0
        %3026 = vmatpush1.msra.mxu0 0.0
        %3027 = vmatprep.subr.mxu0 0.0
        %3028 = vmatpush1.msra.mxu0 0.0
        %3029 = vmatprep.subr.mxu0 0.0
        %3030 = vmatpush1.msra.mxu0 0.0
        %3031 = vmatprep.subr.mxu0 0.0
        %3032 = vmatpush1.msra.mxu0 0.0
        %3033 = vmatprep.subr.mxu0 0.0
        %3034 = vmatpush1.msra.mxu0 0.0
        %3035 = vmatprep.subr.mxu0 0.0
        %3036 = vmatpush1.msra.mxu0 0.0
        %3037 = vmatprep.subr.mxu0 0.0
        %3038 = vmatpush1.msra.mxu0 0.0
        %3039 = vmatprep.subr.mxu0 0.0
        %3040 = vmatpush1.msra.mxu0 0.0
        %3041 = vmatprep.subr.mxu0 0.0
        %3042 = vmatpush1.msra.mxu0 0.0
        %3043 = vmatprep.subr.mxu0 0.0
        %3044 = vmatpush1.msra.mxu0 0.0
        %3045 = vmatprep.subr.mxu0 0.0
        %3046 = vmatpush1.msra.mxu0 0.0
        %3047 = vmatprep.subr.mxu0 0.0
        %3048 = vmatpush1.msra.mxu0 0.0
        %3049 = vmatprep.subr.mxu0 0.0
        %3050 = vmatpush1.msra.mxu0 0.0
        %3051 = vmatprep.subr.mxu0 0.0
        %3052 = vmatpush1.msra.mxu0 0.0
        %3053 = vmatprep.subr.mxu0 0.0
        %3054 = vmatpush1.msra.mxu0 %v2871
        %3055 = vmatprep.subr.mxu0 0.0
        %3056 = vmatpush2.msra.mxu0 0.0
        %3057 = vmatprep.subr.mxu0 0.0
        %3058 = vmatpush2.msra.mxu0 0.0
        %3059 = vmatprep.subr.mxu0 0.0
        %3060 = vmatpush2.msra.mxu0 0.0
        %3061 = vmatprep.subr.mxu0 0.0
        %3062 = vmatpush2.msra.mxu0 0.0
        %3063 = vmatprep.subr.mxu0 0.0
        %3064 = vmatpush2.msra.mxu0 0.0
        %3065 = vmatprep.subr.mxu0 0.0
        %3066 = vmatpush2.msra.mxu0 0.0
        %3067 = vmatprep.subr.mxu0 0.0
        %3068 = vmatpush2.msra.mxu0 0.0
        %3069 = vmatprep.subr.mxu0 0.0
        %3070 = vmatpush2.msra.mxu0 0.0
        %3071 = vmatprep.subr.mxu0 0.0
        %3072 = vmatpush2.msra.mxu0 0.0
        %3073 = vmatprep.subr.mxu0 0.0
        %3074 = vmatpush2.msra.mxu0 0.0
        %3075 = vmatprep.subr.mxu0 0.0
        %3076 = vmatpush2.msra.mxu0 0.0
        %3077 = vmatprep.subr.mxu0 0.0
        %3078 = vmatpush2.msra.mxu0 0.0
        %3079 = vmatprep.subr.mxu0 0.0
        %3080 = vmatpush2.msra.mxu0 0.0
        %3081 = vmatprep.subr.mxu0 0.0
        %3082 = vmatpush2.msra.mxu0 0.0
        %3083 = vmatprep.subr.mxu0 0.0
        %3084 = vmatpush2.msra.mxu0 0.0
        %3085 = vmatprep.subr.mxu0 0.0
        %3086 = vmatpush2.msra.mxu0 0.0
        %3087 = vmatprep.mubr.f32.mxu0 0.0
        %3088 = vmatmul.mubr.f32.gmra.mxu0 %v3021
        %v3089 = vpop.f32.mrf.mxu0
        %v3090 = vadd.f32 %v3017, %v3089
        %v3091 = vpop.f32.mrf.mxu0
        %3092 = vdwg.mxu0
        %s3093 = scalar_lea.vmem [#allocation12], 64
        %v3094 = vld [vmem:[%s3093] sm:$0xff]
        %v3095 = vld [vmem:[%s3093 + $0x8] sm:$0xff]
        %v3096 = vld [vmem:[%s3093 + $0x10] sm:$0xff]
        %v3097 = vld [vmem:[%s3093 + $0x18] sm:$0xff]
        %3098 = vmatprep.subr.mxu0 0.0
        %3099 = vmatpush1.msra.mxu0 0.0
        %3100 = vmatprep.subr.mxu0 0.0
        %3101 = vmatpush1.msra.mxu0 0.0
        %3102 = vmatprep.subr.mxu0 0.0
        %3103 = vmatpush1.msra.mxu0 0.0
        %3104 = vmatprep.subr.mxu0 0.0
        %3105 = vmatpush1.msra.mxu0 0.0
        %3106 = vmatprep.subr.mxu0 0.0
        %3107 = vmatpush1.msra.mxu0 0.0
        %3108 = vmatprep.subr.mxu0 0.0
        %3109 = vmatpush1.msra.mxu0 0.0
        %3110 = vmatprep.subr.mxu0 0.0
        %3111 = vmatpush1.msra.mxu0 0.0
        %3112 = vmatprep.subr.mxu0 0.0
        %3113 = vmatpush1.msra.mxu0 0.0
        %3114 = vmatprep.subr.mxu0 0.0
        %3115 = vmatpush1.msra.mxu0 0.0
        %3116 = vmatprep.subr.mxu0 0.0
        %3117 = vmatpush1.msra.mxu0 0.0
        %3118 = vmatprep.subr.mxu0 0.0
        %3119 = vmatpush1.msra.mxu0 0.0
        %3120 = vmatprep.subr.mxu0 0.0
        %3121 = vmatpush1.msra.mxu0 0.0
        %3122 = vmatprep.subr.mxu0 0.0
        %3123 = vmatpush1.msra.mxu0 %v3097
        %3124 = vmatprep.subr.mxu0 0.0
        %3125 = vmatpush1.msra.mxu0 %v3096
        %3126 = vmatprep.subr.mxu0 0.0
        %3127 = vmatpush1.msra.mxu0 %v3095
        %3128 = vmatprep.subr.mxu0 0.0
        %3129 = vmatpush1.msra.mxu0 %v3094
        %3130 = vmatprep.subr.mxu0 0.0
        %3131 = vmatpush2.msra.mxu0 0.0
        %3132 = vmatprep.subr.mxu0 0.0
        %3133 = vmatpush2.msra.mxu0 0.0
        %3134 = vmatprep.subr.mxu0 0.0
        %3135 = vmatpush2.msra.mxu0 0.0
        %3136 = vmatprep.subr.mxu0 0.0
        %3137 = vmatpush2.msra.mxu0 0.0
        %3138 = vmatprep.subr.mxu0 0.0
        %3139 = vmatpush2.msra.mxu0 0.0
        %3140 = vmatprep.subr.mxu0 0.0
        %3141 = vmatpush2.msra.mxu0 0.0
        %3142 = vmatprep.subr.mxu0 0.0
        %3143 = vmatpush2.msra.mxu0 0.0
        %3144 = vmatprep.subr.mxu0 0.0
        %3145 = vmatpush2.msra.mxu0 0.0
        %3146 = vmatprep.subr.mxu0 0.0
        %3147 = vmatpush2.msra.mxu0 0.0
        %3148 = vmatprep.subr.mxu0 0.0
        %3149 = vmatpush2.msra.mxu0 0.0
        %3150 = vmatprep.subr.mxu0 0.0
        %3151 = vmatpush2.msra.mxu0 0.0
        %3152 = vmatprep.subr.mxu0 0.0
        %3153 = vmatpush2.msra.mxu0 0.0
        %3154 = vmatprep.subr.mxu0 0.0
        %3155 = vmatpush2.msra.mxu0 0.0
        %3156 = vmatprep.subr.mxu0 0.0
        %3157 = vmatpush2.msra.mxu0 0.0
        %3158 = vmatprep.subr.mxu0 0.0
        %3159 = vmatpush2.msra.mxu0 0.0
        %3160 = vmatprep.subr.mxu0 0.0
        %3161 = vmatpush2.msra.mxu0 0.0
        %3162 = vmatprep.mubr.f32.mxu0 0.0
        %3163 = vmatmul.mubr.f32.gmra.mxu0 %v2802
        %v3164 = vpop.f32.mrf.mxu0
        %v3165 = vadd.f32 0.0, %v3164
        %v3166 = vpop.f32.mrf.mxu0
        %3167 = vdwg.mxu0
        %3168 = vmatprep.subr.mxu0 0.0
        %3169 = vmatpush1.msra.mxu0 0.0
        %3170 = vmatprep.subr.mxu0 0.0
        %3171 = vmatpush1.msra.mxu0 0.0
        %3172 = vmatprep.subr.mxu0 0.0
        %3173 = vmatpush1.msra.mxu0 0.0
        %3174 = vmatprep.subr.mxu0 0.0
        %3175 = vmatpush1.msra.mxu0 0.0
        %3176 = vmatprep.subr.mxu0 0.0
        %3177 = vmatpush1.msra.mxu0 0.0
        %3178 = vmatprep.subr.mxu0 0.0
        %3179 = vmatpush1.msra.mxu0 0.0
        %3180 = vmatprep.subr.mxu0 0.0
        %3181 = vmatpush1.msra.mxu0 0.0
        %3182 = vmatprep.subr.mxu0 0.0
        %3183 = vmatpush1.msra.mxu0 0.0
        %3184 = vmatprep.subr.mxu0 0.0
        %3185 = vmatpush1.msra.mxu0 0.0
        %3186 = vmatprep.subr.mxu0 0.0
        %3187 = vmatpush1.msra.mxu0 0.0
        %3188 = vmatprep.subr.mxu0 0.0
        %3189 = vmatpush1.msra.mxu0 0.0
        %3190 = vmatprep.subr.mxu0 0.0
        %3191 = vmatpush1.msra.mxu0 0.0
        %3192 = vmatprep.subr.mxu0 0.0
        %3193 = vmatpush1.msra.mxu0 0.0
        %3194 = vmatprep.subr.mxu0 0.0
        %3195 = vmatpush1.msra.mxu0 0.0
        %3196 = vmatprep.subr.mxu0 0.0
        %3197 = vmatpush1.msra.mxu0 0.0
        %3198 = vmatprep.subr.mxu0 0.0
        %3199 = vmatpush1.msra.mxu0 %v3165
        %3200 = vmatprep.subr.mxu0 0.0
        %3201 = vmatpush2.msra.mxu0 0.0
        %3202 = vmatprep.subr.mxu0 0.0
        %3203 = vmatpush2.msra.mxu0 0.0
        %3204 = vmatprep.subr.mxu0 0.0
        %3205 = vmatpush2.msra.mxu0 0.0
        %3206 = vmatprep.subr.mxu0 0.0
        %3207 = vmatpush2.msra.mxu0 0.0
        %3208 = vmatprep.subr.mxu0 0.0
        %3209 = vmatpush2.msra.mxu0 0.0
        %3210 = vmatprep.subr.mxu0 0.0
        %3211 = vmatpush2.msra.mxu0 0.0
        %3212 = vmatprep.subr.mxu0 0.0
        %3213 = vmatpush2.msra.mxu0 0.0
        %3214 = vmatprep.subr.mxu0 0.0
        %3215 = vmatpush2.msra.mxu0 0.0
        %3216 = vmatprep.subr.mxu0 0.0
        %3217 = vmatpush2.msra.mxu0 0.0
        %3218 = vmatprep.subr.mxu0 0.0
        %3219 = vmatpush2.msra.mxu0 0.0
        %3220 = vmatprep.subr.mxu0 0.0
        %3221 = vmatpush2.msra.mxu0 0.0
        %3222 = vmatprep.subr.mxu0 0.0
        %3223 = vmatpush2.msra.mxu0 0.0
        %3224 = vmatprep.subr.mxu0 0.0
        %3225 = vmatpush2.msra.mxu0 0.0
        %3226 = vmatprep.subr.mxu0 0.0
        %3227 = vmatpush2.msra.mxu0 0.0
        %3228 = vmatprep.subr.mxu0 0.0
        %3229 = vmatpush2.msra.mxu0 0.0
        %3230 = vmatprep.subr.mxu0 0.0
        %3231 = vmatpush2.msra.mxu0 0.0
        %3232 = vmatprep.mubr.f32.mxu0 0.0
        %3233 = vmatmul.mubr.f32.gmra.mxu0 %v2497
        %v3234 = vpop.f32.mrf.mxu0
        %v3235 = vadd.f32 0.0, %v3234
        %v3236 = vpop.f32.mrf.mxu0
        %3237 = vdwg.mxu0
        %v3238 = vadd.f32 %v3090, %v3235
        %s3239 = scalar_lea.vmem [#allocation12], 96
        %v3240 = vld [vmem:[%s3239] sm:$0xff]
        %v3241 = vld [vmem:[%s3239 + $0x8] sm:$0xff]
        %v3242 = vld [vmem:[%s3239 + $0x10] sm:$0xff]
        %v3243 = vld [vmem:[%s3239 + $0x18] sm:$0xff]
        %3244 = vmatprep.subr.mxu0 0.0
        %3245 = vmatpush1.msra.mxu0 0.0
        %3246 = vmatprep.subr.mxu0 0.0
        %3247 = vmatpush1.msra.mxu0 0.0
        %3248 = vmatprep.subr.mxu0 0.0
        %3249 = vmatpush1.msra.mxu0 0.0
        %3250 = vmatprep.subr.mxu0 0.0
        %3251 = vmatpush1.msra.mxu0 0.0
        %3252 = vmatprep.subr.mxu0 0.0
        %3253 = vmatpush1.msra.mxu0 0.0
        %3254 = vmatprep.subr.mxu0 0.0
        %3255 = vmatpush1.msra.mxu0 0.0
        %3256 = vmatprep.subr.mxu0 0.0
        %3257 = vmatpush1.msra.mxu0 0.0
        %3258 = vmatprep.subr.mxu0 0.0
        %3259 = vmatpush1.msra.mxu0 0.0
        %3260 = vmatprep.subr.mxu0 0.0
        %3261 = vmatpush1.msra.mxu0 0.0
        %3262 = vmatprep.subr.mxu0 0.0
        %3263 = vmatpush1.msra.mxu0 0.0
        %3264 = vmatprep.subr.mxu0 0.0
        %3265 = vmatpush1.msra.mxu0 0.0
        %3266 = vmatprep.subr.mxu0 0.0
        %3267 = vmatpush1.msra.mxu0 0.0
        %3268 = vmatprep.subr.mxu0 0.0
        %3269 = vmatpush1.msra.mxu0 %v3243
        %3270 = vmatprep.subr.mxu0 0.0
        %3271 = vmatpush1.msra.mxu0 %v3242
        %3272 = vmatprep.subr.mxu0 0.0
        %3273 = vmatpush1.msra.mxu0 %v3241
        %3274 = vmatprep.subr.mxu0 0.0
        %3275 = vmatpush1.msra.mxu0 %v3240
        %3276 = vmatprep.subr.mxu0 0.0
        %3277 = vmatpush2.msra.mxu0 0.0
        %3278 = vmatprep.subr.mxu0 0.0
        %3279 = vmatpush2.msra.mxu0 0.0
        %3280 = vmatprep.subr.mxu0 0.0
        %3281 = vmatpush2.msra.mxu0 0.0
        %3282 = vmatprep.subr.mxu0 0.0
        %3283 = vmatpush2.msra.mxu0 0.0
        %3284 = vmatprep.subr.mxu0 0.0
        %3285 = vmatpush2.msra.mxu0 0.0
        %3286 = vmatprep.subr.mxu0 0.0
        %3287 = vmatpush2.msra.mxu0 0.0
        %3288 = vmatprep.subr.mxu0 0.0
        %3289 = vmatpush2.msra.mxu0 0.0
        %3290 = vmatprep.subr.mxu0 0.0
        %3291 = vmatpush2.msra.mxu0 0.0
        %3292 = vmatprep.subr.mxu0 0.0
        %3293 = vmatpush2.msra.mxu0 0.0
        %3294 = vmatprep.subr.mxu0 0.0
        %3295 = vmatpush2.msra.mxu0 0.0
        %3296 = vmatprep.subr.mxu0 0.0
        %3297 = vmatpush2.msra.mxu0 0.0
        %3298 = vmatprep.subr.mxu0 0.0
        %3299 = vmatpush2.msra.mxu0 0.0
        %3300 = vmatprep.subr.mxu0 0.0
        %3301 = vmatpush2.msra.mxu0 0.0
        %3302 = vmatprep.subr.mxu0 0.0
        %3303 = vmatpush2.msra.mxu0 0.0
        %3304 = vmatprep.subr.mxu0 0.0
        %3305 = vmatpush2.msra.mxu0 0.0
        %3306 = vmatprep.subr.mxu0 0.0
        %3307 = vmatpush2.msra.mxu0 0.0
        %3308 = vmatprep.mubr.f32.mxu0 0.0
        %3309 = vmatmul.mubr.f32.gmra.mxu0 %v2802
        %v3310 = vpop.f32.mrf.mxu0
        %v3311 = vadd.f32 0.0, %v3310
        %v3312 = vpop.f32.mrf.mxu0
        %3313 = vdwg.mxu0
        %3314 = vmatprep.subr.mxu0 0.0
        %3315 = vmatpush1.msra.mxu0 0.0
        %3316 = vmatprep.subr.mxu0 0.0
        %3317 = vmatpush1.msra.mxu0 0.0
        %3318 = vmatprep.subr.mxu0 0.0
        %3319 = vmatpush1.msra.mxu0 0.0
        %3320 = vmatprep.subr.mxu0 0.0
        %3321 = vmatpush1.msra.mxu0 0.0
        %3322 = vmatprep.subr.mxu0 0.0
        %3323 = vmatpush1.msra.mxu0 0.0
        %3324 = vmatprep.subr.mxu0 0.0
        %3325 = vmatpush1.msra.mxu0 0.0
        %3326 = vmatprep.subr.mxu0 0.0
        %3327 = vmatpush1.msra.mxu0 0.0
        %3328 = vmatprep.subr.mxu0 0.0
        %3329 = vmatpush1.msra.mxu0 0.0
        %3330 = vmatprep.subr.mxu0 0.0
        %3331 = vmatpush1.msra.mxu0 0.0
        %3332 = vmatprep.subr.mxu0 0.0
        %3333 = vmatpush1.msra.mxu0 0.0
        %3334 = vmatprep.subr.mxu0 0.0
        %3335 = vmatpush1.msra.mxu0 0.0
        %3336 = vmatprep.subr.mxu0 0.0
        %3337 = vmatpush1.msra.mxu0 0.0
        %3338 = vmatprep.subr.mxu0 0.0
        %3339 = vmatpush1.msra.mxu0 0.0
        %3340 = vmatprep.subr.mxu0 0.0
        %3341 = vmatpush1.msra.mxu0 0.0
        %3342 = vmatprep.subr.mxu0 0.0
        %3343 = vmatpush1.msra.mxu0 0.0
        %3344 = vmatprep.subr.mxu0 0.0
        %3345 = vmatpush1.msra.mxu0 %v3311
        %3346 = vmatprep.subr.mxu0 0.0
        %3347 = vmatpush2.msra.mxu0 0.0
        %3348 = vmatprep.subr.mxu0 0.0
        %3349 = vmatpush2.msra.mxu0 0.0
        %3350 = vmatprep.subr.mxu0 0.0
        %3351 = vmatpush2.msra.mxu0 0.0
        %3352 = vmatprep.subr.mxu0 0.0
        %3353 = vmatpush2.msra.mxu0 0.0
        %3354 = vmatprep.subr.mxu0 0.0
        %3355 = vmatpush2.msra.mxu0 0.0
        %3356 = vmatprep.subr.mxu0 0.0
        %3357 = vmatpush2.msra.mxu0 0.0
        %3358 = vmatprep.subr.mxu0 0.0
        %3359 = vmatpush2.msra.mxu0 0.0
        %3360 = vmatprep.subr.mxu0 0.0
        %3361 = vmatpush2.msra.mxu0 0.0
        %3362 = vmatprep.subr.mxu0 0.0
        %3363 = vmatpush2.msra.mxu0 0.0
        %3364 = vmatprep.subr.mxu0 0.0
        %3365 = vmatpush2.msra.mxu0 0.0
        %3366 = vmatprep.subr.mxu0 0.0
        %3367 = vmatpush2.msra.mxu0 0.0
        %3368 = vmatprep.subr.mxu0 0.0
        %3369 = vmatpush2.msra.mxu0 0.0
        %3370 = vmatprep.subr.mxu0 0.0
        %3371 = vmatpush2.msra.mxu0 0.0
        %3372 = vmatprep.subr.mxu0 0.0
        %3373 = vmatpush2.msra.mxu0 0.0
        %3374 = vmatprep.subr.mxu0 0.0
        %3375 = vmatpush2.msra.mxu0 0.0
        %3376 = vmatprep.subr.mxu0 0.0
        %3377 = vmatpush2.msra.mxu0 0.0
        %3378 = vmatprep.mubr.f32.mxu0 0.0
        %3379 = vmatmul.mubr.f32.gmra.mxu0 %v2720
        %v3380 = vpop.f32.mrf.mxu0
        %v3381 = vadd.f32 0.0, %v3380
        %v3382 = vpop.f32.mrf.mxu0
        %3383 = vdwg.mxu0
        %v3384 = vadd.f32 %v3238, %v3381
        %s3385 = scalar_lea.vmem [#allocation12], 128
        %v3386 = vld [vmem:[%s3385] sm:$0xff]
        %v3387 = vld [vmem:[%s3385 + $0x8] sm:$0xff]
        %v3388 = vld [vmem:[%s3385 + $0x10] sm:$0xff]
        %v3389 = vld [vmem:[%s3385 + $0x18] sm:$0xff]
        %3390 = vmatprep.subr.mxu0 0.0
        %3391 = vmatpush1.msra.mxu0 0.0
        %3392 = vmatprep.subr.mxu0 0.0
        %3393 = vmatpush1.msra.mxu0 0.0
        %3394 = vmatprep.subr.mxu0 0.0
        %3395 = vmatpush1.msra.mxu0 0.0
        %3396 = vmatprep.subr.mxu0 0.0
        %3397 = vmatpush1.msra.mxu0 0.0
        %3398 = vmatprep.subr.mxu0 0.0
        %3399 = vmatpush1.msra.mxu0 0.0
        %3400 = vmatprep.subr.mxu0 0.0
        %3401 = vmatpush1.msra.mxu0 0.0
        %3402 = vmatprep.subr.mxu0 0.0
        %3403 = vmatpush1.msra.mxu0 0.0
        %3404 = vmatprep.subr.mxu0 0.0
        %3405 = vmatpush1.msra.mxu0 0.0
        %3406 = vmatprep.subr.mxu0 0.0
        %3407 = vmatpush1.msra.mxu0 0.0
        %3408 = vmatprep.subr.mxu0 0.0
        %3409 = vmatpush1.msra.mxu0 0.0
        %3410 = vmatprep.subr.mxu0 0.0
        %3411 = vmatpush1.msra.mxu0 0.0
        %3412 = vmatprep.subr.mxu0 0.0
        %3413 = vmatpush1.msra.mxu0 0.0
        %3414 = vmatprep.subr.mxu0 0.0
        %3415 = vmatpush1.msra.mxu0 %v3389
        %3416 = vmatprep.subr.mxu0 0.0
        %3417 = vmatpush1.msra.mxu0 %v3388
        %3418 = vmatprep.subr.mxu0 0.0
        %3419 = vmatpush1.msra.mxu0 %v3387
        %3420 = vmatprep.subr.mxu0 0.0
        %3421 = vmatpush1.msra.mxu0 %v3386
        %3422 = vmatprep.subr.mxu0 0.0
        %3423 = vmatpush2.msra.mxu0 0.0
        %3424 = vmatprep.subr.mxu0 0.0
        %3425 = vmatpush2.msra.mxu0 0.0
        %3426 = vmatprep.subr.mxu0 0.0
        %3427 = vmatpush2.msra.mxu0 0.0
        %3428 = vmatprep.subr.mxu0 0.0
        %3429 = vmatpush2.msra.mxu0 0.0
        %3430 = vmatprep.subr.mxu0 0.0
        %3431 = vmatpush2.msra.mxu0 0.0
        %3432 = vmatprep.subr.mxu0 0.0
        %3433 = vmatpush2.msra.mxu0 0.0
        %3434 = vmatprep.subr.mxu0 0.0
        %3435 = vmatpush2.msra.mxu0 0.0
        %3436 = vmatprep.subr.mxu0 0.0
        %3437 = vmatpush2.msra.mxu0 0.0
        %3438 = vmatprep.subr.mxu0 0.0
        %3439 = vmatpush2.msra.mxu0 0.0
        %3440 = vmatprep.subr.mxu0 0.0
        %3441 = vmatpush2.msra.mxu0 0.0
        %3442 = vmatprep.subr.mxu0 0.0
        %3443 = vmatpush2.msra.mxu0 0.0
        %3444 = vmatprep.subr.mxu0 0.0
        %3445 = vmatpush2.msra.mxu0 0.0
        %3446 = vmatprep.subr.mxu0 0.0
        %3447 = vmatpush2.msra.mxu0 0.0
        %3448 = vmatprep.subr.mxu0 0.0
        %3449 = vmatpush2.msra.mxu0 0.0
        %3450 = vmatprep.subr.mxu0 0.0
        %3451 = vmatpush2.msra.mxu0 0.0
        %3452 = vmatprep.subr.mxu0 0.0
        %3453 = vmatpush2.msra.mxu0 0.0
        %3454 = vmatprep.mubr.f32.mxu0 0.0
        %3455 = vmatmul.mubr.f32.gmra.mxu0 %v2802
        %v3456 = vpop.f32.mrf.mxu0
        %v3457 = vadd.f32 0.0, %v3456
        %v3458 = vpop.f32.mrf.mxu0
        %3459 = vdwg.mxu0
        %s3460 = scalar_lea.vmem %s13, 32
        %v3461 = vld [vmem:[%s3460] sm:$0xff]
        %v3463 = vsel %vm736, %v3461, 0
        %3465 = vmatprep.subr.mxu0 0.0
        %3466 = vmatpush1.msra.mxu0 0.0
        %3467 = vmatprep.subr.mxu0 0.0
        %3468 = vmatpush1.msra.mxu0 0.0
        %3469 = vmatprep.subr.mxu0 0.0
        %3470 = vmatpush1.msra.mxu0 0.0
        %3471 = vmatprep.subr.mxu0 0.0
        %3472 = vmatpush1.msra.mxu0 0.0
        %3473 = vmatprep.subr.mxu0 0.0
        %3474 = vmatpush1.msra.mxu0 0.0
        %3475 = vmatprep.subr.mxu0 0.0
        %3476 = vmatpush1.msra.mxu0 0.0
        %3477 = vmatprep.subr.mxu0 0.0
        %3478 = vmatpush1.msra.mxu0 0.0
        %3479 = vmatprep.subr.mxu0 0.0
        %3480 = vmatpush1.msra.mxu0 0.0
        %3481 = vmatprep.subr.mxu0 0.0
        %3482 = vmatpush1.msra.mxu0 0.0
        %3483 = vmatprep.subr.mxu0 0.0
        %3484 = vmatpush1.msra.mxu0 0.0
        %3485 = vmatprep.subr.mxu0 0.0
        %3486 = vmatpush1.msra.mxu0 0.0
        %3487 = vmatprep.subr.mxu0 0.0
        %3488 = vmatpush1.msra.mxu0 0.0
        %3489 = vmatprep.subr.mxu0 0.0
        %3490 = vmatpush1.msra.mxu0 0.0
        %3491 = vmatprep.subr.mxu0 0.0
        %3492 = vmatpush1.msra.mxu0 0.0
        %3493 = vmatprep.subr.mxu0 0.0
        %3494 = vmatpush1.msra.mxu0 0.0
        %3495 = vmatprep.subr.mxu0 0.0
        %3496 = vmatpush1.msra.mxu0 %v3457
        %3497 = vmatprep.subr.mxu0 0.0
        %3498 = vmatpush2.msra.mxu0 0.0
        %3499 = vmatprep.subr.mxu0 0.0
        %3500 = vmatpush2.msra.mxu0 0.0
        %3501 = vmatprep.subr.mxu0 0.0
        %3502 = vmatpush2.msra.mxu0 0.0
        %3503 = vmatprep.subr.mxu0 0.0
        %3504 = vmatpush2.msra.mxu0 0.0
        %3505 = vmatprep.subr.mxu0 0.0
        %3506 = vmatpush2.msra.mxu0 0.0
        %3507 = vmatprep.subr.mxu0 0.0
        %3508 = vmatpush2.msra.mxu0 0.0
        %3509 = vmatprep.subr.mxu0 0.0
        %3510 = vmatpush2.msra.mxu0 0.0
        %3511 = vmatprep.subr.mxu0 0.0
        %3512 = vmatpush2.msra.mxu0 0.0
        %3513 = vmatprep.subr.mxu0 0.0
        %3514 = vmatpush2.msra.mxu0 0.0
        %3515 = vmatprep.subr.mxu0 0.0
        %3516 = vmatpush2.msra.mxu0 0.0
        %3517 = vmatprep.subr.mxu0 0.0
        %3518 = vmatpush2.msra.mxu0 0.0
        %3519 = vmatprep.subr.mxu0 0.0
        %3520 = vmatpush2.msra.mxu0 0.0
        %3521 = vmatprep.subr.mxu0 0.0
        %3522 = vmatpush2.msra.mxu0 0.0
        %3523 = vmatprep.subr.mxu0 0.0
        %3524 = vmatpush2.msra.mxu0 0.0
        %3525 = vmatprep.subr.mxu0 0.0
        %3526 = vmatpush2.msra.mxu0 0.0
        %3527 = vmatprep.subr.mxu0 0.0
        %3528 = vmatpush2.msra.mxu0 0.0
        %3529 = vmatprep.mubr.f32.mxu0 0.0
        %3530 = vmatmul.mubr.f32.gmra.mxu0 %v3463
        %v3531 = vpop.f32.mrf.mxu0
        %v3532 = vadd.f32 0.0, %v3531
        %v3533 = vpop.f32.mrf.mxu0
        %3534 = vdwg.mxu0
        %v3535 = vadd.f32 %v3384, %v3532
        %v3536 = vstv %s2796
        %v3537 = vadd.f32 %v3535, %v3536
        %v3538 = vmax.f32 %v3537, 0.0
        %v3539 = vadd.f32 %v2331, %v3538
        %v3540 = vld [vmem:[%s11] sm:$0x1]
        %v3541 = vld [vmem:[%s12] sm:$0x1]
        %v3542 = vsel %vm659, %v3539, 0.0
        %3543 = vadd.xlane.f32.xlu0 %v3542
        %v3544 = vpop.xlane.xlu0 %3543
        %v3545 = vmul.f32 %v3544, %v2307
        %v3546 = vsub.f32 %v3539, %v3545
        %v3547 = vmul.f32 %v3546, %v3546
        %v3548 = vsel %vm659, %v3547, 0.0
        %3549 = vadd.xlane.f32.xlu0 %v3548
        %v3550 = vpop.xlane.xlu0 %3549
        %v3551 = vmul.f32 %v3550, %v2307
        %v3552 = vadd.f32 %v3551, 1e-05
        %v3553 = vrsqrt.pop %v3552
        %v3554 = vmul.f32 %v3546, %v3553
        %v3556 = vlaneseq
        %v3557 = vshrl.u32 %v3556, 7
        %v3558 = vsub.s32 0, %v3557
        %v3559 = vrot.slane %v3540, %v3558
        %v3561 = vmul.f32 %v3554, %v3559
        %v3563 = vlaneseq
        %v3564 = vshrl.u32 %v3563, 7
        %v3565 = vsub.s32 0, %v3564
        %v3566 = vrot.slane %v3541, %v3565
        %v3568 = vadd.f32 %v3561, %v3566
        %3569 = vst.msk [vmem:[%s646] sm:$0xff] %vm659, %v3568
        %s3570 = sand.u32 %s408, 1
        %s3571 = scalar_lea.sflag [#allocation4], %s3570
        %s3572 = sand.u32 %s408, 1
        %s3573 = smul.addr %s3572, 8
        %s3574 = scalar_lea.vmem [#allocation15], %s3573
        // Predicated region
        $region117: #{tpu_custom_call.1} parent=87 // pred_check
          %p3575 = pneg %p418
        $region118: #{tpu_custom_call.1} parent=87 // pred_check_branch
          %3577 = sbr.rel (%p3575) target = $region120
        $region119: #{tpu_custom_call.1} parent=87 // pred_region
          %s3579 = ssub.s32 128, 128
          %3580 = vsyncadd %s3571, %s3579
          %s3581 = smul.addr %s38, 128
          %s3582 = scalar_lea.hbm %s17, %s3581
          %s3584 = sshll.u32 %s3574, 4
          %s3585 = int_to_ptr.vmem [resolvable:$true] %s3584
          %3587 = dma.vmem_to_hbm [thread:$0]  %s3585, 128, %s3582, %s3571
        $region120: #{tpu_custom_call.1} parent=87 // pred_fallthru
          _
      $region88: #{tpu_custom_call.1} parent=5 // pred_fallthru
        _
      %p3588 = scmp.le.s32.totalorder 2, %s33
      // Predicated region
      $region121: #{tpu_custom_call.1} parent=5 // pred_check
        %p3589 = pneg %p3588
      $region122: #{tpu_custom_call.1} parent=5 // pred_check_branch
        %3591 = sbr.rel (%p3589) target = $region124
      $region123: #{tpu_custom_call.1} parent=5 // pred_region
        %s3592 = ssub.s32 %s33, 2
        // Predicated region
        $region125: #{tpu_custom_call.1} parent=123 // pred_check
          %p3593 = pneg %p424
        $region126: #{tpu_custom_call.1} parent=123 // pred_check_branch
          %3595 = sbr.rel (%p3593) target = $region128
        $region127: #{tpu_custom_call.1} parent=123 // pred_region
          %s3596 = sand.u32 %s409, 1
          %s3597 = scalar_lea.sflag [#allocation4], %s3596
          %s3598 = sand.u32 %s409, 1
          %s3599 = smul.addr %s3598, 8
          %s3600 = scalar_lea.vmem [#allocation15], %s3599
          %3601 = dma.done %s3597, 128
        $region128: #{tpu_custom_call.1} parent=123 // pred_fallthru
          _
      $region124: #{tpu_custom_call.1} parent=5 // pred_fallthru
        _
    $region6: #{tpu_custom_call.1} parent=1 // loop_footer
      %s37 = sadd.s32 1, %s33
    $region7: #{tpu_custom_call.1} parent=1 // loop_footer_branch
      %32 = sbr.rel target = $region3
    $region8: #{tpu_custom_call.1} parent=1 // loop_exit
      _
    %3602 = vsyncpa [#allocation3], 1
    %s3603 = scalar_lea.sflag [#allocation3], 1
    %3604 = vsyncpa %s3603, 1
    %3605 = vsyncpa [#allocation7], 1
    %3606 = vsyncpa [#allocation10], 1
    %3607 = vsyncpa [#allocation13], 1
    %3608 = vsyncpa [#allocation4], 1
    %s3609 = scalar_lea.sflag [#allocation4], 1
    %3610 = vsyncpa %s3609, 1
    %3611 = vsyncpa [#allocation5], 1
    %s3612 = scalar_lea.sflag [#allocation5], 1
    %3613 = vsyncpa %s3612, 1

</llo_original>
